<compile_context>
chip_gen: v7x
topology: tpu7x:2x2x1
jax: 0.10.0
libtpu: 0.0.40
codegen_flags: <defaults>
</compile_context>

<pallas_src>
import functools

import jax
import jax.numpy as jnp
from jax.experimental import pallas as pl
from jax.experimental.pallas import tpu as pltpu


def _align_attn_kernel(x_ref, w_ref, wb_ref, wqkv_ref, bqkv_ref, o_ref,
                       *, feature_dim, num_layers, batch_tile):
    # x_ref:    (Bt, input_dim, L)            f32  -- Bt batch elements per step
    # w_ref:    (output_dim, input_dim)       bf16 -- align weight (torch layout)
    # wb_ref:   (output_dim, 1)               f32  -- align bias
    # wqkv_ref: (num_layers, D, 3D)           bf16 -- fused q|k|v projections (x @ W form)
    # bqkv_ref: (num_layers, 1, 3D)           f32  -- fused q|k|v biases
    # o_ref:    (Bt, output_dim, L)           f32
    D = feature_dim

    # --- dimension align: one batched matmul over all Bt elements -----------
    x16 = x_ref[...].astype(jnp.bfloat16)                       # cast on-chip (VPU)
    w16 = w_ref[...]                                            # (O, I) bf16
    w_b = jnp.broadcast_to(w16, (batch_tile,) + w16.shape)      # (Bt, O, I), tiny
    y = jnp.einsum("boi,bil->bol", w_b, x16,
                   preferred_element_type=jnp.float32) + wb_ref[...]   # (Bt, O, L) f32

    scale = 1.0 / jnp.sqrt(jnp.float32(D))

    # --- 4 stacked self-attention blocks (static unrolled; layers are serial)
    for i in range(num_layers):
        y16 = y.astype(jnp.bfloat16)
        # Single fused projection: (Bt*T, D) x (D, 3D) — full MXU column fill.
        qkv = jnp.einsum("btd,de->bte", y16, wqkv_ref[i],
                         preferred_element_type=jnp.float32) + bqkv_ref[i]
        q = qkv[..., 0 * D:1 * D].astype(jnp.bfloat16)          # lane-aligned slices
        k = qkv[..., 1 * D:2 * D].astype(jnp.bfloat16)
        v = qkv[..., 2 * D:3 * D].astype(jnp.bfloat16)

        # Scores: contract on the shared last dim (no explicit k.T transpose).
        s = jnp.einsum("bqd,bkd->bqk", q, k,
                       preferred_element_type=jnp.float32) * scale
        s = s - jnp.max(s, axis=-1, keepdims=True)
        p = jnp.exp(s)
        p = p / jnp.sum(p, axis=-1, keepdims=True)              # exact divide

        y = jnp.einsum("bqk,bkd->bqd", p.astype(jnp.bfloat16), v,
                       preferred_element_type=jnp.float32)      # (Bt, T, D) f32

    o_ref[...] = y.astype(o_ref.dtype)


def align_model_forward(x, params, *, batch_tile=None):
    """x: (B, input_dim, L) float32 -> (B, output_dim, L) float32."""
    B, input_dim, L = x.shape
    w_align = params["w_align"]          # (output_dim, input_dim)
    b_align = params["b_align"]          # (output_dim, 1)
    wq, bq = params["wq"], params["bq"]  # (4, D, D), (4, 1, D)
    wk, bk = params["wk"], params["bk"]
    wv, bv = params["wv"], params["bv"]
    output_dim = w_align.shape[0]
    num_layers, feature_dim = wq.shape[0], wq.shape[1]
    assert feature_dim == L, "feature_dim must equal the sequence length L"

    if batch_tile is None:
        # Largest tile that still leaves >= 2 grid steps, so ("parallel",) can
        # shard across v7x's 2 TensorCores.  On single-TC v5e/v6e, pass
        # batch_tile explicitly (e.g. batch_tile=B) to maximise MXU row fill.
        cands = [bt for bt in (32, 16, 8, 4, 2, 1)
                 if bt <= B and B % bt == 0 and B // bt >= 2]
        batch_tile = cands[0] if cands else B
    assert B % batch_tile == 0, "batch must be divisible by batch_tile"
    grid = (B // batch_tile,)

    # bf16 MXU weight operands (halves weight DMA + VMEM); biases stay f32 and
    # are added after the f32-accumulated matmuls.  The activation x stays f32
    # on the wire and is cast to bf16 inside the kernel.
    w_lo = w_align.astype(jnp.bfloat16)
    wqkv = jnp.concatenate([wq, wk, wv], axis=-1).astype(jnp.bfloat16)  # (NL, D, 3D)
    bqkv = jnp.concatenate([bq, bk, bv], axis=-1).astype(jnp.float32)   # (NL, 1, 3D)
    b_align = b_align.astype(jnp.float32)

    # --- VMEM budget: actual footprint + margin (v7x has only 64 MiB / TC) ---
    weight_bytes = (w_lo.size * 2 + wqkv.size * 2
                    + b_align.size * 4 + bqkv.size * 4)                 # single-buffered
    io_bytes = 2 * batch_tile * L * (input_dim + output_dim) * 4        # double-buffered x / out
    act_bytes = batch_tile * output_dim * (6 * feature_dim + output_dim) * 4  # y, qkv, q/k/v, scores
    vmem_limit = int(min(max(weight_bytes + io_bytes + 4 * act_bytes + (8 << 20),
                             16 << 20), 48 << 20))

    kernel = functools.partial(
        _align_attn_kernel, feature_dim=feature_dim, num_layers=num_layers,
        batch_tile=batch_tile)

    # Grid-invariant weights/biases: never re-fetched -> single-buffered.
    const = pl.Buffered(1)
    grid_spec = pltpu.PrefetchScalarGridSpec(
        num_scalar_prefetch=0,
        grid=grid,
        in_specs=[
            pl.BlockSpec((batch_tile, input_dim, L), lambda b: (b, 0, 0)),      # x (f32)
            pl.BlockSpec((output_dim, input_dim), lambda b: (0, 0),
                         pipeline_mode=const),                                   # w_align
            pl.BlockSpec((output_dim, 1), lambda b: (0, 0),
                         pipeline_mode=const),                                   # b_align
            pl.BlockSpec((num_layers, feature_dim, 3 * feature_dim),
                         lambda b: (0, 0, 0), pipeline_mode=const),              # wqkv
            pl.BlockSpec((num_layers, 1, 3 * feature_dim),
                         lambda b: (0, 0, 0), pipeline_mode=const),              # bqkv
        ],
        out_specs=pl.BlockSpec((batch_tile, output_dim, L), lambda b: (b, 0, 0)),
    )

    return pl.pallas_call(
        kernel,
        out_shape=jax.ShapeDtypeStruct((B, output_dim, L), jnp.float32),
        grid_spec=grid_spec,
        compiler_params=pltpu.CompilerParams(
            dimension_semantics=("parallel",),
            vmem_limit_bytes=vmem_limit),
    )(x, w_lo, b_align, wqkv, bqkv)


def init_params(key, input_dim, output_dim, feature_dim, num_layers=4):
    ks = jax.random.split(key, 8)
    scale_align = 1.0 / jnp.sqrt(jnp.float32(input_dim))
    scale_attn = 1.0 / jnp.sqrt(jnp.float32(feature_dim))
    params = {
        # torch Linear weight layout (output_dim, input_dim); kernel computes W @ x
        "w_align": jax.random.uniform(ks[0], (output_dim, input_dim), jnp.float32,
                                      -scale_align, scale_align),
        "b_align": jax.random.uniform(ks[1], (output_dim, 1), jnp.float32,
                                      -scale_align, scale_align),
        # attention projections stored pre-transposed so kernel does x @ W
        "wq": jax.random.uniform(ks[2], (num_layers, feature_dim, feature_dim),
                                 jnp.float32, -scale_attn, scale_attn),
        "bq": jax.random.uniform(ks[3], (num_layers, 1, feature_dim),
                                 jnp.float32, -scale_attn, scale_attn),
        "wk": jax.random.uniform(ks[4], (num_layers, feature_dim, feature_dim),
                                 jnp.float32, -scale_attn, scale_attn),
        "bk": jax.random.uniform(ks[5], (num_layers, 1, feature_dim),
                                 jnp.float32, -scale_attn, scale_attn),
        "wv": jax.random.uniform(ks[6], (num_layers, feature_dim, feature_dim),
                                 jnp.float32, -scale_attn, scale_attn),
        "bv": jax.random.uniform(ks[7], (num_layers, 1, feature_dim),
                                 jnp.float32, -scale_attn, scale_attn),
    }
    return params


def _reference_forward(x, params):
    """Pure-JAX f32 reference reproducing the torch forward (correctness check)."""
    # permute(0,2,1) -> Linear(input_dim, output_dim) -> permute(0,2,1)
    y = jnp.einsum("bil,oi->bol", x, params["w_align"]) + params["b_align"][None]
    d = y.shape[-1]
    for i in range(params["wq"].shape[0]):
        q = jnp.einsum("btd,de->bte", y, params["wq"][i]) + params["bq"][i][None]
        k = jnp.einsum("btd,de->bte", y, params["wk"][i]) + params["bk"][i][None]
        v = jnp.einsum("btd,de->bte", y, params["wv"][i]) + params["bv"][i][None]
        s = jnp.einsum("btd,bsd->bts", q, k) / jnp.sqrt(jnp.float32(d))
        p = jax.nn.softmax(s, axis=-1)
        y = jnp.einsum("bts,bsd->btd", p, v)
    return y


if __name__ == "__main__":
    # Small shapes consistent with the module:
    #   mae_output: (B, input_dim, L); feature_dim == L (attention feature axis).
    # L chosen as a multiple of 128 so every tile / qkv slice is lane-dense.
    B, input_dim, output_dim, feature_dim = 8, 8, 16, 128
    L = feature_dim

    key = jax.random.PRNGKey(0)
    kx, kp = jax.random.split(key)
    x = jax.random.normal(kx, (B, input_dim, L), jnp.float32)
    params = init_params(kp, input_dim, output_dim, feature_dim)

    out = align_model_forward(x, params)          # default heuristic -> grid=(2,)
    out = jax.block_until_ready(out)

    ref = _reference_forward(x, params)
    assert out.shape == (B, output_dim, L)
    # bf16 MXU operands -> relaxed tolerance vs. the f32 reference.
    assert jnp.allclose(out, ref, atol=3e-2, rtol=3e-2)

    print("KERNEL_OK")
</pallas_src>

<mosaic_0001>
module attributes {stable_mosaic.version = 11 : i64} {
  func.func @_align_attn_kernel(%arg0: i32, %arg1: memref<4x8x128xf32, #tpu.memory_space<vmem>>, %arg2: memref<16x8xbf16, #tpu.memory_space<vmem>>, %arg3: memref<16x1xf32, #tpu.memory_space<vmem>>, %arg4: memref<4x128x384xbf16, #tpu.memory_space<vmem>>, %arg5: memref<4x1x384xf32, #tpu.memory_space<vmem>>, %arg6: memref<4x16x128xf32, #tpu.memory_space<vmem>>) attributes {dimension_semantics = [#tpu.dimension_semantics<parallel>], iteration_bounds = array<i64: 2>, scalar_prefetch = 0 : i64, scratch_operands = 0 : i64, tpu.core_type = #tpu.core_type<tc>, window_params = [{transform_indices = @transform_0, window_bounds = array<i64: 4, 8, 128>}, {pipeline_mode = #tpu.pipeline_mode<synchronous>, transform_indices = @transform_1, window_bounds = array<i64: 16, 8>}, {pipeline_mode = #tpu.pipeline_mode<synchronous>, transform_indices = @transform_2, window_bounds = array<i64: 16, 1>}, {pipeline_mode = #tpu.pipeline_mode<synchronous>, transform_indices = @transform_3, window_bounds = array<i64: 4, 128, 384>}, {pipeline_mode = #tpu.pipeline_mode<synchronous>, transform_indices = @transform_4, window_bounds = array<i64: 4, 1, 384>}, {transform_indices = @transform_5, window_bounds = array<i64: 4, 16, 128>}]} {
    %c0 = arith.constant 0 : index
    %c0_0 = arith.constant 0 : index
    %c0_1 = arith.constant 0 : index
    %0 = vector.load %arg1[%c0, %c0_0, %c0_1] : memref<4x8x128xf32, #tpu.memory_space<vmem>>, vector<4x8x128xf32>
    %1 = arith.truncf %0 : vector<4x8x128xf32> to vector<4x8x128xbf16>
    %c0_2 = arith.constant 0 : index
    %c0_3 = arith.constant 0 : index
    %2 = vector.load %arg2[%c0_2, %c0_3] : memref<16x8xbf16, #tpu.memory_space<vmem>>, vector<16x8xbf16>
    %3 = vector.shape_cast %2 : vector<16x8xbf16> to vector<1x16x8xbf16>
    %4 = vector.broadcast %3 : vector<1x16x8xbf16> to vector<4x16x8xbf16>
    "tpu.trace_start"() <{level = 10 : i32, message = "boi,bil->bol"}> : () -> ()
    %cst = arith.constant dense<0.000000e+00> : vector<4x16x128xf32>
    %5 = tpu.matmul %4, %1, %cst {dimension_numbers = #tpu.dot_dimension_numbers<[2], [1], [1], [2], [0, 0, 0, 1, 1, 2], [0], [0]>} : vector<4x16x8xbf16>, vector<4x8x128xbf16>, vector<4x16x128xf32> -> vector<4x16x128xf32>
    "tpu.trace_stop"() : () -> ()
    %c0_4 = arith.constant 0 : index
    %c0_5 = arith.constant 0 : index
    %6 = vector.load %arg3[%c0_4, %c0_5] : memref<16x1xf32, #tpu.memory_space<vmem>>, vector<16x1xf32>
    %7 = vector.shape_cast %6 : vector<16x1xf32> to vector<1x16x1xf32>
    %8 = vector.broadcast %7 : vector<1x16x1xf32> to vector<4x16x128xf32>
    %9 = arith.addf %5, %8 : vector<4x16x128xf32>
    %cst_6 = arith.constant 1.280000e+02 : f32
    %10 = math.sqrt %cst_6 : f32
    %cst_7 = arith.constant 1.000000e+00 : f32
    %11 = arith.divf %cst_7, %10 : f32
    %12 = arith.truncf %9 : vector<4x16x128xf32> to vector<4x16x128xbf16>
    %c0_8 = arith.constant 0 : index
    %c0_9 = arith.constant 0 : index
    %c0_10 = arith.constant 0 : index
    %13 = vector.load %arg4[%c0_8, %c0_9, %c0_10] : memref<4x128x384xbf16, #tpu.memory_space<vmem>>, vector<1x128x384xbf16>
    %14 = vector.shape_cast %13 : vector<1x128x384xbf16> to vector<128x384xbf16>
    "tpu.trace_start"() <{level = 10 : i32, message = "btd,de->bte"}> : () -> ()
    %cst_11 = arith.constant dense<0.000000e+00> : vector<4x16x384xf32>
    %15 = tpu.matmul %12, %14, %cst_11 {dimension_numbers = #tpu.dot_dimension_numbers<[2], [0], [0, 1], [1], [0, 0, 0, 1, 1, 1], [], []>} : vector<4x16x128xbf16>, vector<128x384xbf16>, vector<4x16x384xf32> -> vector<4x16x384xf32>
    "tpu.trace_stop"() : () -> ()
    %c0_12 = arith.constant 0 : index
    %c0_13 = arith.constant 0 : index
    %c0_14 = arith.constant 0 : index
    %16 = vector.load %arg5[%c0_12, %c0_13, %c0_14] : memref<4x1x384xf32, #tpu.memory_space<vmem>>, vector<1x1x384xf32>
    %17 = vector.shape_cast %16 : vector<1x1x384xf32> to vector<1x384xf32>
    %18 = vector.shape_cast %17 : vector<1x384xf32> to vector<1x1x384xf32>
    %19 = vector.broadcast %18 : vector<1x1x384xf32> to vector<4x16x384xf32>
    %20 = arith.addf %15, %19 : vector<4x16x384xf32>
    %21 = vector.extract_strided_slice %20 {offsets = [0, 0, 0], sizes = [4, 16, 128], strides = [1, 1, 1]} : vector<4x16x384xf32> to vector<4x16x128xf32>
    %22 = arith.truncf %21 : vector<4x16x128xf32> to vector<4x16x128xbf16>
    %23 = vector.extract_strided_slice %20 {offsets = [0, 0, 128], sizes = [4, 16, 128], strides = [1, 1, 1]} : vector<4x16x384xf32> to vector<4x16x128xf32>
    %24 = arith.truncf %23 : vector<4x16x128xf32> to vector<4x16x128xbf16>
    %25 = vector.extract_strided_slice %20 {offsets = [0, 0, 256], sizes = [4, 16, 128], strides = [1, 1, 1]} : vector<4x16x384xf32> to vector<4x16x128xf32>
    %26 = arith.truncf %25 : vector<4x16x128xf32> to vector<4x16x128xbf16>
    "tpu.trace_start"() <{level = 10 : i32, message = "bqd,bkd->bqk"}> : () -> ()
    %cst_15 = arith.constant dense<0.000000e+00> : vector<4x16x16xf32>
    %27 = tpu.matmul %22, %24, %cst_15 {dimension_numbers = #tpu.dot_dimension_numbers<[2], [2], [1], [1], [0, 0, 0, 1, 1, 1], [0], [0]>} : vector<4x16x128xbf16>, vector<4x16x128xbf16>, vector<4x16x16xf32> -> vector<4x16x16xf32>
    "tpu.trace_stop"() : () -> ()
    %28 = vector.broadcast %11 : f32 to vector<4x16x16xf32>
    %29 = arith.mulf %27, %28 : vector<4x16x16xf32>
    %cst_16 = arith.constant dense<0xFF800000> : vector<4x16xf32>
    %30 = vector.multi_reduction <maximumf>, %29, %cst_16 [2] : vector<4x16x16xf32> to vector<4x16xf32>
    %31 = vector.shape_cast %30 : vector<4x16xf32> to vector<4x16x1xf32>
    %32 = vector.broadcast %31 : vector<4x16x1xf32> to vector<4x16x16xf32>
    %33 = arith.subf %29, %32 : vector<4x16x16xf32>
    %34 = math.exp %33 : vector<4x16x16xf32>
    %cst_17 = arith.constant dense<0.000000e+00> : vector<4x16xf32>
    %35 = vector.multi_reduction <add>, %34, %cst_17 [2] : vector<4x16x16xf32> to vector<4x16xf32>
    %36 = vector.shape_cast %35 : vector<4x16xf32> to vector<4x16x1xf32>
    %37 = vector.broadcast %36 : vector<4x16x1xf32> to vector<4x16x16xf32>
    %38 = arith.divf %34, %37 : vector<4x16x16xf32>
    %39 = arith.truncf %38 : vector<4x16x16xf32> to vector<4x16x16xbf16>
    "tpu.trace_start"() <{level = 10 : i32, message = "bqk,bkd->bqd"}> : () -> ()
    %cst_18 = arith.constant dense<0.000000e+00> : vector<4x16x128xf32>
    %40 = tpu.matmul %39, %26, %cst_18 {dimension_numbers = #tpu.dot_dimension_numbers<[2], [1], [1], [2], [0, 0, 0, 1, 1, 2], [0], [0]>} : vector<4x16x16xbf16>, vector<4x16x128xbf16>, vector<4x16x128xf32> -> vector<4x16x128xf32>
    "tpu.trace_stop"() : () -> ()
    %41 = arith.truncf %40 : vector<4x16x128xf32> to vector<4x16x128xbf16>
    %c1 = arith.constant 1 : index
    %c0_19 = arith.constant 0 : index
    %c0_20 = arith.constant 0 : index
    %42 = vector.load %arg4[%c1, %c0_19, %c0_20] : memref<4x128x384xbf16, #tpu.memory_space<vmem>>, vector<1x128x384xbf16>
    %43 = vector.shape_cast %42 : vector<1x128x384xbf16> to vector<128x384xbf16>
    "tpu.trace_start"() <{level = 10 : i32, message = "btd,de->bte"}> : () -> ()
    %cst_21 = arith.constant dense<0.000000e+00> : vector<4x16x384xf32>
    %44 = tpu.matmul %41, %43, %cst_21 {dimension_numbers = #tpu.dot_dimension_numbers<[2], [0], [0, 1], [1], [0, 0, 0, 1, 1, 1], [], []>} : vector<4x16x128xbf16>, vector<128x384xbf16>, vector<4x16x384xf32> -> vector<4x16x384xf32>
    "tpu.trace_stop"() : () -> ()
    %c1_22 = arith.constant 1 : index
    %c0_23 = arith.constant 0 : index
    %c0_24 = arith.constant 0 : index
    %45 = vector.load %arg5[%c1_22, %c0_23, %c0_24] : memref<4x1x384xf32, #tpu.memory_space<vmem>>, vector<1x1x384xf32>
    %46 = vector.shape_cast %45 : vector<1x1x384xf32> to vector<1x384xf32>
    %47 = vector.shape_cast %46 : vector<1x384xf32> to vector<1x1x384xf32>
    %48 = vector.broadcast %47 : vector<1x1x384xf32> to vector<4x16x384xf32>
    %49 = arith.addf %44, %48 : vector<4x16x384xf32>
    %50 = vector.extract_strided_slice %49 {offsets = [0, 0, 0], sizes = [4, 16, 128], strides = [1, 1, 1]} : vector<4x16x384xf32> to vector<4x16x128xf32>
    %51 = arith.truncf %50 : vector<4x16x128xf32> to vector<4x16x128xbf16>
    %52 = vector.extract_strided_slice %49 {offsets = [0, 0, 128], sizes = [4, 16, 128], strides = [1, 1, 1]} : vector<4x16x384xf32> to vector<4x16x128xf32>
    %53 = arith.truncf %52 : vector<4x16x128xf32> to vector<4x16x128xbf16>
    %54 = vector.extract_strided_slice %49 {offsets = [0, 0, 256], sizes = [4, 16, 128], strides = [1, 1, 1]} : vector<4x16x384xf32> to vector<4x16x128xf32>
    %55 = arith.truncf %54 : vector<4x16x128xf32> to vector<4x16x128xbf16>
    "tpu.trace_start"() <{level = 10 : i32, message = "bqd,bkd->bqk"}> : () -> ()
    %cst_25 = arith.constant dense<0.000000e+00> : vector<4x16x16xf32>
    %56 = tpu.matmul %51, %53, %cst_25 {dimension_numbers = #tpu.dot_dimension_numbers<[2], [2], [1], [1], [0, 0, 0, 1, 1, 1], [0], [0]>} : vector<4x16x128xbf16>, vector<4x16x128xbf16>, vector<4x16x16xf32> -> vector<4x16x16xf32>
    "tpu.trace_stop"() : () -> ()
    %57 = vector.broadcast %11 : f32 to vector<4x16x16xf32>
    %58 = arith.mulf %56, %57 : vector<4x16x16xf32>
    %cst_26 = arith.constant dense<0xFF800000> : vector<4x16xf32>
    %59 = vector.multi_reduction <maximumf>, %58, %cst_26 [2] : vector<4x16x16xf32> to vector<4x16xf32>
    %60 = vector.shape_cast %59 : vector<4x16xf32> to vector<4x16x1xf32>
    %61 = vector.broadcast %60 : vector<4x16x1xf32> to vector<4x16x16xf32>
    %62 = arith.subf %58, %61 : vector<4x16x16xf32>
    %63 = math.exp %62 : vector<4x16x16xf32>
    %cst_27 = arith.constant dense<0.000000e+00> : vector<4x16xf32>
    %64 = vector.multi_reduction <add>, %63, %cst_27 [2] : vector<4x16x16xf32> to vector<4x16xf32>
    %65 = vector.shape_cast %64 : vector<4x16xf32> to vector<4x16x1xf32>
    %66 = vector.broadcast %65 : vector<4x16x1xf32> to vector<4x16x16xf32>
    %67 = arith.divf %63, %66 : vector<4x16x16xf32>
    %68 = arith.truncf %67 : vector<4x16x16xf32> to vector<4x16x16xbf16>
    "tpu.trace_start"() <{level = 10 : i32, message = "bqk,bkd->bqd"}> : () -> ()
    %cst_28 = arith.constant dense<0.000000e+00> : vector<4x16x128xf32>
    %69 = tpu.matmul %68, %55, %cst_28 {dimension_numbers = #tpu.dot_dimension_numbers<[2], [1], [1], [2], [0, 0, 0, 1, 1, 2], [0], [0]>} : vector<4x16x16xbf16>, vector<4x16x128xbf16>, vector<4x16x128xf32> -> vector<4x16x128xf32>
    "tpu.trace_stop"() : () -> ()
    %70 = arith.truncf %69 : vector<4x16x128xf32> to vector<4x16x128xbf16>
    %c2 = arith.constant 2 : index
    %c0_29 = arith.constant 0 : index
    %c0_30 = arith.constant 0 : index
    %71 = vector.load %arg4[%c2, %c0_29, %c0_30] : memref<4x128x384xbf16, #tpu.memory_space<vmem>>, vector<1x128x384xbf16>
    %72 = vector.shape_cast %71 : vector<1x128x384xbf16> to vector<128x384xbf16>
    "tpu.trace_start"() <{level = 10 : i32, message = "btd,de->bte"}> : () -> ()
    %cst_31 = arith.constant dense<0.000000e+00> : vector<4x16x384xf32>
    %73 = tpu.matmul %70, %72, %cst_31 {dimension_numbers = #tpu.dot_dimension_numbers<[2], [0], [0, 1], [1], [0, 0, 0, 1, 1, 1], [], []>} : vector<4x16x128xbf16>, vector<128x384xbf16>, vector<4x16x384xf32> -> vector<4x16x384xf32>
    "tpu.trace_stop"() : () -> ()
    %c2_32 = arith.constant 2 : index
    %c0_33 = arith.constant 0 : index
    %c0_34 = arith.constant 0 : index
    %74 = vector.load %arg5[%c2_32, %c0_33, %c0_34] : memref<4x1x384xf32, #tpu.memory_space<vmem>>, vector<1x1x384xf32>
    %75 = vector.shape_cast %74 : vector<1x1x384xf32> to vector<1x384xf32>
    %76 = vector.shape_cast %75 : vector<1x384xf32> to vector<1x1x384xf32>
    %77 = vector.broadcast %76 : vector<1x1x384xf32> to vector<4x16x384xf32>
    %78 = arith.addf %73, %77 : vector<4x16x384xf32>
    %79 = vector.extract_strided_slice %78 {offsets = [0, 0, 0], sizes = [4, 16, 128], strides = [1, 1, 1]} : vector<4x16x384xf32> to vector<4x16x128xf32>
    %80 = arith.truncf %79 : vector<4x16x128xf32> to vector<4x16x128xbf16>
    %81 = vector.extract_strided_slice %78 {offsets = [0, 0, 128], sizes = [4, 16, 128], strides = [1, 1, 1]} : vector<4x16x384xf32> to vector<4x16x128xf32>
    %82 = arith.truncf %81 : vector<4x16x128xf32> to vector<4x16x128xbf16>
    %83 = vector.extract_strided_slice %78 {offsets = [0, 0, 256], sizes = [4, 16, 128], strides = [1, 1, 1]} : vector<4x16x384xf32> to vector<4x16x128xf32>
    %84 = arith.truncf %83 : vector<4x16x128xf32> to vector<4x16x128xbf16>
    "tpu.trace_start"() <{level = 10 : i32, message = "bqd,bkd->bqk"}> : () -> ()
    %cst_35 = arith.constant dense<0.000000e+00> : vector<4x16x16xf32>
    %85 = tpu.matmul %80, %82, %cst_35 {dimension_numbers = #tpu.dot_dimension_numbers<[2], [2], [1], [1], [0, 0, 0, 1, 1, 1], [0], [0]>} : vector<4x16x128xbf16>, vector<4x16x128xbf16>, vector<4x16x16xf32> -> vector<4x16x16xf32>
    "tpu.trace_stop"() : () -> ()
    %86 = vector.broadcast %11 : f32 to vector<4x16x16xf32>
    %87 = arith.mulf %85, %86 : vector<4x16x16xf32>
    %cst_36 = arith.constant dense<0xFF800000> : vector<4x16xf32>
    %88 = vector.multi_reduction <maximumf>, %87, %cst_36 [2] : vector<4x16x16xf32> to vector<4x16xf32>
    %89 = vector.shape_cast %88 : vector<4x16xf32> to vector<4x16x1xf32>
    %90 = vector.broadcast %89 : vector<4x16x1xf32> to vector<4x16x16xf32>
    %91 = arith.subf %87, %90 : vector<4x16x16xf32>
    %92 = math.exp %91 : vector<4x16x16xf32>
    %cst_37 = arith.constant dense<0.000000e+00> : vector<4x16xf32>
    %93 = vector.multi_reduction <add>, %92, %cst_37 [2] : vector<4x16x16xf32> to vector<4x16xf32>
    %94 = vector.shape_cast %93 : vector<4x16xf32> to vector<4x16x1xf32>
    %95 = vector.broadcast %94 : vector<4x16x1xf32> to vector<4x16x16xf32>
    %96 = arith.divf %92, %95 : vector<4x16x16xf32>
    %97 = arith.truncf %96 : vector<4x16x16xf32> to vector<4x16x16xbf16>
    "tpu.trace_start"() <{level = 10 : i32, message = "bqk,bkd->bqd"}> : () -> ()
    %cst_38 = arith.constant dense<0.000000e+00> : vector<4x16x128xf32>
    %98 = tpu.matmul %97, %84, %cst_38 {dimension_numbers = #tpu.dot_dimension_numbers<[2], [1], [1], [2], [0, 0, 0, 1, 1, 2], [0], [0]>} : vector<4x16x16xbf16>, vector<4x16x128xbf16>, vector<4x16x128xf32> -> vector<4x16x128xf32>
    "tpu.trace_stop"() : () -> ()
    %99 = arith.truncf %98 : vector<4x16x128xf32> to vector<4x16x128xbf16>
    %c3 = arith.constant 3 : index
    %c0_39 = arith.constant 0 : index
    %c0_40 = arith.constant 0 : index
    %100 = vector.load %arg4[%c3, %c0_39, %c0_40] : memref<4x128x384xbf16, #tpu.memory_space<vmem>>, vector<1x128x384xbf16>
    %101 = vector.shape_cast %100 : vector<1x128x384xbf16> to vector<128x384xbf16>
    "tpu.trace_start"() <{level = 10 : i32, message = "btd,de->bte"}> : () -> ()
    %cst_41 = arith.constant dense<0.000000e+00> : vector<4x16x384xf32>
    %102 = tpu.matmul %99, %101, %cst_41 {dimension_numbers = #tpu.dot_dimension_numbers<[2], [0], [0, 1], [1], [0, 0, 0, 1, 1, 1], [], []>} : vector<4x16x128xbf16>, vector<128x384xbf16>, vector<4x16x384xf32> -> vector<4x16x384xf32>
    "tpu.trace_stop"() : () -> ()
    %c3_42 = arith.constant 3 : index
    %c0_43 = arith.constant 0 : index
    %c0_44 = arith.constant 0 : index
    %103 = vector.load %arg5[%c3_42, %c0_43, %c0_44] : memref<4x1x384xf32, #tpu.memory_space<vmem>>, vector<1x1x384xf32>
    %104 = vector.shape_cast %103 : vector<1x1x384xf32> to vector<1x384xf32>
    %105 = vector.shape_cast %104 : vector<1x384xf32> to vector<1x1x384xf32>
    %106 = vector.broadcast %105 : vector<1x1x384xf32> to vector<4x16x384xf32>
    %107 = arith.addf %102, %106 : vector<4x16x384xf32>
    %108 = vector.extract_strided_slice %107 {offsets = [0, 0, 0], sizes = [4, 16, 128], strides = [1, 1, 1]} : vector<4x16x384xf32> to vector<4x16x128xf32>
    %109 = arith.truncf %108 : vector<4x16x128xf32> to vector<4x16x128xbf16>
    %110 = vector.extract_strided_slice %107 {offsets = [0, 0, 128], sizes = [4, 16, 128], strides = [1, 1, 1]} : vector<4x16x384xf32> to vector<4x16x128xf32>
    %111 = arith.truncf %110 : vector<4x16x128xf32> to vector<4x16x128xbf16>
    %112 = vector.extract_strided_slice %107 {offsets = [0, 0, 256], sizes = [4, 16, 128], strides = [1, 1, 1]} : vector<4x16x384xf32> to vector<4x16x128xf32>
    %113 = arith.truncf %112 : vector<4x16x128xf32> to vector<4x16x128xbf16>
    "tpu.trace_start"() <{level = 10 : i32, message = "bqd,bkd->bqk"}> : () -> ()
    %cst_45 = arith.constant dense<0.000000e+00> : vector<4x16x16xf32>
    %114 = tpu.matmul %109, %111, %cst_45 {dimension_numbers = #tpu.dot_dimension_numbers<[2], [2], [1], [1], [0, 0, 0, 1, 1, 1], [0], [0]>} : vector<4x16x128xbf16>, vector<4x16x128xbf16>, vector<4x16x16xf32> -> vector<4x16x16xf32>
    "tpu.trace_stop"() : () -> ()
    %115 = vector.broadcast %11 : f32 to vector<4x16x16xf32>
    %116 = arith.mulf %114, %115 : vector<4x16x16xf32>
    %cst_46 = arith.constant dense<0xFF800000> : vector<4x16xf32>
    %117 = vector.multi_reduction <maximumf>, %116, %cst_46 [2] : vector<4x16x16xf32> to vector<4x16xf32>
    %118 = vector.shape_cast %117 : vector<4x16xf32> to vector<4x16x1xf32>
    %119 = vector.broadcast %118 : vector<4x16x1xf32> to vector<4x16x16xf32>
    %120 = arith.subf %116, %119 : vector<4x16x16xf32>
    %121 = math.exp %120 : vector<4x16x16xf32>
    %cst_47 = arith.constant dense<0.000000e+00> : vector<4x16xf32>
    %122 = vector.multi_reduction <add>, %121, %cst_47 [2] : vector<4x16x16xf32> to vector<4x16xf32>
    %123 = vector.shape_cast %122 : vector<4x16xf32> to vector<4x16x1xf32>
    %124 = vector.broadcast %123 : vector<4x16x1xf32> to vector<4x16x16xf32>
    %125 = arith.divf %121, %124 : vector<4x16x16xf32>
    %126 = arith.truncf %125 : vector<4x16x16xf32> to vector<4x16x16xbf16>
    "tpu.trace_start"() <{level = 10 : i32, message = "bqk,bkd->bqd"}> : () -> ()
    %cst_48 = arith.constant dense<0.000000e+00> : vector<4x16x128xf32>
    %127 = tpu.matmul %126, %113, %cst_48 {dimension_numbers = #tpu.dot_dimension_numbers<[2], [1], [1], [2], [0, 0, 0, 1, 1, 2], [0], [0]>} : vector<4x16x16xbf16>, vector<4x16x128xbf16>, vector<4x16x128xf32> -> vector<4x16x128xf32>
    "tpu.trace_stop"() : () -> ()
    %c0_49 = arith.constant 0 : index
    %c0_50 = arith.constant 0 : index
    %c0_51 = arith.constant 0 : index
    %128 = vector.load %arg6[%c0_49, %c0_50, %c0_51] : memref<4x16x128xf32, #tpu.memory_space<vmem>>, vector<4x16x128xf32>
    tpu.vector_store %arg6[%c0_49, %c0_50, %c0_51], %127 {strides = array<i32>} : memref<4x16x128xf32, #tpu.memory_space<vmem>>, vector<4x16x128xf32>,
    return
  }
  func.func @transform_0(%arg0: i32) -> (i32, i32, i32) {
    %c0_i32 = arith.constant 0 : i32
    %c0_i32_0 = arith.constant 0 : i32
    %c0_i32_1 = arith.constant 0 : i32
    return %arg0, %c0_i32, %c0_i32_0 : i32, i32, i32
  }
  func.func @transform_1(%arg0: i32) -> (i32, i32) {
    %c0_i32 = arith.constant 0 : i32
    %c0_i32_0 = arith.constant 0 : i32
    %c0_i32_1 = arith.constant 0 : i32
    return %c0_i32, %c0_i32_0 : i32, i32
  }
  func.func @transform_2(%arg0: i32) -> (i32, i32) {
    %c0_i32 = arith.constant 0 : i32
    %c0_i32_0 = arith.constant 0 : i32
    %c0_i32_1 = arith.constant 0 : i32
    return %c0_i32, %c0_i32_0 : i32, i32
  }
  func.func @transform_3(%arg0: i32) -> (i32, i32, i32) {
    %c0_i32 = arith.constant 0 : i32
    %c0_i32_0 = arith.constant 0 : i32
    %c0_i32_1 = arith.constant 0 : i32
    %c0_i32_2 = arith.constant 0 : i32
    return %c0_i32, %c0_i32_0, %c0_i32_1 : i32, i32, i32
  }
  func.func @transform_4(%arg0: i32) -> (i32, i32, i32) {
    %c0_i32 = arith.constant 0 : i32
    %c0_i32_0 = arith.constant 0 : i32
    %c0_i32_1 = arith.constant 0 : i32
    %c0_i32_2 = arith.constant 0 : i32
    return %c0_i32, %c0_i32_0, %c0_i32_1 : i32, i32, i32
  }
  func.func @transform_5(%arg0: i32) -> (i32, i32, i32) {
    %c0_i32 = arith.constant 0 : i32
    %c0_i32_0 = arith.constant 0 : i32
    %c0_i32_1 = arith.constant 0 : i32
    return %arg0, %c0_i32, %c0_i32_0 : i32, i32, i32
  }
}

</mosaic_0001>

<llo_original>
// kernel: tpu_custom_call.1
$region0: #{tpu_custom_call.1}
  #allocation0 [shape = 'u32[]', space=smem, size = 0x4, offset = 0x4, fixed_abs, tag = 'smem constant byte address 0x4 - core index']
  #allocation1 [shape = 'u32[144,128]{1,0:T(1,128)}', space=vmem, size = 0x12000, scoped, tag = 'internal scratch']
  %s0 = inlined_call_operand.hbm [shape: f32[8,8,128], index: 0, kind: input, shape index: {}]
  %s1 = inlined_call_operand.vmem [shape: bf16[16,8], index: 1, kind: input, shape index: {}]
  %s2 = inlined_call_operand.vmem [shape: f32[16,1], index: 2, kind: input, shape index: {}]
  %s3 = inlined_call_operand.hbm [shape: bf16[4,128,384], index: 3, kind: input, shape index: {}]
  %s4 = inlined_call_operand.vmem [shape: f32[4,1,384], index: 4, kind: input, shape index: {}]
  %s5 = inlined_call_operand.hbm [shape: f32[8,16,128], index: 5, kind: output, shape index: {}]
  %s6 = sld [smem:[#allocation0]]
  $region61: #{tpu_custom_call.1} parent=0
    _
  %s8 = ssub.s32 1, %s6
  %s9 = scalar_select 0, %s8, %s6
  $region1: #{tpu_custom_call.1} parent=0
    #allocation2 [shape = 'u8[32768]{0}', space=vmem, size = 0x8000, scoped, tag = 'input window, operand 0']
    #allocation3 [shape = 's32[2]{0}', space=sflag, size = 0x8, scoped, tag = 'scoped memory for tpu_custom_call.1']
    #allocation4 [shape = 's32[2]{0}', space=sflag, size = 0x8, scoped, tag = 'scoped memory for tpu_custom_call.1']
    #allocation5 [shape = 'u8[393216]{0}', space=vmem, size = 0x60000, scoped, tag = 'input window, operand 3, single buffered']
    #allocation6 [shape = 's32[1]{0}', space=sflag, size = 0x4, scoped, tag = 'scoped memory for tpu_custom_call.1']
    #allocation7 [shape = 'u8[65536]{0}', space=vmem, size = 0x10000, scoped, tag = 'output window, operand 0']
    %10 = vsyncpa [#allocation3], 0
    %s11 = scalar_lea.sflag [#allocation3], 1
    %12 = vsyncpa %s11, 0
    %13 = vsyncpa [#allocation6], 0
    %14 = vsyncpa [#allocation4], 0
    %s15 = scalar_lea.sflag [#allocation4], 1
    %16 = vsyncpa %s15, 0
    loop: start=0, step=1, limit=4
    $region2: #{tpu_custom_call.1} parent=1 // loop_pre_header
      _
    $region3: #{tpu_custom_call.1} parent=1 // loop_header
      %s18 = sphi 0, %s22
      %p19 = scmp.ge.s32.totalorder %s18, 4
      %s28 = sphi 0, %s30
      %s31 = sphi 0, %s28
      %s32 = sphi 0, %s31
      %s48 = sphi 0, %s32
      %s52 = sphi 0, %s52
      %s54 = sphi 0, %s52
      %s55 = sphi 0, %s54
      %s69 = sphi 0, %s55
      %s73 = sphi 0, %s73
      %s75 = sphi 0, %s73
      %s76 = sphi 0, %s75
      %s90 = sphi 0, %s76
      %s94 = sphi 0, %s94
      %s96 = sphi 0, %s94
      %s97 = sphi 0, %s96
      %s111 = sphi 0, %s97
      %s115 = sphi 0, %s115
      %s117 = sphi 0, %s115
      %s118 = sphi 0, %s117
      %s132 = sphi 0, %s118
      %s138 = sphi 0, %s140
      %s141 = sphi 0, %s138
      %s142 = sphi 0, %s141
      %s158 = sphi 0, %s142
    $region4: #{tpu_custom_call.1} parent=1 // loop_header_branch
      %21 = sbr.rel (%p19) target = $region8
    $region5: #{tpu_custom_call.1} parent=1 // loop_body
      %s23 = ssub.s32 %s18, 1
      %s24 = ssub.s32 %s18, 2
      %s25 = sadd.s32 %s18, 1
      %s26 = ssub.s32 %s18, %s25
      %p27 = scmp.eq.s32.totalorder %s26, 0
      %s29 = sadd.s32 %s28, 1
      %s30 = scalar_select %p27, %s28, %s29
      %p33 = pneg %p27
      %p34 = scmp.eq.s32.totalorder %s18, 1
      %p35 = por %p33, %p34
      %p36 = scmp.ne.s32.totalorder %s28, %s31
      %p37 = scmp.eq.s32.totalorder %s18, 0
      %p38 = por %p36, %p37
      %p39 = scmp.ne.s32.totalorder %s28, %s31
      %p40 = scmp.eq.s32.totalorder %s23, 1
      %p41 = por %p39, %p40
      %p42 = scmp.ne.s32.totalorder %s31, %s32
      %p43 = scmp.eq.s32.totalorder %s23, 0
      %p44 = por %p42, %p43
      %p45 = scmp.ne.s32.totalorder %s31, %s32
      %p46 = scmp.eq.s32.totalorder %s24, 1
      %p47 = por %p45, %p46
      %p49 = scmp.ne.s32.totalorder %s32, %s48
      %p50 = scmp.eq.s32.totalorder %s24, 0
      %p51 = por %p49, %p50
      %s53 = sadd.s32 %s52, 1
      %p56 = scmp.eq.s32.totalorder %s18, 1
      %p57 = scmp.ne.s32.totalorder %s52, %s54
      %p58 = scmp.eq.s32.totalorder %s18, 0
      %p59 = por %p57, %p58
      %p60 = scmp.ne.s32.totalorder %s52, %s54
      %p61 = scmp.eq.s32.totalorder %s23, 1
      %p62 = por %p60, %p61
      %p63 = scmp.ne.s32.totalorder %s54, %s55
      %p64 = scmp.eq.s32.totalorder %s23, 0
      %p65 = por %p63, %p64
      %p66 = scmp.ne.s32.totalorder %s54, %s55
      %p67 = scmp.eq.s32.totalorder %s24, 1
      %p68 = por %p66, %p67
      %p70 = scmp.ne.s32.totalorder %s55, %s69
      %p71 = scmp.eq.s32.totalorder %s24, 0
      %p72 = por %p70, %p71
      %s74 = sadd.s32 %s73, 1
      %p77 = scmp.eq.s32.totalorder %s18, 1
      %p78 = scmp.ne.s32.totalorder %s73, %s75
      %p79 = scmp.eq.s32.totalorder %s18, 0
      %p80 = por %p78, %p79
      %p81 = scmp.ne.s32.totalorder %s73, %s75
      %p82 = scmp.eq.s32.totalorder %s23, 1
      %p83 = por %p81, %p82
      %p84 = scmp.ne.s32.totalorder %s75, %s76
      %p85 = scmp.eq.s32.totalorder %s23, 0
      %p86 = por %p84, %p85
      %p87 = scmp.ne.s32.totalorder %s75, %s76
      %p88 = scmp.eq.s32.totalorder %s24, 1
      %p89 = por %p87, %p88
      %p91 = scmp.ne.s32.totalorder %s76, %s90
      %p92 = scmp.eq.s32.totalorder %s24, 0
      %p93 = por %p91, %p92
      %s95 = sadd.s32 %s94, 1
      %p98 = scmp.eq.s32.totalorder %s18, 1
      %p99 = scmp.ne.s32.totalorder %s94, %s96
      %p100 = scmp.eq.s32.totalorder %s18, 0
      %p101 = por %p99, %p100
      %p102 = scmp.ne.s32.totalorder %s94, %s96
      %p103 = scmp.eq.s32.totalorder %s23, 1
      %p104 = por %p102, %p103
      %p105 = scmp.ne.s32.totalorder %s96, %s97
      %p106 = scmp.eq.s32.totalorder %s23, 0
      %p107 = por %p105, %p106
      %p108 = scmp.ne.s32.totalorder %s96, %s97
      %p109 = scmp.eq.s32.totalorder %s24, 1
      %p110 = por %p108, %p109
      %p112 = scmp.ne.s32.totalorder %s97, %s111
      %p113 = scmp.eq.s32.totalorder %s24, 0
      %p114 = por %p112, %p113
      %s116 = sadd.s32 %s115, 1
      %p119 = scmp.eq.s32.totalorder %s18, 1
      %p120 = scmp.ne.s32.totalorder %s115, %s117
      %p121 = scmp.eq.s32.totalorder %s18, 0
      %p122 = por %p120, %p121
      %p123 = scmp.ne.s32.totalorder %s115, %s117
      %p124 = scmp.eq.s32.totalorder %s23, 1
      %p125 = por %p123, %p124
      %p126 = scmp.ne.s32.totalorder %s117, %s118
      %p127 = scmp.eq.s32.totalorder %s23, 0
      %p128 = por %p126, %p127
      %p129 = scmp.ne.s32.totalorder %s117, %s118
      %p130 = scmp.eq.s32.totalorder %s24, 1
      %p131 = por %p129, %p130
      %p133 = scmp.ne.s32.totalorder %s118, %s132
      %p134 = scmp.eq.s32.totalorder %s24, 0
      %p135 = por %p133, %p134
      %s136 = ssub.s32 %s18, %s25
      %p137 = scmp.eq.s32.totalorder %s136, 0
      %s139 = sadd.s32 %s138, 1
      %s140 = scalar_select %p137, %s138, %s139
      %p143 = pneg %p137
      %p144 = scmp.eq.s32.totalorder %s18, 1
      %p145 = por %p143, %p144
      %p146 = scmp.ne.s32.totalorder %s138, %s141
      %p147 = scmp.eq.s32.totalorder %s18, 0
      %p148 = por %p146, %p147
      %p149 = scmp.ne.s32.totalorder %s138, %s141
      %p150 = scmp.eq.s32.totalorder %s23, 1
      %p151 = por %p149, %p150
      %p152 = scmp.ne.s32.totalorder %s141, %s142
      %p153 = scmp.eq.s32.totalorder %s23, 0
      %p154 = por %p152, %p153
      %p155 = scmp.ne.s32.totalorder %s141, %s142
      %p156 = scmp.eq.s32.totalorder %s24, 1
      %p157 = por %p155, %p156
      %p159 = scmp.ne.s32.totalorder %s142, %s158
      %p160 = scmp.eq.s32.totalorder %s24, 0
      %p161 = por %p159, %p160
      %p162 = scmp.le.s32.totalorder 1, %s18
      %p163 = scmp.lt.s32.totalorder %s18, 3
      %p164 = pnand %p162, %p163
      %p165 = pneg %p164
      // Predicated region
      $region9: #{tpu_custom_call.1} parent=5 // pred_check
        _
      $region10: #{tpu_custom_call.1} parent=5 // pred_check_branch
        %167 = sbr.rel (%p164) target = $region12
      $region11: #{tpu_custom_call.1} parent=5 // pred_region
        %s168 = ssub.s32 %s18, 1
        // Predicated region
        $region13: #{tpu_custom_call.1} parent=11 // pred_check
          %p169 = pneg %p65
        $region14: #{tpu_custom_call.1} parent=11 // pred_check_branch
          %171 = sbr.rel (%p169) target = $region16
        $region15: #{tpu_custom_call.1} parent=11 // pred_region
          _
        $region16: #{tpu_custom_call.1} parent=11 // pred_fallthru
          _
        // Predicated region
        $region17: #{tpu_custom_call.1} parent=11 // pred_check
          %p172 = pneg %p86
        $region18: #{tpu_custom_call.1} parent=11 // pred_check_branch
          %174 = sbr.rel (%p172) target = $region20
        $region19: #{tpu_custom_call.1} parent=11 // pred_region
          _
        $region20: #{tpu_custom_call.1} parent=11 // pred_fallthru
          _
        // Predicated region
        $region21: #{tpu_custom_call.1} parent=11 // pred_check
          %p175 = pneg %p107
        $region22: #{tpu_custom_call.1} parent=11 // pred_check_branch
          %177 = sbr.rel (%p175) target = $region24
        $region23: #{tpu_custom_call.1} parent=11 // pred_region
          %s179 = ssub.s32 12288, 12288
          %180 = vsyncadd [#allocation6], %s179
          %s181 = sshll.u32 [#allocation5], 4
          %s182 = int_to_ptr.vmem [resolvable:$true] %s181
          %187 = dma.hbm_to_vmem [thread:$0]  %s3, 12288, %s182, [#allocation6], 192, 192, 12
        $region24: #{tpu_custom_call.1} parent=11 // pred_fallthru
          _
        // Predicated region
        $region25: #{tpu_custom_call.1} parent=11 // pred_check
          %p188 = pneg %p128
        $region26: #{tpu_custom_call.1} parent=11 // pred_check_branch
          %190 = sbr.rel (%p188) target = $region28
        $region27: #{tpu_custom_call.1} parent=11 // pred_region
          _
        $region28: #{tpu_custom_call.1} parent=11 // pred_fallthru
          _
      $region12: #{tpu_custom_call.1} parent=5 // pred_fallthru
        _
      %p191 = scmp.lt.s32.totalorder %s18, 2
      // Predicated region
      $region29: #{tpu_custom_call.1} parent=5 // pred_check
        %p192 = pneg %p191
      $region30: #{tpu_custom_call.1} parent=5 // pred_check_branch
        %194 = sbr.rel (%p192) target = $region32
      $region31: #{tpu_custom_call.1} parent=5 // pred_region
        // Predicated region
        $region33: #{tpu_custom_call.1} parent=31 // pred_check
          %p195 = pneg %p38
        $region34: #{tpu_custom_call.1} parent=31 // pred_check_branch
          %197 = sbr.rel (%p195) target = $region36
        $region35: #{tpu_custom_call.1} parent=31 // pred_region
          %s198 = sand.u32 %s28, 1
          %s199 = scalar_lea.sflag [#allocation3], %s198
          %s200 = sand.u32 %s28, 1
          %s201 = smul.addr %s200, 32
          %s202 = scalar_lea.vmem [#allocation2], %s201
          %s203 = smul.u32 4, %s18
          %s205 = ssub.s32 512, 512
          %206 = vsyncadd %s199, %s205
          %s207 = smul.addr %s203, 128
          %s208 = scalar_lea.hbm %s0, %s207
          %s209 = sshll.u32 %s202, 4
          %s210 = int_to_ptr.vmem [resolvable:$true] %s209
          %215 = dma.hbm_to_vmem [thread:$0]  %s208, 512, %s210, %s199, 128, 128, 8
        $region36: #{tpu_custom_call.1} parent=31 // pred_fallthru
          _
      $region32: #{tpu_custom_call.1} parent=5 // pred_fallthru
        _
      %p216 = scmp.le.s32.totalorder 1, %s18
      %p217 = scmp.lt.s32.totalorder %s18, 3
      %p218 = pnand %p216, %p217
      %p219 = pneg %p218
      // Predicated region
      $region37: #{tpu_custom_call.1} parent=5 // pred_check
        _
      $region38: #{tpu_custom_call.1} parent=5 // pred_check_branch
        %221 = sbr.rel (%p218) target = $region40
      $region39: #{tpu_custom_call.1} parent=5 // pred_region
        %s222 = ssub.s32 %s18, 1
        %s223 = sand.u32 %s31, 1
        %s224 = scalar_lea.sflag [#allocation3], %s223
        %s225 = sand.u32 %s31, 1
        %s226 = smul.addr %s225, 32
        %s227 = scalar_lea.vmem [#allocation2], %s226
        // Predicated region
        $region41: #{tpu_custom_call.1} parent=39 // pred_check
          %p228 = pneg %p44
        $region42: #{tpu_custom_call.1} parent=39 // pred_check_branch
          %230 = sbr.rel (%p228) target = $region44
        $region43: #{tpu_custom_call.1} parent=39 // pred_region
          %231 = dma.done %s224, 512
        $region44: #{tpu_custom_call.1} parent=39 // pred_fallthru
          _
        // Predicated region
        $region45: #{tpu_custom_call.1} parent=39 // pred_check
          %p232 = pneg %p107
        $region46: #{tpu_custom_call.1} parent=39 // pred_check_branch
          %234 = sbr.rel (%p232) target = $region48
        $region47: #{tpu_custom_call.1} parent=39 // pred_region
          %235 = dma.done [#allocation6], 12288
        $region48: #{tpu_custom_call.1} parent=39 // pred_fallthru
          _
        %s236 = sand.u32 %s31, 1
        %s237 = scalar_lea.sflag [#allocation3], %s236
        %s238 = sand.u32 %s31, 1
        %s239 = smul.addr %s238, 32
        %s240 = scalar_lea.vmem [#allocation2], %s239
        %p241 = pneg %p44
        %p242 = pneg %p41
        %p243 = pneg %p65
        %p244 = pneg %p62
        %p245 = pneg %p86
        %p246 = pneg %p83
        %p247 = pneg %p107
        %p248 = pneg %p104
        %p249 = pneg %p128
        %p250 = pneg %p125
        %p251 = pneg %p154
        %p252 = pneg %p151
        %s253 = sand.u32 %s141, 1
        %s254 = scalar_lea.sflag [#allocation4], %s253
        %s255 = sand.u32 %s141, 1
        %s256 = smul.addr %s255, 64
        %s257 = scalar_lea.vmem [#allocation7], %s256
        %s258 = smul.u32 4, %s23
        %s259 = smul.u32 4, %s23
        %v261 = vld [vmem:[%s227] sm:$0xff]
        %v262 = vld [vmem:[%s227 + $0x8] sm:$0xff]
        %v263 = vld [vmem:[%s227 + $0x10] sm:$0xff]
        %v264 = vld [vmem:[%s227 + $0x18] sm:$0xff]
        %v265 = vpack.c.bf16 %v261, %v261
        %v266 = vpack.c.bf16 %v262, %v262
        %v267 = vpack.c.bf16 %v263, %v263
        %v268 = vpack.c.bf16 %v264, %v264
        %v269 = vld [vmem:[%s1] sm:$0xf]
        %v270 = vld [vmem:[%s1 + $0x4] sm:$0xf]
        %v271 = vld [vmem:[%s2] sm:$0xff]
        %v272 = vld [vmem:[%s2 + $0x8] sm:$0xff]
        %274 = vset.pattern.permute.xlu0 0
        %275 = vperm.xlu0 %274, %v271
        %v276 = vpop.permute.xlu0 %275
        %279 = vset.pattern.permute.xlu0 0
        %280 = vperm.xlu0 %279, %v272
        %v281 = vpop.permute.xlu0 %280
        %v285 = vunpack.c.l.b16 %v269
        %v286 = vunpack.c.l.b16 %v270
        %v287 = vpack.c.b16 %v286, %v285
        %vm288 = vcmask 64512
        %v290 = vsel %vm288, %v287, 0
        %vm292 = vcmask 1043456
        %v294 = vsel %vm292, %v265, 0
        %296 = vmatprep.subr.bf16.mxu0 0
        %297 = vmatpush1.bf16.msra.mxu0 %v294
        %298 = vmatprep.subr.bf16.mxu0 0
        %299 = vmatpush1.bf16.msra.mxu0 0
        %300 = vmatprep.subr.bf16.mxu0 0
        %301 = vmatpush1.bf16.msra.mxu0 0
        %302 = vmatprep.subr.bf16.mxu0 0
        %303 = vmatpush1.bf16.msra.mxu0 0
        %304 = vmatprep.subr.bf16.mxu0 0
        %305 = vmatpush1.bf16.msra.mxu0 0
        %306 = vmatprep.subr.bf16.mxu0 0
        %307 = vmatpush1.bf16.msra.mxu0 0
        %308 = vmatprep.subr.bf16.mxu0 0
        %309 = vmatpush1.bf16.msra.mxu0 0
        %310 = vmatprep.subr.bf16.mxu0 0
        %311 = vmatpush1.bf16.msra.mxu0 0
        %312 = vmatprep.subr.bf16.mxu0 0
        %313 = vmatpush1.bf16.msra.mxu0 0
        %314 = vmatprep.subr.bf16.mxu0 0
        %315 = vmatpush1.bf16.msra.mxu0 0
        %316 = vmatprep.subr.bf16.mxu0 0
        %317 = vmatpush1.bf16.msra.mxu0 0
        %318 = vmatprep.subr.bf16.mxu0 0
        %319 = vmatpush1.bf16.msra.mxu0 0
        %320 = vmatprep.subr.bf16.mxu0 0
        %321 = vmatpush1.bf16.msra.mxu0 0
        %322 = vmatprep.subr.bf16.mxu0 0
        %323 = vmatpush1.bf16.msra.mxu0 0
        %324 = vmatprep.subr.bf16.mxu0 0
        %325 = vmatpush1.bf16.msra.mxu0 0
        %326 = vmatprep.subr.bf16.mxu0 0
        %327 = vmatpush1.bf16.msra.mxu0 0
        %328 = vmatprep.mubr.bf16.mxu0 0
        %329 = vmatmul.mubr.bf16.gmra.mrb[0].mxu0 %v290
        %v330 = vpop.f32.mrb[0].mxu0
        %v331 = vadd.f32 %v276, %v330
        %v332 = vpop.f32.mrb[0].mxu0
        %v333 = vpop.f32.mrb[0].mxu0
        %v334 = vadd.f32 %v281, %v333
        %v335 = vpop.f32.mrb[0].mxu0
        %336 = vdwg.mxu0
        %v338 = vsel %vm292, %v266, 0
        %340 = vmatprep.subr.bf16.mxu0 0
        %341 = vmatpush1.bf16.msra.mxu0 %v338
        %342 = vmatprep.subr.bf16.mxu0 0
        %343 = vmatpush1.bf16.msra.mxu0 0
        %344 = vmatprep.subr.bf16.mxu0 0
        %345 = vmatpush1.bf16.msra.mxu0 0
        %346 = vmatprep.subr.bf16.mxu0 0
        %347 = vmatpush1.bf16.msra.mxu0 0
        %348 = vmatprep.subr.bf16.mxu0 0
        %349 = vmatpush1.bf16.msra.mxu0 0
        %350 = vmatprep.subr.bf16.mxu0 0
        %351 = vmatpush1.bf16.msra.mxu0 0
        %352 = vmatprep.subr.bf16.mxu0 0
        %353 = vmatpush1.bf16.msra.mxu0 0
        %354 = vmatprep.subr.bf16.mxu0 0
        %355 = vmatpush1.bf16.msra.mxu0 0
        %356 = vmatprep.subr.bf16.mxu0 0
        %357 = vmatpush1.bf16.msra.mxu0 0
        %358 = vmatprep.subr.bf16.mxu0 0
        %359 = vmatpush1.bf16.msra.mxu0 0
        %360 = vmatprep.subr.bf16.mxu0 0
        %361 = vmatpush1.bf16.msra.mxu0 0
        %362 = vmatprep.subr.bf16.mxu0 0
        %363 = vmatpush1.bf16.msra.mxu0 0
        %364 = vmatprep.subr.bf16.mxu0 0
        %365 = vmatpush1.bf16.msra.mxu0 0
        %366 = vmatprep.subr.bf16.mxu0 0
        %367 = vmatpush1.bf16.msra.mxu0 0
        %368 = vmatprep.subr.bf16.mxu0 0
        %369 = vmatpush1.bf16.msra.mxu0 0
        %370 = vmatprep.subr.bf16.mxu0 0
        %371 = vmatpush1.bf16.msra.mxu0 0
        %372 = vmatprep.mubr.bf16.mxu0 0
        %373 = vmatmul.mubr.bf16.gmra.mrb[0].mxu0 %v290
        %v374 = vpop.f32.mrb[0].mxu0
        %v375 = vadd.f32 %v276, %v374
        %v376 = vpop.f32.mrb[0].mxu0
        %v377 = vpop.f32.mrb[0].mxu0
        %v378 = vadd.f32 %v281, %v377
        %v379 = vpop.f32.mrb[0].mxu0
        %380 = vdwg.mxu0
        %v382 = vsel %vm292, %v267, 0
        %384 = vmatprep.subr.bf16.mxu0 0
        %385 = vmatpush1.bf16.msra.mxu0 %v382
        %386 = vmatprep.subr.bf16.mxu0 0
        %387 = vmatpush1.bf16.msra.mxu0 0
        %388 = vmatprep.subr.bf16.mxu0 0
        %389 = vmatpush1.bf16.msra.mxu0 0
        %390 = vmatprep.subr.bf16.mxu0 0
        %391 = vmatpush1.bf16.msra.mxu0 0
        %392 = vmatprep.subr.bf16.mxu0 0
        %393 = vmatpush1.bf16.msra.mxu0 0
        %394 = vmatprep.subr.bf16.mxu0 0
        %395 = vmatpush1.bf16.msra.mxu0 0
        %396 = vmatprep.subr.bf16.mxu0 0
        %397 = vmatpush1.bf16.msra.mxu0 0
        %398 = vmatprep.subr.bf16.mxu0 0
        %399 = vmatpush1.bf16.msra.mxu0 0
        %400 = vmatprep.subr.bf16.mxu0 0
        %401 = vmatpush1.bf16.msra.mxu0 0
        %402 = vmatprep.subr.bf16.mxu0 0
        %403 = vmatpush1.bf16.msra.mxu0 0
        %404 = vmatprep.subr.bf16.mxu0 0
        %405 = vmatpush1.bf16.msra.mxu0 0
        %406 = vmatprep.subr.bf16.mxu0 0
        %407 = vmatpush1.bf16.msra.mxu0 0
        %408 = vmatprep.subr.bf16.mxu0 0
        %409 = vmatpush1.bf16.msra.mxu0 0
        %410 = vmatprep.subr.bf16.mxu0 0
        %411 = vmatpush1.bf16.msra.mxu0 0
        %412 = vmatprep.subr.bf16.mxu0 0
        %413 = vmatpush1.bf16.msra.mxu0 0
        %414 = vmatprep.subr.bf16.mxu0 0
        %415 = vmatpush1.bf16.msra.mxu0 0
        %416 = vmatprep.mubr.bf16.mxu0 0
        %417 = vmatmul.mubr.bf16.gmra.mrb[0].mxu0 %v290
        %v418 = vpop.f32.mrb[0].mxu0
        %v419 = vadd.f32 %v276, %v418
        %v420 = vpop.f32.mrb[0].mxu0
        %v421 = vpop.f32.mrb[0].mxu0
        %v422 = vadd.f32 %v281, %v421
        %v423 = vpop.f32.mrb[0].mxu0
        %424 = vdwg.mxu0
        %v426 = vsel %vm292, %v268, 0
        %428 = vmatprep.subr.bf16.mxu0 0
        %429 = vmatpush1.bf16.msra.mxu0 %v426
        %430 = vmatprep.subr.bf16.mxu0 0
        %431 = vmatpush1.bf16.msra.mxu0 0
        %432 = vmatprep.subr.bf16.mxu0 0
        %433 = vmatpush1.bf16.msra.mxu0 0
        %434 = vmatprep.subr.bf16.mxu0 0
        %435 = vmatpush1.bf16.msra.mxu0 0
        %436 = vmatprep.subr.bf16.mxu0 0
        %437 = vmatpush1.bf16.msra.mxu0 0
        %438 = vmatprep.subr.bf16.mxu0 0
        %439 = vmatpush1.bf16.msra.mxu0 0
        %440 = vmatprep.subr.bf16.mxu0 0
        %441 = vmatpush1.bf16.msra.mxu0 0
        %442 = vmatprep.subr.bf16.mxu0 0
        %443 = vmatpush1.bf16.msra.mxu0 0
        %444 = vmatprep.subr.bf16.mxu0 0
        %445 = vmatpush1.bf16.msra.mxu0 0
        %446 = vmatprep.subr.bf16.mxu0 0
        %447 = vmatpush1.bf16.msra.mxu0 0
        %448 = vmatprep.subr.bf16.mxu0 0
        %449 = vmatpush1.bf16.msra.mxu0 0
        %450 = vmatprep.subr.bf16.mxu0 0
        %451 = vmatpush1.bf16.msra.mxu0 0
        %452 = vmatprep.subr.bf16.mxu0 0
        %453 = vmatpush1.bf16.msra.mxu0 0
        %454 = vmatprep.subr.bf16.mxu0 0
        %455 = vmatpush1.bf16.msra.mxu0 0
        %456 = vmatprep.subr.bf16.mxu0 0
        %457 = vmatpush1.bf16.msra.mxu0 0
        %458 = vmatprep.subr.bf16.mxu0 0
        %459 = vmatpush1.bf16.msra.mxu0 0
        %460 = vmatprep.mubr.bf16.mxu0 0
        %461 = vmatmul.mubr.bf16.gmra.mrb[0].mxu0 %v290
        %v462 = vpop.f32.mrb[0].mxu0
        %v463 = vadd.f32 %v276, %v462
        %v464 = vpop.f32.mrb[0].mxu0
        %v465 = vpop.f32.mrb[0].mxu0
        %v466 = vadd.f32 %v281, %v465
        %v467 = vpop.f32.mrb[0].mxu0
        %468 = vdwg.mxu0
        %v469 = vpack.c.bf16 %v334, %v331
        %v470 = vpack.c.bf16 %v378, %v375
        %v471 = vpack.c.bf16 %v422, %v419
        %v472 = vpack.c.bf16 %v466, %v463
        %v473 = vld [vmem:[#allocation5] sm:$0xff]
        %v474 = vld [vmem:[#allocation5 + $0x8] sm:$0xf]
        %v475 = vld [vmem:[#allocation5 + $0xc] sm:$0xff]
        %v476 = vld [vmem:[#allocation5 + $0x14] sm:$0xf]
        %v477 = vld [vmem:[#allocation5 + $0x18] sm:$0xff]
        %v478 = vld [vmem:[#allocation5 + $0x20] sm:$0xf]
        %v479 = vld [vmem:[#allocation5 + $0x24] sm:$0xff]
        %v480 = vld [vmem:[#allocation5 + $0x2c] sm:$0xf]
        %v481 = vld [vmem:[#allocation5 + $0x30] sm:$0xff]
        %v482 = vld [vmem:[#allocation5 + $0x38] sm:$0xf]
        %v483 = vld [vmem:[#allocation5 + $0x3c] sm:$0xff]
        %v484 = vld [vmem:[#allocation5 + $0x44] sm:$0xf]
        %v485 = vld [vmem:[#allocation5 + $0x48] sm:$0xff]
        %v486 = vld [vmem:[#allocation5 + $0x50] sm:$0xf]
        %v487 = vld [vmem:[#allocation5 + $0x54] sm:$0xff]
        %v488 = vld [vmem:[#allocation5 + $0x5c] sm:$0xf]
        %v489 = vld [vmem:[#allocation5 + $0x60] sm:$0xff]
        %v490 = vld [vmem:[#allocation5 + $0x68] sm:$0xf]
        %v491 = vld [vmem:[#allocation5 + $0x6c] sm:$0xff]
        %v492 = vld [vmem:[#allocation5 + $0x74] sm:$0xf]
        %v493 = vld [vmem:[#allocation5 + $0x78] sm:$0xff]
        %v494 = vld [vmem:[#allocation5 + $0x80] sm:$0xf]
        %v495 = vld [vmem:[#allocation5 + $0x84] sm:$0xff]
        %v496 = vld [vmem:[#allocation5 + $0x8c] sm:$0xf]
        %v497 = vld [vmem:[#allocation5 + $0x90] sm:$0xff]
        %v498 = vld [vmem:[#allocation5 + $0x98] sm:$0xf]
        %v499 = vld [vmem:[#allocation5 + $0x9c] sm:$0xff]
        %v500 = vld [vmem:[#allocation5 + $0xa4] sm:$0xf]
        %v501 = vld [vmem:[#allocation5 + $0xa8] sm:$0xff]
        %v502 = vld [vmem:[#allocation5 + $0xb0] sm:$0xf]
        %v503 = vld [vmem:[#allocation5 + $0xb4] sm:$0xff]
        %v504 = vld [vmem:[#allocation5 + $0xbc] sm:$0xf]
        %v505 = vld [vmem:[%s4] sm:$0x7]
        %v507 = vlaneseq
        %v508 = vshrl.u32 %v507, 7
        %v509 = vsub.s32 0, %v508
        %v510 = vrot.slane %v505, %v509
        %v511 = vlaneseq
        %v512 = vshrl.u32 %v511, 7
        %v513 = vsub.s32 1, %v512
        %v514 = vrot.slane %v505, %v513
        %v515 = vlaneseq
        %v516 = vshrl.u32 %v515, 7
        %v517 = vsub.s32 2, %v516
        %v518 = vrot.slane %v505, %v517
        %v554 = vunpack.c.l.b16 %v473
        %v555 = vunpack.c.h.b16 %v473
        %v556 = vunpack.c.l.b16 %v474
        %v557 = vunpack.c.l.b16 %v475
        %v558 = vunpack.c.h.b16 %v475
        %v559 = vunpack.c.l.b16 %v476
        %v560 = vunpack.c.l.b16 %v477
        %v561 = vunpack.c.h.b16 %v477
        %v562 = vunpack.c.l.b16 %v478
        %v563 = vunpack.c.l.b16 %v479
        %v564 = vunpack.c.h.b16 %v479
        %v565 = vunpack.c.l.b16 %v480
        %v566 = vunpack.c.l.b16 %v481
        %v567 = vunpack.c.h.b16 %v481
        %v568 = vunpack.c.l.b16 %v482
        %v569 = vunpack.c.l.b16 %v483
        %v570 = vunpack.c.h.b16 %v483
        %v571 = vunpack.c.l.b16 %v484
        %v572 = vunpack.c.l.b16 %v485
        %v573 = vunpack.c.h.b16 %v485
        %v574 = vunpack.c.l.b16 %v486
        %v575 = vunpack.c.l.b16 %v487
        %v576 = vunpack.c.h.b16 %v487
        %v577 = vunpack.c.l.b16 %v488
        %v578 = vunpack.c.l.b16 %v489
        %v579 = vunpack.c.h.b16 %v489
        %v580 = vunpack.c.l.b16 %v490
        %v581 = vunpack.c.l.b16 %v491
        %v582 = vunpack.c.h.b16 %v491
        %v583 = vunpack.c.l.b16 %v492
        %v584 = vunpack.c.l.b16 %v493
        %v585 = vunpack.c.h.b16 %v493
        %v586 = vunpack.c.l.b16 %v494
        %v587 = vunpack.c.l.b16 %v495
        %v588 = vunpack.c.h.b16 %v495
        %v589 = vunpack.c.l.b16 %v496
        %v590 = vunpack.c.l.b16 %v497
        %v591 = vunpack.c.h.b16 %v497
        %v592 = vunpack.c.l.b16 %v498
        %v593 = vunpack.c.l.b16 %v499
        %v594 = vunpack.c.h.b16 %v499
        %v595 = vunpack.c.l.b16 %v500
        %v596 = vunpack.c.l.b16 %v501
        %v597 = vunpack.c.h.b16 %v501
        %v598 = vunpack.c.l.b16 %v502
        %v599 = vunpack.c.l.b16 %v503
        %v600 = vunpack.c.h.b16 %v503
        %v601 = vunpack.c.l.b16 %v504
        %v602 = vpack.c.b16 %v557, %v554
        %v603 = vpack.c.b16 %v558, %v555
        %v604 = vpack.c.b16 %v559, %v556
        %v605 = vpack.c.b16 %v563, %v560
        %v606 = vpack.c.b16 %v564, %v561
        %v607 = vpack.c.b16 %v565, %v562
        %v608 = vpack.c.b16 %v569, %v566
        %v609 = vpack.c.b16 %v570, %v567
        %v610 = vpack.c.b16 %v571, %v568
        %v611 = vpack.c.b16 %v575, %v572
        %v612 = vpack.c.b16 %v576, %v573
        %v613 = vpack.c.b16 %v577, %v574
        %v614 = vpack.c.b16 %v581, %v578
        %v615 = vpack.c.b16 %v582, %v579
        %v616 = vpack.c.b16 %v583, %v580
        %v617 = vpack.c.b16 %v587, %v584
        %v618 = vpack.c.b16 %v588, %v585
        %v619 = vpack.c.b16 %v589, %v586
        %v620 = vpack.c.b16 %v593, %v590
        %v621 = vpack.c.b16 %v594, %v591
        %v622 = vpack.c.b16 %v595, %v592
        %v623 = vpack.c.b16 %v599, %v596
        %v624 = vpack.c.b16 %v600, %v597
        %v625 = vpack.c.b16 %v601, %v598
        %650 = vmatprep.subr.bf16.mxu0 %v603
        %651 = vmatpush1.bf16.msra.mxu0 %v602
        %652 = vmatprep.subr.bf16.mxu0 %v606
        %653 = vmatpush1.bf16.msra.mxu0 %v605
        %654 = vmatprep.subr.bf16.mxu0 %v609
        %655 = vmatpush1.bf16.msra.mxu0 %v608
        %656 = vmatprep.subr.bf16.mxu0 %v612
        %657 = vmatpush1.bf16.msra.mxu0 %v611
        %658 = vmatprep.subr.bf16.mxu0 %v615
        %659 = vmatpush1.bf16.msra.mxu0 %v614
        %660 = vmatprep.subr.bf16.mxu0 %v618
        %661 = vmatpush1.bf16.msra.mxu0 %v617
        %662 = vmatprep.subr.bf16.mxu0 %v621
        %663 = vmatpush1.bf16.msra.mxu0 %v620
        %664 = vmatprep.subr.bf16.mxu0 %v624
        %665 = vmatpush1.bf16.msra.mxu0 %v623
        %666 = vmatprep.subr.bf16.mxu0 0
        %667 = vmatpush1.bf16.msra.mxu0 0
        %668 = vmatprep.subr.bf16.mxu0 0
        %669 = vmatpush1.bf16.msra.mxu0 0
        %670 = vmatprep.subr.bf16.mxu0 0
        %671 = vmatpush1.bf16.msra.mxu0 0
        %672 = vmatprep.subr.bf16.mxu0 0
        %673 = vmatpush1.bf16.msra.mxu0 0
        %674 = vmatprep.subr.bf16.mxu0 0
        %675 = vmatpush1.bf16.msra.mxu0 0
        %676 = vmatprep.subr.bf16.mxu0 0
        %677 = vmatpush1.bf16.msra.mxu0 0
        %678 = vmatprep.subr.bf16.mxu0 0
        %679 = vmatpush1.bf16.msra.mxu0 0
        %680 = vmatprep.subr.bf16.mxu0 0
        %681 = vmatpush1.bf16.msra.mxu0 0
        %682 = vmatprep.mubr.bf16.mxu0 0
        %683 = vmatmul.mubr.bf16.gmra.mrb[0].mxu0 %v469
        %v684 = vpop.f32.mrb[0].mxu0
        %v685 = vadd.f32 %v510, %v684
        %v686 = vpop.f32.mrb[0].mxu0
        %v687 = vadd.f32 %v514, %v686
        %v688 = vpop.f32.mrb[0].mxu0
        %v689 = vadd.f32 %v510, %v688
        %v690 = vpop.f32.mrb[0].mxu0
        %v691 = vadd.f32 %v514, %v690
        %692 = vmatprep.mubr.bf16.mxu0 0
        %693 = vmatmul.mubr.bf16.gmra.mrb[0].mxu0 %v470
        %v694 = vpop.f32.mrb[0].mxu0
        %v695 = vadd.f32 %v510, %v694
        %v696 = vpop.f32.mrb[0].mxu0
        %v697 = vadd.f32 %v514, %v696
        %v698 = vpop.f32.mrb[0].mxu0
        %v699 = vadd.f32 %v510, %v698
        %v700 = vpop.f32.mrb[0].mxu0
        %v701 = vadd.f32 %v514, %v700
        %702 = vmatprep.mubr.bf16.mxu0 0
        %703 = vmatmul.mubr.bf16.gmra.mrb[0].mxu0 %v471
        %v704 = vpop.f32.mrb[0].mxu0
        %v705 = vadd.f32 %v510, %v704
        %v706 = vpop.f32.mrb[0].mxu0
        %v707 = vadd.f32 %v514, %v706
        %v708 = vpop.f32.mrb[0].mxu0
        %v709 = vadd.f32 %v510, %v708
        %v710 = vpop.f32.mrb[0].mxu0
        %v711 = vadd.f32 %v514, %v710
        %712 = vmatprep.mubr.bf16.mxu0 0
        %713 = vmatmul.mubr.bf16.gmra.mrb[0].mxu0 %v472
        %v714 = vpop.f32.mrb[0].mxu0
        %v715 = vadd.f32 %v510, %v714
        %v716 = vpop.f32.mrb[0].mxu0
        %v717 = vadd.f32 %v514, %v716
        %v718 = vpop.f32.mrb[0].mxu0
        %v719 = vadd.f32 %v510, %v718
        %v720 = vpop.f32.mrb[0].mxu0
        %v721 = vadd.f32 %v514, %v720
        %722 = vdwg.mxu0
        %723 = vmatprep.subr.bf16.mxu0 0
        %724 = vmatpush1.bf16.msra.mxu0 %v604
        %725 = vmatprep.subr.bf16.mxu0 0
        %726 = vmatpush1.bf16.msra.mxu0 %v607
        %727 = vmatprep.subr.bf16.mxu0 0
        %728 = vmatpush1.bf16.msra.mxu0 %v610
        %729 = vmatprep.subr.bf16.mxu0 0
        %730 = vmatpush1.bf16.msra.mxu0 %v613
        %731 = vmatprep.subr.bf16.mxu0 0
        %732 = vmatpush1.bf16.msra.mxu0 %v616
        %733 = vmatprep.subr.bf16.mxu0 0
        %734 = vmatpush1.bf16.msra.mxu0 %v619
        %735 = vmatprep.subr.bf16.mxu0 0
        %736 = vmatpush1.bf16.msra.mxu0 %v622
        %737 = vmatprep.subr.bf16.mxu0 0
        %738 = vmatpush1.bf16.msra.mxu0 %v625
        %739 = vmatprep.subr.bf16.mxu0 0
        %740 = vmatpush1.bf16.msra.mxu0 0
        %741 = vmatprep.subr.bf16.mxu0 0
        %742 = vmatpush1.bf16.msra.mxu0 0
        %743 = vmatprep.subr.bf16.mxu0 0
        %744 = vmatpush1.bf16.msra.mxu0 0
        %745 = vmatprep.subr.bf16.mxu0 0
        %746 = vmatpush1.bf16.msra.mxu0 0
        %747 = vmatprep.subr.bf16.mxu0 0
        %748 = vmatpush1.bf16.msra.mxu0 0
        %749 = vmatprep.subr.bf16.mxu0 0
        %750 = vmatpush1.bf16.msra.mxu0 0
        %751 = vmatprep.subr.bf16.mxu0 0
        %752 = vmatpush1.bf16.msra.mxu0 0
        %753 = vmatprep.subr.bf16.mxu0 0
        %754 = vmatpush1.bf16.msra.mxu0 0
        %755 = vmatprep.mubr.bf16.mxu0 0
        %756 = vmatmul.mubr.bf16.gmra.mrb[0].mxu0 %v469
        %v757 = vpop.f32.mrb[0].mxu0
        %v758 = vadd.f32 %v518, %v757
        %v759 = vpop.f32.mrb[0].mxu0
        %v760 = vpop.f32.mrb[0].mxu0
        %v761 = vadd.f32 %v518, %v760
        %v762 = vpop.f32.mrb[0].mxu0
        %763 = vmatprep.mubr.bf16.mxu0 0
        %764 = vmatmul.mubr.bf16.gmra.mrb[0].mxu0 %v470
        %v765 = vpop.f32.mrb[0].mxu0
        %v766 = vadd.f32 %v518, %v765
        %v767 = vpop.f32.mrb[0].mxu0
        %v768 = vpop.f32.mrb[0].mxu0
        %v769 = vadd.f32 %v518, %v768
        %v770 = vpop.f32.mrb[0].mxu0
        %771 = vmatprep.mubr.bf16.mxu0 0
        %772 = vmatmul.mubr.bf16.gmra.mrb[0].mxu0 %v471
        %v773 = vpop.f32.mrb[0].mxu0
        %v774 = vadd.f32 %v518, %v773
        %v775 = vpop.f32.mrb[0].mxu0
        %v776 = vpop.f32.mrb[0].mxu0
        %v777 = vadd.f32 %v518, %v776
        %v778 = vpop.f32.mrb[0].mxu0
        %779 = vmatprep.mubr.bf16.mxu0 0
        %780 = vmatmul.mubr.bf16.gmra.mrb[0].mxu0 %v472
        %v781 = vpop.f32.mrb[0].mxu0
        %v782 = vadd.f32 %v518, %v781
        %v783 = vpop.f32.mrb[0].mxu0
        %v784 = vpop.f32.mrb[0].mxu0
        %v785 = vadd.f32 %v518, %v784
        %v786 = vpop.f32.mrb[0].mxu0
        %787 = vdwg.mxu0
        %v788 = vpack.c.bf16 %v689, %v685
        %v789 = vpack.c.bf16 %v699, %v695
        %v790 = vpack.c.bf16 %v709, %v705
        %v791 = vpack.c.bf16 %v719, %v715
        %v792 = vpack.c.bf16 %v691, %v687
        %v793 = vpack.c.bf16 %v701, %v697
        %v794 = vpack.c.bf16 %v711, %v707
        %v795 = vpack.c.bf16 %v721, %v717
        %v796 = vpack.c.bf16 %v761, %v758
        %v797 = vpack.c.bf16 %v769, %v766
        %v798 = vpack.c.bf16 %v777, %v774
        %v799 = vpack.c.bf16 %v785, %v782
        %800 = vmatprep.subr.bf16.mxu0 0
        %801 = vmatpush1.bf16.xpose.msra.mxu0 %v792
        %802 = vmatprep.subr.bf16.mxu0 0
        %803 = vmatpush1.bf16.xpose.msra.mxu0 0
        %804 = vmatprep.subr.bf16.mxu0 0
        %805 = vmatpush1.bf16.xpose.msra.mxu0 0
        %806 = vmatprep.subr.bf16.mxu0 0
        %807 = vmatpush1.bf16.xpose.msra.mxu0 0
        %808 = vmatprep.subr.bf16.mxu0 0
        %809 = vmatpush1.bf16.xpose.msra.mxu0 0
        %810 = vmatprep.subr.bf16.mxu0 0
        %811 = vmatpush1.bf16.xpose.msra.mxu0 0
        %812 = vmatprep.subr.bf16.mxu0 0
        %813 = vmatpush1.bf16.xpose.msra.mxu0 0
        %814 = vmatprep.subr.bf16.mxu0 0
        %815 = vmatpush1.bf16.xpose.msra.mxu0 0
        %816 = vmatprep.subr.bf16.mxu0 0
        %817 = vmatpush1.bf16.xpose.msra.mxu0 0
        %818 = vmatprep.subr.bf16.mxu0 0
        %819 = vmatpush1.bf16.xpose.msra.mxu0 0
        %820 = vmatprep.subr.bf16.mxu0 0
        %821 = vmatpush1.bf16.xpose.msra.mxu0 0
        %822 = vmatprep.subr.bf16.mxu0 0
        %823 = vmatpush1.bf16.xpose.msra.mxu0 0
        %824 = vmatprep.subr.bf16.mxu0 0
        %825 = vmatpush1.bf16.xpose.msra.mxu0 0
        %826 = vmatprep.subr.bf16.mxu0 0
        %827 = vmatpush1.bf16.xpose.msra.mxu0 0
        %828 = vmatprep.subr.bf16.mxu0 0
        %829 = vmatpush1.bf16.xpose.msra.mxu0 0
        %830 = vmatprep.subr.bf16.mxu0 0
        %831 = vmatpush1.bf16.xpose.msra.mxu0 0
        %832 = vmatprep.mubr.bf16.mxu0 0
        %833 = vmatmul.mubr.bf16.gmra.mrb[0].mxu0 %v788
        %v834 = vpop.f32.mrb[0].mxu0
        %v835 = vadd.f32 0.0, %v834
        %v836 = vpop.f32.mrb[0].mxu0
        %v837 = vpop.f32.mrb[0].mxu0
        %v838 = vadd.f32 0.0, %v837
        %v839 = vpop.f32.mrb[0].mxu0
        %840 = vdwg.mxu0
        %841 = vmatprep.subr.bf16.mxu0 0
        %842 = vmatpush1.bf16.xpose.msra.mxu0 %v793
        %843 = vmatprep.subr.bf16.mxu0 0
        %844 = vmatpush1.bf16.xpose.msra.mxu0 0
        %845 = vmatprep.subr.bf16.mxu0 0
        %846 = vmatpush1.bf16.xpose.msra.mxu0 0
        %847 = vmatprep.subr.bf16.mxu0 0
        %848 = vmatpush1.bf16.xpose.msra.mxu0 0
        %849 = vmatprep.subr.bf16.mxu0 0
        %850 = vmatpush1.bf16.xpose.msra.mxu0 0
        %851 = vmatprep.subr.bf16.mxu0 0
        %852 = vmatpush1.bf16.xpose.msra.mxu0 0
        %853 = vmatprep.subr.bf16.mxu0 0
        %854 = vmatpush1.bf16.xpose.msra.mxu0 0
        %855 = vmatprep.subr.bf16.mxu0 0
        %856 = vmatpush1.bf16.xpose.msra.mxu0 0
        %857 = vmatprep.subr.bf16.mxu0 0
        %858 = vmatpush1.bf16.xpose.msra.mxu0 0
        %859 = vmatprep.subr.bf16.mxu0 0
        %860 = vmatpush1.bf16.xpose.msra.mxu0 0
        %861 = vmatprep.subr.bf16.mxu0 0
        %862 = vmatpush1.bf16.xpose.msra.mxu0 0
        %863 = vmatprep.subr.bf16.mxu0 0
        %864 = vmatpush1.bf16.xpose.msra.mxu0 0
        %865 = vmatprep.subr.bf16.mxu0 0
        %866 = vmatpush1.bf16.xpose.msra.mxu0 0
        %867 = vmatprep.subr.bf16.mxu0 0
        %868 = vmatpush1.bf16.xpose.msra.mxu0 0
        %869 = vmatprep.subr.bf16.mxu0 0
        %870 = vmatpush1.bf16.xpose.msra.mxu0 0
        %871 = vmatprep.subr.bf16.mxu0 0
        %872 = vmatpush1.bf16.xpose.msra.mxu0 0
        %873 = vmatprep.mubr.bf16.mxu0 0
        %874 = vmatmul.mubr.bf16.gmra.mrb[0].mxu0 %v789
        %v875 = vpop.f32.mrb[0].mxu0
        %v876 = vadd.f32 0.0, %v875
        %v877 = vpop.f32.mrb[0].mxu0
        %v878 = vpop.f32.mrb[0].mxu0
        %v879 = vadd.f32 0.0, %v878
        %v880 = vpop.f32.mrb[0].mxu0
        %881 = vdwg.mxu0
        %882 = vmatprep.subr.bf16.mxu0 0
        %883 = vmatpush1.bf16.xpose.msra.mxu0 %v794
        %884 = vmatprep.subr.bf16.mxu0 0
        %885 = vmatpush1.bf16.xpose.msra.mxu0 0
        %886 = vmatprep.subr.bf16.mxu0 0
        %887 = vmatpush1.bf16.xpose.msra.mxu0 0
        %888 = vmatprep.subr.bf16.mxu0 0
        %889 = vmatpush1.bf16.xpose.msra.mxu0 0
        %890 = vmatprep.subr.bf16.mxu0 0
        %891 = vmatpush1.bf16.xpose.msra.mxu0 0
        %892 = vmatprep.subr.bf16.mxu0 0
        %893 = vmatpush1.bf16.xpose.msra.mxu0 0
        %894 = vmatprep.subr.bf16.mxu0 0
        %895 = vmatpush1.bf16.xpose.msra.mxu0 0
        %896 = vmatprep.subr.bf16.mxu0 0
        %897 = vmatpush1.bf16.xpose.msra.mxu0 0
        %898 = vmatprep.subr.bf16.mxu0 0
        %899 = vmatpush1.bf16.xpose.msra.mxu0 0
        %900 = vmatprep.subr.bf16.mxu0 0
        %901 = vmatpush1.bf16.xpose.msra.mxu0 0
        %902 = vmatprep.subr.bf16.mxu0 0
        %903 = vmatpush1.bf16.xpose.msra.mxu0 0
        %904 = vmatprep.subr.bf16.mxu0 0
        %905 = vmatpush1.bf16.xpose.msra.mxu0 0
        %906 = vmatprep.subr.bf16.mxu0 0
        %907 = vmatpush1.bf16.xpose.msra.mxu0 0
        %908 = vmatprep.subr.bf16.mxu0 0
        %909 = vmatpush1.bf16.xpose.msra.mxu0 0
        %910 = vmatprep.subr.bf16.mxu0 0
        %911 = vmatpush1.bf16.xpose.msra.mxu0 0
        %912 = vmatprep.subr.bf16.mxu0 0
        %913 = vmatpush1.bf16.xpose.msra.mxu0 0
        %914 = vmatprep.mubr.bf16.mxu0 0
        %915 = vmatmul.mubr.bf16.gmra.mrb[0].mxu0 %v790
        %v916 = vpop.f32.mrb[0].mxu0
        %v917 = vadd.f32 0.0, %v916
        %v918 = vpop.f32.mrb[0].mxu0
        %v919 = vpop.f32.mrb[0].mxu0
        %v920 = vadd.f32 0.0, %v919
        %v921 = vpop.f32.mrb[0].mxu0
        %922 = vdwg.mxu0
        %923 = vmatprep.subr.bf16.mxu0 0
        %924 = vmatpush1.bf16.xpose.msra.mxu0 %v795
        %925 = vmatprep.subr.bf16.mxu0 0
        %926 = vmatpush1.bf16.xpose.msra.mxu0 0
        %927 = vmatprep.subr.bf16.mxu0 0
        %928 = vmatpush1.bf16.xpose.msra.mxu0 0
        %929 = vmatprep.subr.bf16.mxu0 0
        %930 = vmatpush1.bf16.xpose.msra.mxu0 0
        %931 = vmatprep.subr.bf16.mxu0 0
        %932 = vmatpush1.bf16.xpose.msra.mxu0 0
        %933 = vmatprep.subr.bf16.mxu0 0
        %934 = vmatpush1.bf16.xpose.msra.mxu0 0
        %935 = vmatprep.subr.bf16.mxu0 0
        %936 = vmatpush1.bf16.xpose.msra.mxu0 0
        %937 = vmatprep.subr.bf16.mxu0 0
        %938 = vmatpush1.bf16.xpose.msra.mxu0 0
        %939 = vmatprep.subr.bf16.mxu0 0
        %940 = vmatpush1.bf16.xpose.msra.mxu0 0
        %941 = vmatprep.subr.bf16.mxu0 0
        %942 = vmatpush1.bf16.xpose.msra.mxu0 0
        %943 = vmatprep.subr.bf16.mxu0 0
        %944 = vmatpush1.bf16.xpose.msra.mxu0 0
        %945 = vmatprep.subr.bf16.mxu0 0
        %946 = vmatpush1.bf16.xpose.msra.mxu0 0
        %947 = vmatprep.subr.bf16.mxu0 0
        %948 = vmatpush1.bf16.xpose.msra.mxu0 0
        %949 = vmatprep.subr.bf16.mxu0 0
        %950 = vmatpush1.bf16.xpose.msra.mxu0 0
        %951 = vmatprep.subr.bf16.mxu0 0
        %952 = vmatpush1.bf16.xpose.msra.mxu0 0
        %953 = vmatprep.subr.bf16.mxu0 0
        %954 = vmatpush1.bf16.xpose.msra.mxu0 0
        %955 = vmatprep.mubr.bf16.mxu0 0
        %956 = vmatmul.mubr.bf16.gmra.mrb[0].mxu0 %v791
        %v957 = vpop.f32.mrb[0].mxu0
        %v958 = vadd.f32 0.0, %v957
        %v959 = vpop.f32.mrb[0].mxu0
        %v960 = vpop.f32.mrb[0].mxu0
        %v961 = vadd.f32 0.0, %v960
        %v962 = vpop.f32.mrb[0].mxu0
        %963 = vdwg.mxu0
        %v964 = vmul.f32 %v835, 0.088388346
        %v965 = vmul.f32 %v838, 0.088388346
        %v966 = vmul.f32 %v876, 0.088388346
        %v967 = vmul.f32 %v879, 0.088388346
        %v968 = vmul.f32 %v917, 0.088388346
        %v969 = vmul.f32 %v920, 0.088388346
        %v970 = vmul.f32 %v958, 0.088388346
        %v971 = vmul.f32 %v961, 0.088388346
        %vm972 = vcmask 130048
        %v973 = vsel %vm972, %v964, -inf
        %974 = vmax.xlane.f32.xlu0 %v973
        %v975 = vpop.xlane.xlu0 %974
        %v976 = vsel %vm972, %v965, -inf
        %977 = vmax.xlane.f32.xlu0 %v976
        %v978 = vpop.xlane.xlu0 %977
        %v979 = vsel %vm972, %v966, -inf
        %980 = vmax.xlane.f32.xlu0 %v979
        %v981 = vpop.xlane.xlu0 %980
        %v982 = vsel %vm972, %v967, -inf
        %983 = vmax.xlane.f32.xlu0 %v982
        %v984 = vpop.xlane.xlu0 %983
        %v985 = vsel %vm972, %v968, -inf
        %986 = vmax.xlane.f32.xlu0 %v985
        %v987 = vpop.xlane.xlu0 %986
        %v988 = vsel %vm972, %v969, -inf
        %989 = vmax.xlane.f32.xlu0 %v988
        %v990 = vpop.xlane.xlu0 %989
        %v991 = vsel %vm972, %v970, -inf
        %992 = vmax.xlane.f32.xlu0 %v991
        %v993 = vpop.xlane.xlu0 %992
        %v994 = vsel %vm972, %v971, -inf
        %995 = vmax.xlane.f32.xlu0 %v994
        %v996 = vpop.xlane.xlu0 %995
        %v997 = vsub.f32 %v964, %v975
        %v998 = vsub.f32 %v965, %v978
        %v999 = vsub.f32 %v966, %v981
        %v1000 = vsub.f32 %v967, %v984
        %v1001 = vsub.f32 %v968, %v987
        %v1002 = vsub.f32 %v969, %v990
        %v1003 = vsub.f32 %v970, %v993
        %v1004 = vsub.f32 %v971, %v996
        %v1005 = vmul.f32 %v997, 1.442695
        %v1006 = vpow.pop %v1005
        %v1007 = vmul.f32 %v998, 1.442695
        %v1008 = vpow.pop %v1007
        %v1009 = vmul.f32 %v999, 1.442695
        %v1010 = vpow.pop %v1009
        %v1011 = vmul.f32 %v1000, 1.442695
        %v1012 = vpow.pop %v1011
        %v1013 = vmul.f32 %v1001, 1.442695
        %v1014 = vpow.pop %v1013
        %v1015 = vmul.f32 %v1002, 1.442695
        %v1016 = vpow.pop %v1015
        %v1017 = vmul.f32 %v1003, 1.442695
        %v1018 = vpow.pop %v1017
        %v1019 = vmul.f32 %v1004, 1.442695
        %v1020 = vpow.pop %v1019
        %v1021 = vsel %vm972, %v1006, 0.0
        %1022 = vadd.xlane.f32.xlu0 %v1021
        %v1023 = vpop.xlane.xlu0 %1022
        %v1024 = vsel %vm972, %v1008, 0.0
        %1025 = vadd.xlane.f32.xlu0 %v1024
        %v1026 = vpop.xlane.xlu0 %1025
        %v1027 = vsel %vm972, %v1010, 0.0
        %1028 = vadd.xlane.f32.xlu0 %v1027
        %v1029 = vpop.xlane.xlu0 %1028
        %v1030 = vsel %vm972, %v1012, 0.0
        %1031 = vadd.xlane.f32.xlu0 %v1030
        %v1032 = vpop.xlane.xlu0 %1031
        %v1033 = vsel %vm972, %v1014, 0.0
        %1034 = vadd.xlane.f32.xlu0 %v1033
        %v1035 = vpop.xlane.xlu0 %1034
        %v1036 = vsel %vm972, %v1016, 0.0
        %1037 = vadd.xlane.f32.xlu0 %v1036
        %v1038 = vpop.xlane.xlu0 %1037
        %v1039 = vsel %vm972, %v1018, 0.0
        %1040 = vadd.xlane.f32.xlu0 %v1039
        %v1041 = vpop.xlane.xlu0 %1040
        %v1042 = vsel %vm972, %v1020, 0.0
        %1043 = vadd.xlane.f32.xlu0 %v1042
        %v1044 = vpop.xlane.xlu0 %1043
        %v1045 = vrcp.pop %v1023
        %v1046 = vmul.f32 %v1006, %v1045
        %v1047 = vrcp.pop %v1026
        %v1048 = vmul.f32 %v1008, %v1047
        %v1049 = vrcp.pop %v1029
        %v1050 = vmul.f32 %v1010, %v1049
        %v1051 = vrcp.pop %v1032
        %v1052 = vmul.f32 %v1012, %v1051
        %v1053 = vrcp.pop %v1035
        %v1054 = vmul.f32 %v1014, %v1053
        %v1055 = vrcp.pop %v1038
        %v1056 = vmul.f32 %v1016, %v1055
        %v1057 = vrcp.pop %v1041
        %v1058 = vmul.f32 %v1018, %v1057
        %v1059 = vrcp.pop %v1044
        %v1060 = vmul.f32 %v1020, %v1059
        %v1061 = vpack.c.bf16 %v1048, %v1046
        %v1062 = vpack.c.bf16 %v1052, %v1050
        %v1063 = vpack.c.bf16 %v1056, %v1054
        %v1064 = vpack.c.bf16 %v1060, %v1058
        %v1066 = vsel %vm972, %v1061, 0
        %1068 = vmatprep.subr.bf16.mxu0 0
        %1069 = vmatpush1.bf16.msra.mxu0 %v796
        %1070 = vmatprep.subr.bf16.mxu0 0
        %1071 = vmatpush1.bf16.msra.mxu0 0
        %1072 = vmatprep.subr.bf16.mxu0 0
        %1073 = vmatpush1.bf16.msra.mxu0 0
        %1074 = vmatprep.subr.bf16.mxu0 0
        %1075 = vmatpush1.bf16.msra.mxu0 0
        %1076 = vmatprep.subr.bf16.mxu0 0
        %1077 = vmatpush1.bf16.msra.mxu0 0
        %1078 = vmatprep.subr.bf16.mxu0 0
        %1079 = vmatpush1.bf16.msra.mxu0 0
        %1080 = vmatprep.subr.bf16.mxu0 0
        %1081 = vmatpush1.bf16.msra.mxu0 0
        %1082 = vmatprep.subr.bf16.mxu0 0
        %1083 = vmatpush1.bf16.msra.mxu0 0
        %1084 = vmatprep.subr.bf16.mxu0 0
        %1085 = vmatpush1.bf16.msra.mxu0 0
        %1086 = vmatprep.subr.bf16.mxu0 0
        %1087 = vmatpush1.bf16.msra.mxu0 0
        %1088 = vmatprep.subr.bf16.mxu0 0
        %1089 = vmatpush1.bf16.msra.mxu0 0
        %1090 = vmatprep.subr.bf16.mxu0 0
        %1091 = vmatpush1.bf16.msra.mxu0 0
        %1092 = vmatprep.subr.bf16.mxu0 0
        %1093 = vmatpush1.bf16.msra.mxu0 0
        %1094 = vmatprep.subr.bf16.mxu0 0
        %1095 = vmatpush1.bf16.msra.mxu0 0
        %1096 = vmatprep.subr.bf16.mxu0 0
        %1097 = vmatpush1.bf16.msra.mxu0 0
        %1098 = vmatprep.subr.bf16.mxu0 0
        %1099 = vmatpush1.bf16.msra.mxu0 0
        %1100 = vmatprep.mubr.bf16.mxu0 0
        %1101 = vmatmul.mubr.bf16.gmra.mrb[0].mxu0 %v1066
        %v1102 = vpop.f32.mrb[0].mxu0
        %v1103 = vadd.f32 0.0, %v1102
        %v1104 = vpop.f32.mrb[0].mxu0
        %v1105 = vpop.f32.mrb[0].mxu0
        %v1106 = vadd.f32 0.0, %v1105
        %v1107 = vpop.f32.mrb[0].mxu0
        %1108 = vdwg.mxu0
        %v1110 = vsel %vm972, %v1062, 0
        %1112 = vmatprep.subr.bf16.mxu0 0
        %1113 = vmatpush1.bf16.msra.mxu0 %v797
        %1114 = vmatprep.subr.bf16.mxu0 0
        %1115 = vmatpush1.bf16.msra.mxu0 0
        %1116 = vmatprep.subr.bf16.mxu0 0
        %1117 = vmatpush1.bf16.msra.mxu0 0
        %1118 = vmatprep.subr.bf16.mxu0 0
        %1119 = vmatpush1.bf16.msra.mxu0 0
        %1120 = vmatprep.subr.bf16.mxu0 0
        %1121 = vmatpush1.bf16.msra.mxu0 0
        %1122 = vmatprep.subr.bf16.mxu0 0
        %1123 = vmatpush1.bf16.msra.mxu0 0
        %1124 = vmatprep.subr.bf16.mxu0 0
        %1125 = vmatpush1.bf16.msra.mxu0 0
        %1126 = vmatprep.subr.bf16.mxu0 0
        %1127 = vmatpush1.bf16.msra.mxu0 0
        %1128 = vmatprep.subr.bf16.mxu0 0
        %1129 = vmatpush1.bf16.msra.mxu0 0
        %1130 = vmatprep.subr.bf16.mxu0 0
        %1131 = vmatpush1.bf16.msra.mxu0 0
        %1132 = vmatprep.subr.bf16.mxu0 0
        %1133 = vmatpush1.bf16.msra.mxu0 0
        %1134 = vmatprep.subr.bf16.mxu0 0
        %1135 = vmatpush1.bf16.msra.mxu0 0
        %1136 = vmatprep.subr.bf16.mxu0 0
        %1137 = vmatpush1.bf16.msra.mxu0 0
        %1138 = vmatprep.subr.bf16.mxu0 0
        %1139 = vmatpush1.bf16.msra.mxu0 0
        %1140 = vmatprep.subr.bf16.mxu0 0
        %1141 = vmatpush1.bf16.msra.mxu0 0
        %1142 = vmatprep.subr.bf16.mxu0 0
        %1143 = vmatpush1.bf16.msra.mxu0 0
        %1144 = vmatprep.mubr.bf16.mxu0 0
        %1145 = vmatmul.mubr.bf16.gmra.mrb[0].mxu0 %v1110
        %v1146 = vpop.f32.mrb[0].mxu0
        %v1147 = vadd.f32 0.0, %v1146
        %v1148 = vpop.f32.mrb[0].mxu0
        %v1149 = vpop.f32.mrb[0].mxu0
        %v1150 = vadd.f32 0.0, %v1149
        %v1151 = vpop.f32.mrb[0].mxu0
        %1152 = vdwg.mxu0
        %v1154 = vsel %vm972, %v1063, 0
        %1156 = vmatprep.subr.bf16.mxu0 0
        %1157 = vmatpush1.bf16.msra.mxu0 %v798
        %1158 = vmatprep.subr.bf16.mxu0 0
        %1159 = vmatpush1.bf16.msra.mxu0 0
        %1160 = vmatprep.subr.bf16.mxu0 0
        %1161 = vmatpush1.bf16.msra.mxu0 0
        %1162 = vmatprep.subr.bf16.mxu0 0
        %1163 = vmatpush1.bf16.msra.mxu0 0
        %1164 = vmatprep.subr.bf16.mxu0 0
        %1165 = vmatpush1.bf16.msra.mxu0 0
        %1166 = vmatprep.subr.bf16.mxu0 0
        %1167 = vmatpush1.bf16.msra.mxu0 0
        %1168 = vmatprep.subr.bf16.mxu0 0
        %1169 = vmatpush1.bf16.msra.mxu0 0
        %1170 = vmatprep.subr.bf16.mxu0 0
        %1171 = vmatpush1.bf16.msra.mxu0 0
        %1172 = vmatprep.subr.bf16.mxu0 0
        %1173 = vmatpush1.bf16.msra.mxu0 0
        %1174 = vmatprep.subr.bf16.mxu0 0
        %1175 = vmatpush1.bf16.msra.mxu0 0
        %1176 = vmatprep.subr.bf16.mxu0 0
        %1177 = vmatpush1.bf16.msra.mxu0 0
        %1178 = vmatprep.subr.bf16.mxu0 0
        %1179 = vmatpush1.bf16.msra.mxu0 0
        %1180 = vmatprep.subr.bf16.mxu0 0
        %1181 = vmatpush1.bf16.msra.mxu0 0
        %1182 = vmatprep.subr.bf16.mxu0 0
        %1183 = vmatpush1.bf16.msra.mxu0 0
        %1184 = vmatprep.subr.bf16.mxu0 0
        %1185 = vmatpush1.bf16.msra.mxu0 0
        %1186 = vmatprep.subr.bf16.mxu0 0
        %1187 = vmatpush1.bf16.msra.mxu0 0
        %1188 = vmatprep.mubr.bf16.mxu0 0
        %1189 = vmatmul.mubr.bf16.gmra.mrb[0].mxu0 %v1154
        %v1190 = vpop.f32.mrb[0].mxu0
        %v1191 = vadd.f32 0.0, %v1190
        %v1192 = vpop.f32.mrb[0].mxu0
        %v1193 = vpop.f32.mrb[0].mxu0
        %v1194 = vadd.f32 0.0, %v1193
        %v1195 = vpop.f32.mrb[0].mxu0
        %1196 = vdwg.mxu0
        %v1198 = vsel %vm972, %v1064, 0
        %1200 = vmatprep.subr.bf16.mxu0 0
        %1201 = vmatpush1.bf16.msra.mxu0 %v799
        %1202 = vmatprep.subr.bf16.mxu0 0
        %1203 = vmatpush1.bf16.msra.mxu0 0
        %1204 = vmatprep.subr.bf16.mxu0 0
        %1205 = vmatpush1.bf16.msra.mxu0 0
        %1206 = vmatprep.subr.bf16.mxu0 0
        %1207 = vmatpush1.bf16.msra.mxu0 0
        %1208 = vmatprep.subr.bf16.mxu0 0
        %1209 = vmatpush1.bf16.msra.mxu0 0
        %1210 = vmatprep.subr.bf16.mxu0 0
        %1211 = vmatpush1.bf16.msra.mxu0 0
        %1212 = vmatprep.subr.bf16.mxu0 0
        %1213 = vmatpush1.bf16.msra.mxu0 0
        %1214 = vmatprep.subr.bf16.mxu0 0
        %1215 = vmatpush1.bf16.msra.mxu0 0
        %1216 = vmatprep.subr.bf16.mxu0 0
        %1217 = vmatpush1.bf16.msra.mxu0 0
        %1218 = vmatprep.subr.bf16.mxu0 0
        %1219 = vmatpush1.bf16.msra.mxu0 0
        %1220 = vmatprep.subr.bf16.mxu0 0
        %1221 = vmatpush1.bf16.msra.mxu0 0
        %1222 = vmatprep.subr.bf16.mxu0 0
        %1223 = vmatpush1.bf16.msra.mxu0 0
        %1224 = vmatprep.subr.bf16.mxu0 0
        %1225 = vmatpush1.bf16.msra.mxu0 0
        %1226 = vmatprep.subr.bf16.mxu0 0
        %1227 = vmatpush1.bf16.msra.mxu0 0
        %1228 = vmatprep.subr.bf16.mxu0 0
        %1229 = vmatpush1.bf16.msra.mxu0 0
        %1230 = vmatprep.subr.bf16.mxu0 0
        %1231 = vmatpush1.bf16.msra.mxu0 0
        %1232 = vmatprep.mubr.bf16.mxu0 0
        %1233 = vmatmul.mubr.bf16.gmra.mrb[0].mxu0 %v1198
        %v1234 = vpop.f32.mrb[0].mxu0
        %v1235 = vadd.f32 0.0, %v1234
        %v1236 = vpop.f32.mrb[0].mxu0
        %v1237 = vpop.f32.mrb[0].mxu0
        %v1238 = vadd.f32 0.0, %v1237
        %v1239 = vpop.f32.mrb[0].mxu0
        %1240 = vdwg.mxu0
        %v1241 = vpack.c.bf16 %v1106, %v1103
        %v1242 = vpack.c.bf16 %v1150, %v1147
        %v1243 = vpack.c.bf16 %v1194, %v1191
        %v1244 = vpack.c.bf16 %v1238, %v1235
        %s1245 = scalar_lea.vmem [#allocation5], 192
        %v1246 = vld [vmem:[%s1245] sm:$0xff]
        %v1247 = vld [vmem:[%s1245 + $0x8] sm:$0xf]
        %v1248 = vld [vmem:[%s1245 + $0xc] sm:$0xff]
        %v1249 = vld [vmem:[%s1245 + $0x14] sm:$0xf]
        %v1250 = vld [vmem:[%s1245 + $0x18] sm:$0xff]
        %v1251 = vld [vmem:[%s1245 + $0x20] sm:$0xf]
        %v1252 = vld [vmem:[%s1245 + $0x24] sm:$0xff]
        %v1253 = vld [vmem:[%s1245 + $0x2c] sm:$0xf]
        %v1254 = vld [vmem:[%s1245 + $0x30] sm:$0xff]
        %v1255 = vld [vmem:[%s1245 + $0x38] sm:$0xf]
        %v1256 = vld [vmem:[%s1245 + $0x3c] sm:$0xff]
        %v1257 = vld [vmem:[%s1245 + $0x44] sm:$0xf]
        %v1258 = vld [vmem:[%s1245 + $0x48] sm:$0xff]
        %v1259 = vld [vmem:[%s1245 + $0x50] sm:$0xf]
        %v1260 = vld [vmem:[%s1245 + $0x54] sm:$0xff]
        %v1261 = vld [vmem:[%s1245 + $0x5c] sm:$0xf]
        %v1262 = vld [vmem:[%s1245 + $0x60] sm:$0xff]
        %v1263 = vld [vmem:[%s1245 + $0x68] sm:$0xf]
        %v1264 = vld [vmem:[%s1245 + $0x6c] sm:$0xff]
        %v1265 = vld [vmem:[%s1245 + $0x74] sm:$0xf]
        %v1266 = vld [vmem:[%s1245 + $0x78] sm:$0xff]
        %v1267 = vld [vmem:[%s1245 + $0x80] sm:$0xf]
        %v1268 = vld [vmem:[%s1245 + $0x84] sm:$0xff]
        %v1269 = vld [vmem:[%s1245 + $0x8c] sm:$0xf]
        %v1270 = vld [vmem:[%s1245 + $0x90] sm:$0xff]
        %v1271 = vld [vmem:[%s1245 + $0x98] sm:$0xf]
        %v1272 = vld [vmem:[%s1245 + $0x9c] sm:$0xff]
        %v1273 = vld [vmem:[%s1245 + $0xa4] sm:$0xf]
        %v1274 = vld [vmem:[%s1245 + $0xa8] sm:$0xff]
        %v1275 = vld [vmem:[%s1245 + $0xb0] sm:$0xf]
        %v1276 = vld [vmem:[%s1245 + $0xb4] sm:$0xff]
        %v1277 = vld [vmem:[%s1245 + $0xbc] sm:$0xf]
        %s1278 = scalar_lea.vmem %s4, 3
        %v1279 = vld [vmem:[%s1278] sm:$0x7]
        %v1281 = vlaneseq
        %v1282 = vshrl.u32 %v1281, 7
        %v1283 = vsub.s32 0, %v1282
        %v1284 = vrot.slane %v1279, %v1283
        %v1285 = vlaneseq
        %v1286 = vshrl.u32 %v1285, 7
        %v1287 = vsub.s32 1, %v1286
        %v1288 = vrot.slane %v1279, %v1287
        %v1289 = vlaneseq
        %v1290 = vshrl.u32 %v1289, 7
        %v1291 = vsub.s32 2, %v1290
        %v1292 = vrot.slane %v1279, %v1291
        %v1328 = vunpack.c.l.b16 %v1246
        %v1329 = vunpack.c.h.b16 %v1246
        %v1330 = vunpack.c.l.b16 %v1247
        %v1331 = vunpack.c.l.b16 %v1248
        %v1332 = vunpack.c.h.b16 %v1248
        %v1333 = vunpack.c.l.b16 %v1249
        %v1334 = vunpack.c.l.b16 %v1250
        %v1335 = vunpack.c.h.b16 %v1250
        %v1336 = vunpack.c.l.b16 %v1251
        %v1337 = vunpack.c.l.b16 %v1252
        %v1338 = vunpack.c.h.b16 %v1252
        %v1339 = vunpack.c.l.b16 %v1253
        %v1340 = vunpack.c.l.b16 %v1254
        %v1341 = vunpack.c.h.b16 %v1254
        %v1342 = vunpack.c.l.b16 %v1255
        %v1343 = vunpack.c.l.b16 %v1256
        %v1344 = vunpack.c.h.b16 %v1256
        %v1345 = vunpack.c.l.b16 %v1257
        %v1346 = vunpack.c.l.b16 %v1258
        %v1347 = vunpack.c.h.b16 %v1258
        %v1348 = vunpack.c.l.b16 %v1259
        %v1349 = vunpack.c.l.b16 %v1260
        %v1350 = vunpack.c.h.b16 %v1260
        %v1351 = vunpack.c.l.b16 %v1261
        %v1352 = vunpack.c.l.b16 %v1262
        %v1353 = vunpack.c.h.b16 %v1262
        %v1354 = vunpack.c.l.b16 %v1263
        %v1355 = vunpack.c.l.b16 %v1264
        %v1356 = vunpack.c.h.b16 %v1264
        %v1357 = vunpack.c.l.b16 %v1265
        %v1358 = vunpack.c.l.b16 %v1266
        %v1359 = vunpack.c.h.b16 %v1266
        %v1360 = vunpack.c.l.b16 %v1267
        %v1361 = vunpack.c.l.b16 %v1268
        %v1362 = vunpack.c.h.b16 %v1268
        %v1363 = vunpack.c.l.b16 %v1269
        %v1364 = vunpack.c.l.b16 %v1270
        %v1365 = vunpack.c.h.b16 %v1270
        %v1366 = vunpack.c.l.b16 %v1271
        %v1367 = vunpack.c.l.b16 %v1272
        %v1368 = vunpack.c.h.b16 %v1272
        %v1369 = vunpack.c.l.b16 %v1273
        %v1370 = vunpack.c.l.b16 %v1274
        %v1371 = vunpack.c.h.b16 %v1274
        %v1372 = vunpack.c.l.b16 %v1275
        %v1373 = vunpack.c.l.b16 %v1276
        %v1374 = vunpack.c.h.b16 %v1276
        %v1375 = vunpack.c.l.b16 %v1277
        %v1376 = vpack.c.b16 %v1331, %v1328
        %v1377 = vpack.c.b16 %v1332, %v1329
        %v1378 = vpack.c.b16 %v1333, %v1330
        %v1379 = vpack.c.b16 %v1337, %v1334
        %v1380 = vpack.c.b16 %v1338, %v1335
        %v1381 = vpack.c.b16 %v1339, %v1336
        %v1382 = vpack.c.b16 %v1343, %v1340
        %v1383 = vpack.c.b16 %v1344, %v1341
        %v1384 = vpack.c.b16 %v1345, %v1342
        %v1385 = vpack.c.b16 %v1349, %v1346
        %v1386 = vpack.c.b16 %v1350, %v1347
        %v1387 = vpack.c.b16 %v1351, %v1348
        %v1388 = vpack.c.b16 %v1355, %v1352
        %v1389 = vpack.c.b16 %v1356, %v1353
        %v1390 = vpack.c.b16 %v1357, %v1354
        %v1391 = vpack.c.b16 %v1361, %v1358
        %v1392 = vpack.c.b16 %v1362, %v1359
        %v1393 = vpack.c.b16 %v1363, %v1360
        %v1394 = vpack.c.b16 %v1367, %v1364
        %v1395 = vpack.c.b16 %v1368, %v1365
        %v1396 = vpack.c.b16 %v1369, %v1366
        %v1397 = vpack.c.b16 %v1373, %v1370
        %v1398 = vpack.c.b16 %v1374, %v1371
        %v1399 = vpack.c.b16 %v1375, %v1372
        %1424 = vmatprep.subr.bf16.mxu0 %v1377
        %1425 = vmatpush1.bf16.msra.mxu0 %v1376
        %1426 = vmatprep.subr.bf16.mxu0 %v1380
        %1427 = vmatpush1.bf16.msra.mxu0 %v1379
        %1428 = vmatprep.subr.bf16.mxu0 %v1383
        %1429 = vmatpush1.bf16.msra.mxu0 %v1382
        %1430 = vmatprep.subr.bf16.mxu0 %v1386
        %1431 = vmatpush1.bf16.msra.mxu0 %v1385
        %1432 = vmatprep.subr.bf16.mxu0 %v1389
        %1433 = vmatpush1.bf16.msra.mxu0 %v1388
        %1434 = vmatprep.subr.bf16.mxu0 %v1392
        %1435 = vmatpush1.bf16.msra.mxu0 %v1391
        %1436 = vmatprep.subr.bf16.mxu0 %v1395
        %1437 = vmatpush1.bf16.msra.mxu0 %v1394
        %1438 = vmatprep.subr.bf16.mxu0 %v1398
        %1439 = vmatpush1.bf16.msra.mxu0 %v1397
        %1440 = vmatprep.subr.bf16.mxu0 0
        %1441 = vmatpush1.bf16.msra.mxu0 0
        %1442 = vmatprep.subr.bf16.mxu0 0
        %1443 = vmatpush1.bf16.msra.mxu0 0
        %1444 = vmatprep.subr.bf16.mxu0 0
        %1445 = vmatpush1.bf16.msra.mxu0 0
        %1446 = vmatprep.subr.bf16.mxu0 0
        %1447 = vmatpush1.bf16.msra.mxu0 0
        %1448 = vmatprep.subr.bf16.mxu0 0
        %1449 = vmatpush1.bf16.msra.mxu0 0
        %1450 = vmatprep.subr.bf16.mxu0 0
        %1451 = vmatpush1.bf16.msra.mxu0 0
        %1452 = vmatprep.subr.bf16.mxu0 0
        %1453 = vmatpush1.bf16.msra.mxu0 0
        %1454 = vmatprep.subr.bf16.mxu0 0
        %1455 = vmatpush1.bf16.msra.mxu0 0
        %1456 = vmatprep.mubr.bf16.mxu0 0
        %1457 = vmatmul.mubr.bf16.gmra.mrb[0].mxu0 %v1241
        %v1458 = vpop.f32.mrb[0].mxu0
        %v1459 = vadd.f32 %v1284, %v1458
        %v1460 = vpop.f32.mrb[0].mxu0
        %v1461 = vadd.f32 %v1288, %v1460
        %v1462 = vpop.f32.mrb[0].mxu0
        %v1463 = vadd.f32 %v1284, %v1462
        %v1464 = vpop.f32.mrb[0].mxu0
        %v1465 = vadd.f32 %v1288, %v1464
        %1466 = vmatprep.mubr.bf16.mxu0 0
        %1467 = vmatmul.mubr.bf16.gmra.mrb[0].mxu0 %v1242
        %v1468 = vpop.f32.mrb[0].mxu0
        %v1469 = vadd.f32 %v1284, %v1468
        %v1470 = vpop.f32.mrb[0].mxu0
        %v1471 = vadd.f32 %v1288, %v1470
        %v1472 = vpop.f32.mrb[0].mxu0
        %v1473 = vadd.f32 %v1284, %v1472
        %v1474 = vpop.f32.mrb[0].mxu0
        %v1475 = vadd.f32 %v1288, %v1474
        %1476 = vmatprep.mubr.bf16.mxu0 0
        %1477 = vmatmul.mubr.bf16.gmra.mrb[0].mxu0 %v1243
        %v1478 = vpop.f32.mrb[0].mxu0
        %v1479 = vadd.f32 %v1284, %v1478
        %v1480 = vpop.f32.mrb[0].mxu0
        %v1481 = vadd.f32 %v1288, %v1480
        %v1482 = vpop.f32.mrb[0].mxu0
        %v1483 = vadd.f32 %v1284, %v1482
        %v1484 = vpop.f32.mrb[0].mxu0
        %v1485 = vadd.f32 %v1288, %v1484
        %1486 = vmatprep.mubr.bf16.mxu0 0
        %1487 = vmatmul.mubr.bf16.gmra.mrb[0].mxu0 %v1244
        %v1488 = vpop.f32.mrb[0].mxu0
        %v1489 = vadd.f32 %v1284, %v1488
        %v1490 = vpop.f32.mrb[0].mxu0
        %v1491 = vadd.f32 %v1288, %v1490
        %v1492 = vpop.f32.mrb[0].mxu0
        %v1493 = vadd.f32 %v1284, %v1492
        %v1494 = vpop.f32.mrb[0].mxu0
        %v1495 = vadd.f32 %v1288, %v1494
        %1496 = vdwg.mxu0
        %1497 = vmatprep.subr.bf16.mxu0 0
        %1498 = vmatpush1.bf16.msra.mxu0 %v1378
        %1499 = vmatprep.subr.bf16.mxu0 0
        %1500 = vmatpush1.bf16.msra.mxu0 %v1381
        %1501 = vmatprep.subr.bf16.mxu0 0
        %1502 = vmatpush1.bf16.msra.mxu0 %v1384
        %1503 = vmatprep.subr.bf16.mxu0 0
        %1504 = vmatpush1.bf16.msra.mxu0 %v1387
        %1505 = vmatprep.subr.bf16.mxu0 0
        %1506 = vmatpush1.bf16.msra.mxu0 %v1390
        %1507 = vmatprep.subr.bf16.mxu0 0
        %1508 = vmatpush1.bf16.msra.mxu0 %v1393
        %1509 = vmatprep.subr.bf16.mxu0 0
        %1510 = vmatpush1.bf16.msra.mxu0 %v1396
        %1511 = vmatprep.subr.bf16.mxu0 0
        %1512 = vmatpush1.bf16.msra.mxu0 %v1399
        %1513 = vmatprep.subr.bf16.mxu0 0
        %1514 = vmatpush1.bf16.msra.mxu0 0
        %1515 = vmatprep.subr.bf16.mxu0 0
        %1516 = vmatpush1.bf16.msra.mxu0 0
        %1517 = vmatprep.subr.bf16.mxu0 0
        %1518 = vmatpush1.bf16.msra.mxu0 0
        %1519 = vmatprep.subr.bf16.mxu0 0
        %1520 = vmatpush1.bf16.msra.mxu0 0
        %1521 = vmatprep.subr.bf16.mxu0 0
        %1522 = vmatpush1.bf16.msra.mxu0 0
        %1523 = vmatprep.subr.bf16.mxu0 0
        %1524 = vmatpush1.bf16.msra.mxu0 0
        %1525 = vmatprep.subr.bf16.mxu0 0
        %1526 = vmatpush1.bf16.msra.mxu0 0
        %1527 = vmatprep.subr.bf16.mxu0 0
        %1528 = vmatpush1.bf16.msra.mxu0 0
        %1529 = vmatprep.mubr.bf16.mxu0 0
        %1530 = vmatmul.mubr.bf16.gmra.mrb[0].mxu0 %v1241
        %v1531 = vpop.f32.mrb[0].mxu0
        %v1532 = vadd.f32 %v1292, %v1531
        %v1533 = vpop.f32.mrb[0].mxu0
        %v1534 = vpop.f32.mrb[0].mxu0
        %v1535 = vadd.f32 %v1292, %v1534
        %v1536 = vpop.f32.mrb[0].mxu0
        %1537 = vmatprep.mubr.bf16.mxu0 0
        %1538 = vmatmul.mubr.bf16.gmra.mrb[0].mxu0 %v1242
        %v1539 = vpop.f32.mrb[0].mxu0
        %v1540 = vadd.f32 %v1292, %v1539
        %v1541 = vpop.f32.mrb[0].mxu0
        %v1542 = vpop.f32.mrb[0].mxu0
        %v1543 = vadd.f32 %v1292, %v1542
        %v1544 = vpop.f32.mrb[0].mxu0
        %1545 = vmatprep.mubr.bf16.mxu0 0
        %1546 = vmatmul.mubr.bf16.gmra.mrb[0].mxu0 %v1243
        %v1547 = vpop.f32.mrb[0].mxu0
        %v1548 = vadd.f32 %v1292, %v1547
        %v1549 = vpop.f32.mrb[0].mxu0
        %v1550 = vpop.f32.mrb[0].mxu0
        %v1551 = vadd.f32 %v1292, %v1550
        %v1552 = vpop.f32.mrb[0].mxu0
        %1553 = vmatprep.mubr.bf16.mxu0 0
        %1554 = vmatmul.mubr.bf16.gmra.mrb[0].mxu0 %v1244
        %v1555 = vpop.f32.mrb[0].mxu0
        %v1556 = vadd.f32 %v1292, %v1555
        %v1557 = vpop.f32.mrb[0].mxu0
        %v1558 = vpop.f32.mrb[0].mxu0
        %v1559 = vadd.f32 %v1292, %v1558
        %v1560 = vpop.f32.mrb[0].mxu0
        %1561 = vdwg.mxu0
        %v1562 = vpack.c.bf16 %v1463, %v1459
        %v1563 = vpack.c.bf16 %v1473, %v1469
        %v1564 = vpack.c.bf16 %v1483, %v1479
        %v1565 = vpack.c.bf16 %v1493, %v1489
        %v1566 = vpack.c.bf16 %v1465, %v1461
        %v1567 = vpack.c.bf16 %v1475, %v1471
        %v1568 = vpack.c.bf16 %v1485, %v1481
        %v1569 = vpack.c.bf16 %v1495, %v1491
        %v1570 = vpack.c.bf16 %v1535, %v1532
        %v1571 = vpack.c.bf16 %v1543, %v1540
        %v1572 = vpack.c.bf16 %v1551, %v1548
        %v1573 = vpack.c.bf16 %v1559, %v1556
        %1574 = vmatprep.subr.bf16.mxu0 0
        %1575 = vmatpush1.bf16.xpose.msra.mxu0 %v1566
        %1576 = vmatprep.subr.bf16.mxu0 0
        %1577 = vmatpush1.bf16.xpose.msra.mxu0 0
        %1578 = vmatprep.subr.bf16.mxu0 0
        %1579 = vmatpush1.bf16.xpose.msra.mxu0 0
        %1580 = vmatprep.subr.bf16.mxu0 0
        %1581 = vmatpush1.bf16.xpose.msra.mxu0 0
        %1582 = vmatprep.subr.bf16.mxu0 0
        %1583 = vmatpush1.bf16.xpose.msra.mxu0 0
        %1584 = vmatprep.subr.bf16.mxu0 0
        %1585 = vmatpush1.bf16.xpose.msra.mxu0 0
        %1586 = vmatprep.subr.bf16.mxu0 0
        %1587 = vmatpush1.bf16.xpose.msra.mxu0 0
        %1588 = vmatprep.subr.bf16.mxu0 0
        %1589 = vmatpush1.bf16.xpose.msra.mxu0 0
        %1590 = vmatprep.subr.bf16.mxu0 0
        %1591 = vmatpush1.bf16.xpose.msra.mxu0 0
        %1592 = vmatprep.subr.bf16.mxu0 0
        %1593 = vmatpush1.bf16.xpose.msra.mxu0 0
        %1594 = vmatprep.subr.bf16.mxu0 0
        %1595 = vmatpush1.bf16.xpose.msra.mxu0 0
        %1596 = vmatprep.subr.bf16.mxu0 0
        %1597 = vmatpush1.bf16.xpose.msra.mxu0 0
        %1598 = vmatprep.subr.bf16.mxu0 0
        %1599 = vmatpush1.bf16.xpose.msra.mxu0 0
        %1600 = vmatprep.subr.bf16.mxu0 0
        %1601 = vmatpush1.bf16.xpose.msra.mxu0 0
        %1602 = vmatprep.subr.bf16.mxu0 0
        %1603 = vmatpush1.bf16.xpose.msra.mxu0 0
        %1604 = vmatprep.subr.bf16.mxu0 0
        %1605 = vmatpush1.bf16.xpose.msra.mxu0 0
        %1606 = vmatprep.mubr.bf16.mxu0 0
        %1607 = vmatmul.mubr.bf16.gmra.mrb[0].mxu0 %v1562
        %v1608 = vpop.f32.mrb[0].mxu0
        %v1609 = vadd.f32 0.0, %v1608
        %v1610 = vpop.f32.mrb[0].mxu0
        %v1611 = vpop.f32.mrb[0].mxu0
        %v1612 = vadd.f32 0.0, %v1611
        %v1613 = vpop.f32.mrb[0].mxu0
        %1614 = vdwg.mxu0
        %1615 = vmatprep.subr.bf16.mxu0 0
        %1616 = vmatpush1.bf16.xpose.msra.mxu0 %v1567
        %1617 = vmatprep.subr.bf16.mxu0 0
        %1618 = vmatpush1.bf16.xpose.msra.mxu0 0
        %1619 = vmatprep.subr.bf16.mxu0 0
        %1620 = vmatpush1.bf16.xpose.msra.mxu0 0
        %1621 = vmatprep.subr.bf16.mxu0 0
        %1622 = vmatpush1.bf16.xpose.msra.mxu0 0
        %1623 = vmatprep.subr.bf16.mxu0 0
        %1624 = vmatpush1.bf16.xpose.msra.mxu0 0
        %1625 = vmatprep.subr.bf16.mxu0 0
        %1626 = vmatpush1.bf16.xpose.msra.mxu0 0
        %1627 = vmatprep.subr.bf16.mxu0 0
        %1628 = vmatpush1.bf16.xpose.msra.mxu0 0
        %1629 = vmatprep.subr.bf16.mxu0 0
        %1630 = vmatpush1.bf16.xpose.msra.mxu0 0
        %1631 = vmatprep.subr.bf16.mxu0 0
        %1632 = vmatpush1.bf16.xpose.msra.mxu0 0
        %1633 = vmatprep.subr.bf16.mxu0 0
        %1634 = vmatpush1.bf16.xpose.msra.mxu0 0
        %1635 = vmatprep.subr.bf16.mxu0 0
        %1636 = vmatpush1.bf16.xpose.msra.mxu0 0
        %1637 = vmatprep.subr.bf16.mxu0 0
        %1638 = vmatpush1.bf16.xpose.msra.mxu0 0
        %1639 = vmatprep.subr.bf16.mxu0 0
        %1640 = vmatpush1.bf16.xpose.msra.mxu0 0
        %1641 = vmatprep.subr.bf16.mxu0 0
        %1642 = vmatpush1.bf16.xpose.msra.mxu0 0
        %1643 = vmatprep.subr.bf16.mxu0 0
        %1644 = vmatpush1.bf16.xpose.msra.mxu0 0
        %1645 = vmatprep.subr.bf16.mxu0 0
        %1646 = vmatpush1.bf16.xpose.msra.mxu0 0
        %1647 = vmatprep.mubr.bf16.mxu0 0
        %1648 = vmatmul.mubr.bf16.gmra.mrb[0].mxu0 %v1563
        %v1649 = vpop.f32.mrb[0].mxu0
        %v1650 = vadd.f32 0.0, %v1649
        %v1651 = vpop.f32.mrb[0].mxu0
        %v1652 = vpop.f32.mrb[0].mxu0
        %v1653 = vadd.f32 0.0, %v1652
        %v1654 = vpop.f32.mrb[0].mxu0
        %1655 = vdwg.mxu0
        %1656 = vmatprep.subr.bf16.mxu0 0
        %1657 = vmatpush1.bf16.xpose.msra.mxu0 %v1568
        %1658 = vmatprep.subr.bf16.mxu0 0
        %1659 = vmatpush1.bf16.xpose.msra.mxu0 0
        %1660 = vmatprep.subr.bf16.mxu0 0
        %1661 = vmatpush1.bf16.xpose.msra.mxu0 0
        %1662 = vmatprep.subr.bf16.mxu0 0
        %1663 = vmatpush1.bf16.xpose.msra.mxu0 0
        %1664 = vmatprep.subr.bf16.mxu0 0
        %1665 = vmatpush1.bf16.xpose.msra.mxu0 0
        %1666 = vmatprep.subr.bf16.mxu0 0
        %1667 = vmatpush1.bf16.xpose.msra.mxu0 0
        %1668 = vmatprep.subr.bf16.mxu0 0
        %1669 = vmatpush1.bf16.xpose.msra.mxu0 0
        %1670 = vmatprep.subr.bf16.mxu0 0
        %1671 = vmatpush1.bf16.xpose.msra.mxu0 0
        %1672 = vmatprep.subr.bf16.mxu0 0
        %1673 = vmatpush1.bf16.xpose.msra.mxu0 0
        %1674 = vmatprep.subr.bf16.mxu0 0
        %1675 = vmatpush1.bf16.xpose.msra.mxu0 0
        %1676 = vmatprep.subr.bf16.mxu0 0
        %1677 = vmatpush1.bf16.xpose.msra.mxu0 0
        %1678 = vmatprep.subr.bf16.mxu0 0
        %1679 = vmatpush1.bf16.xpose.msra.mxu0 0
        %1680 = vmatprep.subr.bf16.mxu0 0
        %1681 = vmatpush1.bf16.xpose.msra.mxu0 0
        %1682 = vmatprep.subr.bf16.mxu0 0
        %1683 = vmatpush1.bf16.xpose.msra.mxu0 0
        %1684 = vmatprep.subr.bf16.mxu0 0
        %1685 = vmatpush1.bf16.xpose.msra.mxu0 0
        %1686 = vmatprep.subr.bf16.mxu0 0
        %1687 = vmatpush1.bf16.xpose.msra.mxu0 0
        %1688 = vmatprep.mubr.bf16.mxu0 0
        %1689 = vmatmul.mubr.bf16.gmra.mrb[0].mxu0 %v1564
        %v1690 = vpop.f32.mrb[0].mxu0
        %v1691 = vadd.f32 0.0, %v1690
        %v1692 = vpop.f32.mrb[0].mxu0
        %v1693 = vpop.f32.mrb[0].mxu0
        %v1694 = vadd.f32 0.0, %v1693
        %v1695 = vpop.f32.mrb[0].mxu0
        %1696 = vdwg.mxu0
        %1697 = vmatprep.subr.bf16.mxu0 0
        %1698 = vmatpush1.bf16.xpose.msra.mxu0 %v1569
        %1699 = vmatprep.subr.bf16.mxu0 0
        %1700 = vmatpush1.bf16.xpose.msra.mxu0 0
        %1701 = vmatprep.subr.bf16.mxu0 0
        %1702 = vmatpush1.bf16.xpose.msra.mxu0 0
        %1703 = vmatprep.subr.bf16.mxu0 0
        %1704 = vmatpush1.bf16.xpose.msra.mxu0 0
        %1705 = vmatprep.subr.bf16.mxu0 0
        %1706 = vmatpush1.bf16.xpose.msra.mxu0 0
        %1707 = vmatprep.subr.bf16.mxu0 0
        %1708 = vmatpush1.bf16.xpose.msra.mxu0 0
        %1709 = vmatprep.subr.bf16.mxu0 0
        %1710 = vmatpush1.bf16.xpose.msra.mxu0 0
        %1711 = vmatprep.subr.bf16.mxu0 0
        %1712 = vmatpush1.bf16.xpose.msra.mxu0 0
        %1713 = vmatprep.subr.bf16.mxu0 0
        %1714 = vmatpush1.bf16.xpose.msra.mxu0 0
        %1715 = vmatprep.subr.bf16.mxu0 0
        %1716 = vmatpush1.bf16.xpose.msra.mxu0 0
        %1717 = vmatprep.subr.bf16.mxu0 0
        %1718 = vmatpush1.bf16.xpose.msra.mxu0 0
        %1719 = vmatprep.subr.bf16.mxu0 0
        %1720 = vmatpush1.bf16.xpose.msra.mxu0 0
        %1721 = vmatprep.subr.bf16.mxu0 0
        %1722 = vmatpush1.bf16.xpose.msra.mxu0 0
        %1723 = vmatprep.subr.bf16.mxu0 0
        %1724 = vmatpush1.bf16.xpose.msra.mxu0 0
        %1725 = vmatprep.subr.bf16.mxu0 0
        %1726 = vmatpush1.bf16.xpose.msra.mxu0 0
        %1727 = vmatprep.subr.bf16.mxu0 0
        %1728 = vmatpush1.bf16.xpose.msra.mxu0 0
        %1729 = vmatprep.mubr.bf16.mxu0 0
        %1730 = vmatmul.mubr.bf16.gmra.mrb[0].mxu0 %v1565
        %v1731 = vpop.f32.mrb[0].mxu0
        %v1732 = vadd.f32 0.0, %v1731
        %v1733 = vpop.f32.mrb[0].mxu0
        %v1734 = vpop.f32.mrb[0].mxu0
        %v1735 = vadd.f32 0.0, %v1734
        %v1736 = vpop.f32.mrb[0].mxu0
        %1737 = vdwg.mxu0
        %v1738 = vmul.f32 %v1609, 0.088388346
        %v1739 = vmul.f32 %v1612, 0.088388346
        %v1740 = vmul.f32 %v1650, 0.088388346
        %v1741 = vmul.f32 %v1653, 0.088388346
        %v1742 = vmul.f32 %v1691, 0.088388346
        %v1743 = vmul.f32 %v1694, 0.088388346
        %v1744 = vmul.f32 %v1732, 0.088388346
        %v1745 = vmul.f32 %v1735, 0.088388346
        %v1746 = vsel %vm972, %v1738, -inf
        %1747 = vmax.xlane.f32.xlu0 %v1746
        %v1748 = vpop.xlane.xlu0 %1747
        %v1749 = vsel %vm972, %v1739, -inf
        %1750 = vmax.xlane.f32.xlu0 %v1749
        %v1751 = vpop.xlane.xlu0 %1750
        %v1752 = vsel %vm972, %v1740, -inf
        %1753 = vmax.xlane.f32.xlu0 %v1752
        %v1754 = vpop.xlane.xlu0 %1753
        %v1755 = vsel %vm972, %v1741, -inf
        %1756 = vmax.xlane.f32.xlu0 %v1755
        %v1757 = vpop.xlane.xlu0 %1756
        %v1758 = vsel %vm972, %v1742, -inf
        %1759 = vmax.xlane.f32.xlu0 %v1758
        %v1760 = vpop.xlane.xlu0 %1759
        %v1761 = vsel %vm972, %v1743, -inf
        %1762 = vmax.xlane.f32.xlu0 %v1761
        %v1763 = vpop.xlane.xlu0 %1762
        %v1764 = vsel %vm972, %v1744, -inf
        %1765 = vmax.xlane.f32.xlu0 %v1764
        %v1766 = vpop.xlane.xlu0 %1765
        %v1767 = vsel %vm972, %v1745, -inf
        %1768 = vmax.xlane.f32.xlu0 %v1767
        %v1769 = vpop.xlane.xlu0 %1768
        %v1770 = vsub.f32 %v1738, %v1748
        %v1771 = vsub.f32 %v1739, %v1751
        %v1772 = vsub.f32 %v1740, %v1754
        %v1773 = vsub.f32 %v1741, %v1757
        %v1774 = vsub.f32 %v1742, %v1760
        %v1775 = vsub.f32 %v1743, %v1763
        %v1776 = vsub.f32 %v1744, %v1766
        %v1777 = vsub.f32 %v1745, %v1769
        %v1778 = vmul.f32 %v1770, 1.442695
        %v1779 = vpow.pop %v1778
        %v1780 = vmul.f32 %v1771, 1.442695
        %v1781 = vpow.pop %v1780
        %v1782 = vmul.f32 %v1772, 1.442695
        %v1783 = vpow.pop %v1782
        %v1784 = vmul.f32 %v1773, 1.442695
        %v1785 = vpow.pop %v1784
        %v1786 = vmul.f32 %v1774, 1.442695
        %v1787 = vpow.pop %v1786
        %v1788 = vmul.f32 %v1775, 1.442695
        %v1789 = vpow.pop %v1788
        %v1790 = vmul.f32 %v1776, 1.442695
        %v1791 = vpow.pop %v1790
        %v1792 = vmul.f32 %v1777, 1.442695
        %v1793 = vpow.pop %v1792
        %v1794 = vsel %vm972, %v1779, 0.0
        %1795 = vadd.xlane.f32.xlu0 %v1794
        %v1796 = vpop.xlane.xlu0 %1795
        %v1797 = vsel %vm972, %v1781, 0.0
        %1798 = vadd.xlane.f32.xlu0 %v1797
        %v1799 = vpop.xlane.xlu0 %1798
        %v1800 = vsel %vm972, %v1783, 0.0
        %1801 = vadd.xlane.f32.xlu0 %v1800
        %v1802 = vpop.xlane.xlu0 %1801
        %v1803 = vsel %vm972, %v1785, 0.0
        %1804 = vadd.xlane.f32.xlu0 %v1803
        %v1805 = vpop.xlane.xlu0 %1804
        %v1806 = vsel %vm972, %v1787, 0.0
        %1807 = vadd.xlane.f32.xlu0 %v1806
        %v1808 = vpop.xlane.xlu0 %1807
        %v1809 = vsel %vm972, %v1789, 0.0
        %1810 = vadd.xlane.f32.xlu0 %v1809
        %v1811 = vpop.xlane.xlu0 %1810
        %v1812 = vsel %vm972, %v1791, 0.0
        %1813 = vadd.xlane.f32.xlu0 %v1812
        %v1814 = vpop.xlane.xlu0 %1813
        %v1815 = vsel %vm972, %v1793, 0.0
        %1816 = vadd.xlane.f32.xlu0 %v1815
        %v1817 = vpop.xlane.xlu0 %1816
        %v1818 = vrcp.pop %v1796
        %v1819 = vmul.f32 %v1779, %v1818
        %v1820 = vrcp.pop %v1799
        %v1821 = vmul.f32 %v1781, %v1820
        %v1822 = vrcp.pop %v1802
        %v1823 = vmul.f32 %v1783, %v1822
        %v1824 = vrcp.pop %v1805
        %v1825 = vmul.f32 %v1785, %v1824
        %v1826 = vrcp.pop %v1808
        %v1827 = vmul.f32 %v1787, %v1826
        %v1828 = vrcp.pop %v1811
        %v1829 = vmul.f32 %v1789, %v1828
        %v1830 = vrcp.pop %v1814
        %v1831 = vmul.f32 %v1791, %v1830
        %v1832 = vrcp.pop %v1817
        %v1833 = vmul.f32 %v1793, %v1832
        %v1834 = vpack.c.bf16 %v1821, %v1819
        %v1835 = vpack.c.bf16 %v1825, %v1823
        %v1836 = vpack.c.bf16 %v1829, %v1827
        %v1837 = vpack.c.bf16 %v1833, %v1831
        %v1839 = vsel %vm972, %v1834, 0
        %1841 = vmatprep.subr.bf16.mxu0 0
        %1842 = vmatpush1.bf16.msra.mxu0 %v1570
        %1843 = vmatprep.subr.bf16.mxu0 0
        %1844 = vmatpush1.bf16.msra.mxu0 0
        %1845 = vmatprep.subr.bf16.mxu0 0
        %1846 = vmatpush1.bf16.msra.mxu0 0
        %1847 = vmatprep.subr.bf16.mxu0 0
        %1848 = vmatpush1.bf16.msra.mxu0 0
        %1849 = vmatprep.subr.bf16.mxu0 0
        %1850 = vmatpush1.bf16.msra.mxu0 0
        %1851 = vmatprep.subr.bf16.mxu0 0
        %1852 = vmatpush1.bf16.msra.mxu0 0
        %1853 = vmatprep.subr.bf16.mxu0 0
        %1854 = vmatpush1.bf16.msra.mxu0 0
        %1855 = vmatprep.subr.bf16.mxu0 0
        %1856 = vmatpush1.bf16.msra.mxu0 0
        %1857 = vmatprep.subr.bf16.mxu0 0
        %1858 = vmatpush1.bf16.msra.mxu0 0
        %1859 = vmatprep.subr.bf16.mxu0 0
        %1860 = vmatpush1.bf16.msra.mxu0 0
        %1861 = vmatprep.subr.bf16.mxu0 0
        %1862 = vmatpush1.bf16.msra.mxu0 0
        %1863 = vmatprep.subr.bf16.mxu0 0
        %1864 = vmatpush1.bf16.msra.mxu0 0
        %1865 = vmatprep.subr.bf16.mxu0 0
        %1866 = vmatpush1.bf16.msra.mxu0 0
        %1867 = vmatprep.subr.bf16.mxu0 0
        %1868 = vmatpush1.bf16.msra.mxu0 0
        %1869 = vmatprep.subr.bf16.mxu0 0
        %1870 = vmatpush1.bf16.msra.mxu0 0
        %1871 = vmatprep.subr.bf16.mxu0 0
        %1872 = vmatpush1.bf16.msra.mxu0 0
        %1873 = vmatprep.mubr.bf16.mxu0 0
        %1874 = vmatmul.mubr.bf16.gmra.mrb[0].mxu0 %v1839
        %v1875 = vpop.f32.mrb[0].mxu0
        %v1876 = vadd.f32 0.0, %v1875
        %v1877 = vpop.f32.mrb[0].mxu0
        %v1878 = vpop.f32.mrb[0].mxu0
        %v1879 = vadd.f32 0.0, %v1878
        %v1880 = vpop.f32.mrb[0].mxu0
        %1881 = vdwg.mxu0
        %v1883 = vsel %vm972, %v1835, 0
        %1885 = vmatprep.subr.bf16.mxu0 0
        %1886 = vmatpush1.bf16.msra.mxu0 %v1571
        %1887 = vmatprep.subr.bf16.mxu0 0
        %1888 = vmatpush1.bf16.msra.mxu0 0
        %1889 = vmatprep.subr.bf16.mxu0 0
        %1890 = vmatpush1.bf16.msra.mxu0 0
        %1891 = vmatprep.subr.bf16.mxu0 0
        %1892 = vmatpush1.bf16.msra.mxu0 0
        %1893 = vmatprep.subr.bf16.mxu0 0
        %1894 = vmatpush1.bf16.msra.mxu0 0
        %1895 = vmatprep.subr.bf16.mxu0 0
        %1896 = vmatpush1.bf16.msra.mxu0 0
        %1897 = vmatprep.subr.bf16.mxu0 0
        %1898 = vmatpush1.bf16.msra.mxu0 0
        %1899 = vmatprep.subr.bf16.mxu0 0
        %1900 = vmatpush1.bf16.msra.mxu0 0
        %1901 = vmatprep.subr.bf16.mxu0 0
        %1902 = vmatpush1.bf16.msra.mxu0 0
        %1903 = vmatprep.subr.bf16.mxu0 0
        %1904 = vmatpush1.bf16.msra.mxu0 0
        %1905 = vmatprep.subr.bf16.mxu0 0
        %1906 = vmatpush1.bf16.msra.mxu0 0
        %1907 = vmatprep.subr.bf16.mxu0 0
        %1908 = vmatpush1.bf16.msra.mxu0 0
        %1909 = vmatprep.subr.bf16.mxu0 0
        %1910 = vmatpush1.bf16.msra.mxu0 0
        %1911 = vmatprep.subr.bf16.mxu0 0
        %1912 = vmatpush1.bf16.msra.mxu0 0
        %1913 = vmatprep.subr.bf16.mxu0 0
        %1914 = vmatpush1.bf16.msra.mxu0 0
        %1915 = vmatprep.subr.bf16.mxu0 0
        %1916 = vmatpush1.bf16.msra.mxu0 0
        %1917 = vmatprep.mubr.bf16.mxu0 0
        %1918 = vmatmul.mubr.bf16.gmra.mrb[0].mxu0 %v1883
        %v1919 = vpop.f32.mrb[0].mxu0
        %v1920 = vadd.f32 0.0, %v1919
        %v1921 = vpop.f32.mrb[0].mxu0
        %v1922 = vpop.f32.mrb[0].mxu0
        %v1923 = vadd.f32 0.0, %v1922
        %v1924 = vpop.f32.mrb[0].mxu0
        %1925 = vdwg.mxu0
        %v1927 = vsel %vm972, %v1836, 0
        %1929 = vmatprep.subr.bf16.mxu0 0
        %1930 = vmatpush1.bf16.msra.mxu0 %v1572
        %1931 = vmatprep.subr.bf16.mxu0 0
        %1932 = vmatpush1.bf16.msra.mxu0 0
        %1933 = vmatprep.subr.bf16.mxu0 0
        %1934 = vmatpush1.bf16.msra.mxu0 0
        %1935 = vmatprep.subr.bf16.mxu0 0
        %1936 = vmatpush1.bf16.msra.mxu0 0
        %1937 = vmatprep.subr.bf16.mxu0 0
        %1938 = vmatpush1.bf16.msra.mxu0 0
        %1939 = vmatprep.subr.bf16.mxu0 0
        %1940 = vmatpush1.bf16.msra.mxu0 0
        %1941 = vmatprep.subr.bf16.mxu0 0
        %1942 = vmatpush1.bf16.msra.mxu0 0
        %1943 = vmatprep.subr.bf16.mxu0 0
        %1944 = vmatpush1.bf16.msra.mxu0 0
        %1945 = vmatprep.subr.bf16.mxu0 0
        %1946 = vmatpush1.bf16.msra.mxu0 0
        %1947 = vmatprep.subr.bf16.mxu0 0
        %1948 = vmatpush1.bf16.msra.mxu0 0
        %1949 = vmatprep.subr.bf16.mxu0 0
        %1950 = vmatpush1.bf16.msra.mxu0 0
        %1951 = vmatprep.subr.bf16.mxu0 0
        %1952 = vmatpush1.bf16.msra.mxu0 0
        %1953 = vmatprep.subr.bf16.mxu0 0
        %1954 = vmatpush1.bf16.msra.mxu0 0
        %1955 = vmatprep.subr.bf16.mxu0 0
        %1956 = vmatpush1.bf16.msra.mxu0 0
        %1957 = vmatprep.subr.bf16.mxu0 0
        %1958 = vmatpush1.bf16.msra.mxu0 0
        %1959 = vmatprep.subr.bf16.mxu0 0
        %1960 = vmatpush1.bf16.msra.mxu0 0
        %1961 = vmatprep.mubr.bf16.mxu0 0
        %1962 = vmatmul.mubr.bf16.gmra.mrb[0].mxu0 %v1927
        %v1963 = vpop.f32.mrb[0].mxu0
        %v1964 = vadd.f32 0.0, %v1963
        %v1965 = vpop.f32.mrb[0].mxu0
        %v1966 = vpop.f32.mrb[0].mxu0
        %v1967 = vadd.f32 0.0, %v1966
        %v1968 = vpop.f32.mrb[0].mxu0
        %1969 = vdwg.mxu0
        %v1971 = vsel %vm972, %v1837, 0
        %1973 = vmatprep.subr.bf16.mxu0 0
        %1974 = vmatpush1.bf16.msra.mxu0 %v1573
        %1975 = vmatprep.subr.bf16.mxu0 0
        %1976 = vmatpush1.bf16.msra.mxu0 0
        %1977 = vmatprep.subr.bf16.mxu0 0
        %1978 = vmatpush1.bf16.msra.mxu0 0
        %1979 = vmatprep.subr.bf16.mxu0 0
        %1980 = vmatpush1.bf16.msra.mxu0 0
        %1981 = vmatprep.subr.bf16.mxu0 0
        %1982 = vmatpush1.bf16.msra.mxu0 0
        %1983 = vmatprep.subr.bf16.mxu0 0
        %1984 = vmatpush1.bf16.msra.mxu0 0
        %1985 = vmatprep.subr.bf16.mxu0 0
        %1986 = vmatpush1.bf16.msra.mxu0 0
        %1987 = vmatprep.subr.bf16.mxu0 0
        %1988 = vmatpush1.bf16.msra.mxu0 0
        %1989 = vmatprep.subr.bf16.mxu0 0
        %1990 = vmatpush1.bf16.msra.mxu0 0
        %1991 = vmatprep.subr.bf16.mxu0 0
        %1992 = vmatpush1.bf16.msra.mxu0 0
        %1993 = vmatprep.subr.bf16.mxu0 0
        %1994 = vmatpush1.bf16.msra.mxu0 0
        %1995 = vmatprep.subr.bf16.mxu0 0
        %1996 = vmatpush1.bf16.msra.mxu0 0
        %1997 = vmatprep.subr.bf16.mxu0 0
        %1998 = vmatpush1.bf16.msra.mxu0 0
        %1999 = vmatprep.subr.bf16.mxu0 0
        %2000 = vmatpush1.bf16.msra.mxu0 0
        %2001 = vmatprep.subr.bf16.mxu0 0
        %2002 = vmatpush1.bf16.msra.mxu0 0
        %2003 = vmatprep.subr.bf16.mxu0 0
        %2004 = vmatpush1.bf16.msra.mxu0 0
        %2005 = vmatprep.mubr.bf16.mxu0 0
        %2006 = vmatmul.mubr.bf16.gmra.mrb[0].mxu0 %v1971
        %v2007 = vpop.f32.mrb[0].mxu0
        %v2008 = vadd.f32 0.0, %v2007
        %v2009 = vpop.f32.mrb[0].mxu0
        %v2010 = vpop.f32.mrb[0].mxu0
        %v2011 = vadd.f32 0.0, %v2010
        %v2012 = vpop.f32.mrb[0].mxu0
        %2013 = vdwg.mxu0
        %v2014 = vpack.c.bf16 %v1879, %v1876
        %v2015 = vpack.c.bf16 %v1923, %v1920
        %v2016 = vpack.c.bf16 %v1967, %v1964
        %v2017 = vpack.c.bf16 %v2011, %v2008
        %s2018 = scalar_lea.vmem [#allocation5], 384
        %v2019 = vld [vmem:[%s2018] sm:$0xff]
        %v2020 = vld [vmem:[%s2018 + $0x8] sm:$0xf]
        %v2021 = vld [vmem:[%s2018 + $0xc] sm:$0xff]
        %v2022 = vld [vmem:[%s2018 + $0x14] sm:$0xf]
        %v2023 = vld [vmem:[%s2018 + $0x18] sm:$0xff]
        %v2024 = vld [vmem:[%s2018 + $0x20] sm:$0xf]
        %v2025 = vld [vmem:[%s2018 + $0x24] sm:$0xff]
        %v2026 = vld [vmem:[%s2018 + $0x2c] sm:$0xf]
        %v2027 = vld [vmem:[%s2018 + $0x30] sm:$0xff]
        %v2028 = vld [vmem:[%s2018 + $0x38] sm:$0xf]
        %v2029 = vld [vmem:[%s2018 + $0x3c] sm:$0xff]
        %v2030 = vld [vmem:[%s2018 + $0x44] sm:$0xf]
        %v2031 = vld [vmem:[%s2018 + $0x48] sm:$0xff]
        %v2032 = vld [vmem:[%s2018 + $0x50] sm:$0xf]
        %v2033 = vld [vmem:[%s2018 + $0x54] sm:$0xff]
        %v2034 = vld [vmem:[%s2018 + $0x5c] sm:$0xf]
        %v2035 = vld [vmem:[%s2018 + $0x60] sm:$0xff]
        %v2036 = vld [vmem:[%s2018 + $0x68] sm:$0xf]
        %v2037 = vld [vmem:[%s2018 + $0x6c] sm:$0xff]
        %v2038 = vld [vmem:[%s2018 + $0x74] sm:$0xf]
        %v2039 = vld [vmem:[%s2018 + $0x78] sm:$0xff]
        %v2040 = vld [vmem:[%s2018 + $0x80] sm:$0xf]
        %v2041 = vld [vmem:[%s2018 + $0x84] sm:$0xff]
        %v2042 = vld [vmem:[%s2018 + $0x8c] sm:$0xf]
        %v2043 = vld [vmem:[%s2018 + $0x90] sm:$0xff]
        %v2044 = vld [vmem:[%s2018 + $0x98] sm:$0xf]
        %v2045 = vld [vmem:[%s2018 + $0x9c] sm:$0xff]
        %v2046 = vld [vmem:[%s2018 + $0xa4] sm:$0xf]
        %v2047 = vld [vmem:[%s2018 + $0xa8] sm:$0xff]
        %v2048 = vld [vmem:[%s2018 + $0xb0] sm:$0xf]
        %v2049 = vld [vmem:[%s2018 + $0xb4] sm:$0xff]
        %v2050 = vld [vmem:[%s2018 + $0xbc] sm:$0xf]
        %s2051 = scalar_lea.vmem %s4, 6
        %v2052 = vld [vmem:[%s2051] sm:$0x7]
        %v2054 = vlaneseq
        %v2055 = vshrl.u32 %v2054, 7
        %v2056 = vsub.s32 0, %v2055
        %v2057 = vrot.slane %v2052, %v2056
        %v2058 = vlaneseq
        %v2059 = vshrl.u32 %v2058, 7
        %v2060 = vsub.s32 1, %v2059
        %v2061 = vrot.slane %v2052, %v2060
        %v2062 = vlaneseq
        %v2063 = vshrl.u32 %v2062, 7
        %v2064 = vsub.s32 2, %v2063
        %v2065 = vrot.slane %v2052, %v2064
        %v2101 = vunpack.c.l.b16 %v2019
        %v2102 = vunpack.c.h.b16 %v2019
        %v2103 = vunpack.c.l.b16 %v2020
        %v2104 = vunpack.c.l.b16 %v2021
        %v2105 = vunpack.c.h.b16 %v2021
        %v2106 = vunpack.c.l.b16 %v2022
        %v2107 = vunpack.c.l.b16 %v2023
        %v2108 = vunpack.c.h.b16 %v2023
        %v2109 = vunpack.c.l.b16 %v2024
        %v2110 = vunpack.c.l.b16 %v2025
        %v2111 = vunpack.c.h.b16 %v2025
        %v2112 = vunpack.c.l.b16 %v2026
        %v2113 = vunpack.c.l.b16 %v2027
        %v2114 = vunpack.c.h.b16 %v2027
        %v2115 = vunpack.c.l.b16 %v2028
        %v2116 = vunpack.c.l.b16 %v2029
        %v2117 = vunpack.c.h.b16 %v2029
        %v2118 = vunpack.c.l.b16 %v2030
        %v2119 = vunpack.c.l.b16 %v2031
        %v2120 = vunpack.c.h.b16 %v2031
        %v2121 = vunpack.c.l.b16 %v2032
        %v2122 = vunpack.c.l.b16 %v2033
        %v2123 = vunpack.c.h.b16 %v2033
        %v2124 = vunpack.c.l.b16 %v2034
        %v2125 = vunpack.c.l.b16 %v2035
        %v2126 = vunpack.c.h.b16 %v2035
        %v2127 = vunpack.c.l.b16 %v2036
        %v2128 = vunpack.c.l.b16 %v2037
        %v2129 = vunpack.c.h.b16 %v2037
        %v2130 = vunpack.c.l.b16 %v2038
        %v2131 = vunpack.c.l.b16 %v2039
        %v2132 = vunpack.c.h.b16 %v2039
        %v2133 = vunpack.c.l.b16 %v2040
        %v2134 = vunpack.c.l.b16 %v2041
        %v2135 = vunpack.c.h.b16 %v2041
        %v2136 = vunpack.c.l.b16 %v2042
        %v2137 = vunpack.c.l.b16 %v2043
        %v2138 = vunpack.c.h.b16 %v2043
        %v2139 = vunpack.c.l.b16 %v2044
        %v2140 = vunpack.c.l.b16 %v2045
        %v2141 = vunpack.c.h.b16 %v2045
        %v2142 = vunpack.c.l.b16 %v2046
        %v2143 = vunpack.c.l.b16 %v2047
        %v2144 = vunpack.c.h.b16 %v2047
        %v2145 = vunpack.c.l.b16 %v2048
        %v2146 = vunpack.c.l.b16 %v2049
        %v2147 = vunpack.c.h.b16 %v2049
        %v2148 = vunpack.c.l.b16 %v2050
        %v2149 = vpack.c.b16 %v2104, %v2101
        %v2150 = vpack.c.b16 %v2105, %v2102
        %v2151 = vpack.c.b16 %v2106, %v2103
        %v2152 = vpack.c.b16 %v2110, %v2107
        %v2153 = vpack.c.b16 %v2111, %v2108
        %v2154 = vpack.c.b16 %v2112, %v2109
        %v2155 = vpack.c.b16 %v2116, %v2113
        %v2156 = vpack.c.b16 %v2117, %v2114
        %v2157 = vpack.c.b16 %v2118, %v2115
        %v2158 = vpack.c.b16 %v2122, %v2119
        %v2159 = vpack.c.b16 %v2123, %v2120
        %v2160 = vpack.c.b16 %v2124, %v2121
        %v2161 = vpack.c.b16 %v2128, %v2125
        %v2162 = vpack.c.b16 %v2129, %v2126
        %v2163 = vpack.c.b16 %v2130, %v2127
        %v2164 = vpack.c.b16 %v2134, %v2131
        %v2165 = vpack.c.b16 %v2135, %v2132
        %v2166 = vpack.c.b16 %v2136, %v2133
        %v2167 = vpack.c.b16 %v2140, %v2137
        %v2168 = vpack.c.b16 %v2141, %v2138
        %v2169 = vpack.c.b16 %v2142, %v2139
        %v2170 = vpack.c.b16 %v2146, %v2143
        %v2171 = vpack.c.b16 %v2147, %v2144
        %v2172 = vpack.c.b16 %v2148, %v2145
        %2197 = vmatprep.subr.bf16.mxu0 %v2150
        %2198 = vmatpush1.bf16.msra.mxu0 %v2149
        %2199 = vmatprep.subr.bf16.mxu0 %v2153
        %2200 = vmatpush1.bf16.msra.mxu0 %v2152
        %2201 = vmatprep.subr.bf16.mxu0 %v2156
        %2202 = vmatpush1.bf16.msra.mxu0 %v2155
        %2203 = vmatprep.subr.bf16.mxu0 %v2159
        %2204 = vmatpush1.bf16.msra.mxu0 %v2158
        %2205 = vmatprep.subr.bf16.mxu0 %v2162
        %2206 = vmatpush1.bf16.msra.mxu0 %v2161
        %2207 = vmatprep.subr.bf16.mxu0 %v2165
        %2208 = vmatpush1.bf16.msra.mxu0 %v2164
        %2209 = vmatprep.subr.bf16.mxu0 %v2168
        %2210 = vmatpush1.bf16.msra.mxu0 %v2167
        %2211 = vmatprep.subr.bf16.mxu0 %v2171
        %2212 = vmatpush1.bf16.msra.mxu0 %v2170
        %2213 = vmatprep.subr.bf16.mxu0 0
        %2214 = vmatpush1.bf16.msra.mxu0 0
        %2215 = vmatprep.subr.bf16.mxu0 0
        %2216 = vmatpush1.bf16.msra.mxu0 0
        %2217 = vmatprep.subr.bf16.mxu0 0
        %2218 = vmatpush1.bf16.msra.mxu0 0
        %2219 = vmatprep.subr.bf16.mxu0 0
        %2220 = vmatpush1.bf16.msra.mxu0 0
        %2221 = vmatprep.subr.bf16.mxu0 0
        %2222 = vmatpush1.bf16.msra.mxu0 0
        %2223 = vmatprep.subr.bf16.mxu0 0
        %2224 = vmatpush1.bf16.msra.mxu0 0
        %2225 = vmatprep.subr.bf16.mxu0 0
        %2226 = vmatpush1.bf16.msra.mxu0 0
        %2227 = vmatprep.subr.bf16.mxu0 0
        %2228 = vmatpush1.bf16.msra.mxu0 0
        %2229 = vmatprep.mubr.bf16.mxu0 0
        %2230 = vmatmul.mubr.bf16.gmra.mrb[0].mxu0 %v2014
        %v2231 = vpop.f32.mrb[0].mxu0
        %v2232 = vadd.f32 %v2057, %v2231
        %v2233 = vpop.f32.mrb[0].mxu0
        %v2234 = vadd.f32 %v2061, %v2233
        %v2235 = vpop.f32.mrb[0].mxu0
        %v2236 = vadd.f32 %v2057, %v2235
        %v2237 = vpop.f32.mrb[0].mxu0
        %v2238 = vadd.f32 %v2061, %v2237
        %2239 = vmatprep.mubr.bf16.mxu0 0
        %2240 = vmatmul.mubr.bf16.gmra.mrb[0].mxu0 %v2015
        %v2241 = vpop.f32.mrb[0].mxu0
        %v2242 = vadd.f32 %v2057, %v2241
        %v2243 = vpop.f32.mrb[0].mxu0
        %v2244 = vadd.f32 %v2061, %v2243
        %v2245 = vpop.f32.mrb[0].mxu0
        %v2246 = vadd.f32 %v2057, %v2245
        %v2247 = vpop.f32.mrb[0].mxu0
        %v2248 = vadd.f32 %v2061, %v2247
        %2249 = vmatprep.mubr.bf16.mxu0 0
        %2250 = vmatmul.mubr.bf16.gmra.mrb[0].mxu0 %v2016
        %v2251 = vpop.f32.mrb[0].mxu0
        %v2252 = vadd.f32 %v2057, %v2251
        %v2253 = vpop.f32.mrb[0].mxu0
        %v2254 = vadd.f32 %v2061, %v2253
        %v2255 = vpop.f32.mrb[0].mxu0
        %v2256 = vadd.f32 %v2057, %v2255
        %v2257 = vpop.f32.mrb[0].mxu0
        %v2258 = vadd.f32 %v2061, %v2257
        %2259 = vmatprep.mubr.bf16.mxu0 0
        %2260 = vmatmul.mubr.bf16.gmra.mrb[0].mxu0 %v2017
        %v2261 = vpop.f32.mrb[0].mxu0
        %v2262 = vadd.f32 %v2057, %v2261
        %v2263 = vpop.f32.mrb[0].mxu0
        %v2264 = vadd.f32 %v2061, %v2263
        %v2265 = vpop.f32.mrb[0].mxu0
        %v2266 = vadd.f32 %v2057, %v2265
        %v2267 = vpop.f32.mrb[0].mxu0
        %v2268 = vadd.f32 %v2061, %v2267
        %2269 = vdwg.mxu0
        %2270 = vmatprep.subr.bf16.mxu0 0
        %2271 = vmatpush1.bf16.msra.mxu0 %v2151
        %2272 = vmatprep.subr.bf16.mxu0 0
        %2273 = vmatpush1.bf16.msra.mxu0 %v2154
        %2274 = vmatprep.subr.bf16.mxu0 0
        %2275 = vmatpush1.bf16.msra.mxu0 %v2157
        %2276 = vmatprep.subr.bf16.mxu0 0
        %2277 = vmatpush1.bf16.msra.mxu0 %v2160
        %2278 = vmatprep.subr.bf16.mxu0 0
        %2279 = vmatpush1.bf16.msra.mxu0 %v2163
        %2280 = vmatprep.subr.bf16.mxu0 0
        %2281 = vmatpush1.bf16.msra.mxu0 %v2166
        %2282 = vmatprep.subr.bf16.mxu0 0
        %2283 = vmatpush1.bf16.msra.mxu0 %v2169
        %2284 = vmatprep.subr.bf16.mxu0 0
        %2285 = vmatpush1.bf16.msra.mxu0 %v2172
        %2286 = vmatprep.subr.bf16.mxu0 0
        %2287 = vmatpush1.bf16.msra.mxu0 0
        %2288 = vmatprep.subr.bf16.mxu0 0
        %2289 = vmatpush1.bf16.msra.mxu0 0
        %2290 = vmatprep.subr.bf16.mxu0 0
        %2291 = vmatpush1.bf16.msra.mxu0 0
        %2292 = vmatprep.subr.bf16.mxu0 0
        %2293 = vmatpush1.bf16.msra.mxu0 0
        %2294 = vmatprep.subr.bf16.mxu0 0
        %2295 = vmatpush1.bf16.msra.mxu0 0
        %2296 = vmatprep.subr.bf16.mxu0 0
        %2297 = vmatpush1.bf16.msra.mxu0 0
        %2298 = vmatprep.subr.bf16.mxu0 0
        %2299 = vmatpush1.bf16.msra.mxu0 0
        %2300 = vmatprep.subr.bf16.mxu0 0
        %2301 = vmatpush1.bf16.msra.mxu0 0
        %2302 = vmatprep.mubr.bf16.mxu0 0
        %2303 = vmatmul.mubr.bf16.gmra.mrb[0].mxu0 %v2014
        %v2304 = vpop.f32.mrb[0].mxu0
        %v2305 = vadd.f32 %v2065, %v2304
        %v2306 = vpop.f32.mrb[0].mxu0
        %v2307 = vpop.f32.mrb[0].mxu0
        %v2308 = vadd.f32 %v2065, %v2307
        %v2309 = vpop.f32.mrb[0].mxu0
        %2310 = vmatprep.mubr.bf16.mxu0 0
        %2311 = vmatmul.mubr.bf16.gmra.mrb[0].mxu0 %v2015
        %v2312 = vpop.f32.mrb[0].mxu0
        %v2313 = vadd.f32 %v2065, %v2312
        %v2314 = vpop.f32.mrb[0].mxu0
        %v2315 = vpop.f32.mrb[0].mxu0
        %v2316 = vadd.f32 %v2065, %v2315
        %v2317 = vpop.f32.mrb[0].mxu0
        %2318 = vmatprep.mubr.bf16.mxu0 0
        %2319 = vmatmul.mubr.bf16.gmra.mrb[0].mxu0 %v2016
        %v2320 = vpop.f32.mrb[0].mxu0
        %v2321 = vadd.f32 %v2065, %v2320
        %v2322 = vpop.f32.mrb[0].mxu0
        %v2323 = vpop.f32.mrb[0].mxu0
        %v2324 = vadd.f32 %v2065, %v2323
        %v2325 = vpop.f32.mrb[0].mxu0
        %2326 = vmatprep.mubr.bf16.mxu0 0
        %2327 = vmatmul.mubr.bf16.gmra.mrb[0].mxu0 %v2017
        %v2328 = vpop.f32.mrb[0].mxu0
        %v2329 = vadd.f32 %v2065, %v2328
        %v2330 = vpop.f32.mrb[0].mxu0
        %v2331 = vpop.f32.mrb[0].mxu0
        %v2332 = vadd.f32 %v2065, %v2331
        %v2333 = vpop.f32.mrb[0].mxu0
        %2334 = vdwg.mxu0
        %v2335 = vpack.c.bf16 %v2236, %v2232
        %v2336 = vpack.c.bf16 %v2246, %v2242
        %v2337 = vpack.c.bf16 %v2256, %v2252
        %v2338 = vpack.c.bf16 %v2266, %v2262
        %v2339 = vpack.c.bf16 %v2238, %v2234
        %v2340 = vpack.c.bf16 %v2248, %v2244
        %v2341 = vpack.c.bf16 %v2258, %v2254
        %v2342 = vpack.c.bf16 %v2268, %v2264
        %v2343 = vpack.c.bf16 %v2308, %v2305
        %v2344 = vpack.c.bf16 %v2316, %v2313
        %v2345 = vpack.c.bf16 %v2324, %v2321
        %v2346 = vpack.c.bf16 %v2332, %v2329
        %2347 = vmatprep.subr.bf16.mxu0 0
        %2348 = vmatpush1.bf16.xpose.msra.mxu0 %v2339
        %2349 = vmatprep.subr.bf16.mxu0 0
        %2350 = vmatpush1.bf16.xpose.msra.mxu0 0
        %2351 = vmatprep.subr.bf16.mxu0 0
        %2352 = vmatpush1.bf16.xpose.msra.mxu0 0
        %2353 = vmatprep.subr.bf16.mxu0 0
        %2354 = vmatpush1.bf16.xpose.msra.mxu0 0
        %2355 = vmatprep.subr.bf16.mxu0 0
        %2356 = vmatpush1.bf16.xpose.msra.mxu0 0
        %2357 = vmatprep.subr.bf16.mxu0 0
        %2358 = vmatpush1.bf16.xpose.msra.mxu0 0
        %2359 = vmatprep.subr.bf16.mxu0 0
        %2360 = vmatpush1.bf16.xpose.msra.mxu0 0
        %2361 = vmatprep.subr.bf16.mxu0 0
        %2362 = vmatpush1.bf16.xpose.msra.mxu0 0
        %2363 = vmatprep.subr.bf16.mxu0 0
        %2364 = vmatpush1.bf16.xpose.msra.mxu0 0
        %2365 = vmatprep.subr.bf16.mxu0 0
        %2366 = vmatpush1.bf16.xpose.msra.mxu0 0
        %2367 = vmatprep.subr.bf16.mxu0 0
        %2368 = vmatpush1.bf16.xpose.msra.mxu0 0
        %2369 = vmatprep.subr.bf16.mxu0 0
        %2370 = vmatpush1.bf16.xpose.msra.mxu0 0
        %2371 = vmatprep.subr.bf16.mxu0 0
        %2372 = vmatpush1.bf16.xpose.msra.mxu0 0
        %2373 = vmatprep.subr.bf16.mxu0 0
        %2374 = vmatpush1.bf16.xpose.msra.mxu0 0
        %2375 = vmatprep.subr.bf16.mxu0 0
        %2376 = vmatpush1.bf16.xpose.msra.mxu0 0
        %2377 = vmatprep.subr.bf16.mxu0 0
        %2378 = vmatpush1.bf16.xpose.msra.mxu0 0
        %2379 = vmatprep.mubr.bf16.mxu0 0
        %2380 = vmatmul.mubr.bf16.gmra.mrb[0].mxu0 %v2335
        %v2381 = vpop.f32.mrb[0].mxu0
        %v2382 = vadd.f32 0.0, %v2381
        %v2383 = vpop.f32.mrb[0].mxu0
        %v2384 = vpop.f32.mrb[0].mxu0
        %v2385 = vadd.f32 0.0, %v2384
        %v2386 = vpop.f32.mrb[0].mxu0
        %2387 = vdwg.mxu0
        %2388 = vmatprep.subr.bf16.mxu0 0
        %2389 = vmatpush1.bf16.xpose.msra.mxu0 %v2340
        %2390 = vmatprep.subr.bf16.mxu0 0
        %2391 = vmatpush1.bf16.xpose.msra.mxu0 0
        %2392 = vmatprep.subr.bf16.mxu0 0
        %2393 = vmatpush1.bf16.xpose.msra.mxu0 0
        %2394 = vmatprep.subr.bf16.mxu0 0
        %2395 = vmatpush1.bf16.xpose.msra.mxu0 0
        %2396 = vmatprep.subr.bf16.mxu0 0
        %2397 = vmatpush1.bf16.xpose.msra.mxu0 0
        %2398 = vmatprep.subr.bf16.mxu0 0
        %2399 = vmatpush1.bf16.xpose.msra.mxu0 0
        %2400 = vmatprep.subr.bf16.mxu0 0
        %2401 = vmatpush1.bf16.xpose.msra.mxu0 0
        %2402 = vmatprep.subr.bf16.mxu0 0
        %2403 = vmatpush1.bf16.xpose.msra.mxu0 0
        %2404 = vmatprep.subr.bf16.mxu0 0
        %2405 = vmatpush1.bf16.xpose.msra.mxu0 0
        %2406 = vmatprep.subr.bf16.mxu0 0
        %2407 = vmatpush1.bf16.xpose.msra.mxu0 0
        %2408 = vmatprep.subr.bf16.mxu0 0
        %2409 = vmatpush1.bf16.xpose.msra.mxu0 0
        %2410 = vmatprep.subr.bf16.mxu0 0
        %2411 = vmatpush1.bf16.xpose.msra.mxu0 0
        %2412 = vmatprep.subr.bf16.mxu0 0
        %2413 = vmatpush1.bf16.xpose.msra.mxu0 0
        %2414 = vmatprep.subr.bf16.mxu0 0
        %2415 = vmatpush1.bf16.xpose.msra.mxu0 0
        %2416 = vmatprep.subr.bf16.mxu0 0
        %2417 = vmatpush1.bf16.xpose.msra.mxu0 0
        %2418 = vmatprep.subr.bf16.mxu0 0
        %2419 = vmatpush1.bf16.xpose.msra.mxu0 0
        %2420 = vmatprep.mubr.bf16.mxu0 0
        %2421 = vmatmul.mubr.bf16.gmra.mrb[0].mxu0 %v2336
        %v2422 = vpop.f32.mrb[0].mxu0
        %v2423 = vadd.f32 0.0, %v2422
        %v2424 = vpop.f32.mrb[0].mxu0
        %v2425 = vpop.f32.mrb[0].mxu0
        %v2426 = vadd.f32 0.0, %v2425
        %v2427 = vpop.f32.mrb[0].mxu0
        %2428 = vdwg.mxu0
        %2429 = vmatprep.subr.bf16.mxu0 0
        %2430 = vmatpush1.bf16.xpose.msra.mxu0 %v2341
        %2431 = vmatprep.subr.bf16.mxu0 0
        %2432 = vmatpush1.bf16.xpose.msra.mxu0 0
        %2433 = vmatprep.subr.bf16.mxu0 0
        %2434 = vmatpush1.bf16.xpose.msra.mxu0 0
        %2435 = vmatprep.subr.bf16.mxu0 0
        %2436 = vmatpush1.bf16.xpose.msra.mxu0 0
        %2437 = vmatprep.subr.bf16.mxu0 0
        %2438 = vmatpush1.bf16.xpose.msra.mxu0 0
        %2439 = vmatprep.subr.bf16.mxu0 0
        %2440 = vmatpush1.bf16.xpose.msra.mxu0 0
        %2441 = vmatprep.subr.bf16.mxu0 0
        %2442 = vmatpush1.bf16.xpose.msra.mxu0 0
        %2443 = vmatprep.subr.bf16.mxu0 0
        %2444 = vmatpush1.bf16.xpose.msra.mxu0 0
        %2445 = vmatprep.subr.bf16.mxu0 0
        %2446 = vmatpush1.bf16.xpose.msra.mxu0 0
        %2447 = vmatprep.subr.bf16.mxu0 0
        %2448 = vmatpush1.bf16.xpose.msra.mxu0 0
        %2449 = vmatprep.subr.bf16.mxu0 0
        %2450 = vmatpush1.bf16.xpose.msra.mxu0 0
        %2451 = vmatprep.subr.bf16.mxu0 0
        %2452 = vmatpush1.bf16.xpose.msra.mxu0 0
        %2453 = vmatprep.subr.bf16.mxu0 0
        %2454 = vmatpush1.bf16.xpose.msra.mxu0 0
        %2455 = vmatprep.subr.bf16.mxu0 0
        %2456 = vmatpush1.bf16.xpose.msra.mxu0 0
        %2457 = vmatprep.subr.bf16.mxu0 0
        %2458 = vmatpush1.bf16.xpose.msra.mxu0 0
        %2459 = vmatprep.subr.bf16.mxu0 0
        %2460 = vmatpush1.bf16.xpose.msra.mxu0 0
        %2461 = vmatprep.mubr.bf16.mxu0 0
        %2462 = vmatmul.mubr.bf16.gmra.mrb[0].mxu0 %v2337
        %v2463 = vpop.f32.mrb[0].mxu0
        %v2464 = vadd.f32 0.0, %v2463
        %v2465 = vpop.f32.mrb[0].mxu0
        %v2466 = vpop.f32.mrb[0].mxu0
        %v2467 = vadd.f32 0.0, %v2466
        %v2468 = vpop.f32.mrb[0].mxu0
        %2469 = vdwg.mxu0
        %2470 = vmatprep.subr.bf16.mxu0 0
        %2471 = vmatpush1.bf16.xpose.msra.mxu0 %v2342
        %2472 = vmatprep.subr.bf16.mxu0 0
        %2473 = vmatpush1.bf16.xpose.msra.mxu0 0
        %2474 = vmatprep.subr.bf16.mxu0 0
        %2475 = vmatpush1.bf16.xpose.msra.mxu0 0
        %2476 = vmatprep.subr.bf16.mxu0 0
        %2477 = vmatpush1.bf16.xpose.msra.mxu0 0
        %2478 = vmatprep.subr.bf16.mxu0 0
        %2479 = vmatpush1.bf16.xpose.msra.mxu0 0
        %2480 = vmatprep.subr.bf16.mxu0 0
        %2481 = vmatpush1.bf16.xpose.msra.mxu0 0
        %2482 = vmatprep.subr.bf16.mxu0 0
        %2483 = vmatpush1.bf16.xpose.msra.mxu0 0
        %2484 = vmatprep.subr.bf16.mxu0 0
        %2485 = vmatpush1.bf16.xpose.msra.mxu0 0
        %2486 = vmatprep.subr.bf16.mxu0 0
        %2487 = vmatpush1.bf16.xpose.msra.mxu0 0
        %2488 = vmatprep.subr.bf16.mxu0 0
        %2489 = vmatpush1.bf16.xpose.msra.mxu0 0
        %2490 = vmatprep.subr.bf16.mxu0 0
        %2491 = vmatpush1.bf16.xpose.msra.mxu0 0
        %2492 = vmatprep.subr.bf16.mxu0 0
        %2493 = vmatpush1.bf16.xpose.msra.mxu0 0
        %2494 = vmatprep.subr.bf16.mxu0 0
        %2495 = vmatpush1.bf16.xpose.msra.mxu0 0
        %2496 = vmatprep.subr.bf16.mxu0 0
        %2497 = vmatpush1.bf16.xpose.msra.mxu0 0
        %2498 = vmatprep.subr.bf16.mxu0 0
        %2499 = vmatpush1.bf16.xpose.msra.mxu0 0
        %2500 = vmatprep.subr.bf16.mxu0 0
        %2501 = vmatpush1.bf16.xpose.msra.mxu0 0
        %2502 = vmatprep.mubr.bf16.mxu0 0
        %2503 = vmatmul.mubr.bf16.gmra.mrb[0].mxu0 %v2338
        %v2504 = vpop.f32.mrb[0].mxu0
        %v2505 = vadd.f32 0.0, %v2504
        %v2506 = vpop.f32.mrb[0].mxu0
        %v2507 = vpop.f32.mrb[0].mxu0
        %v2508 = vadd.f32 0.0, %v2507
        %v2509 = vpop.f32.mrb[0].mxu0
        %2510 = vdwg.mxu0
        %v2511 = vmul.f32 %v2382, 0.088388346
        %v2512 = vmul.f32 %v2385, 0.088388346
        %v2513 = vmul.f32 %v2423, 0.088388346
        %v2514 = vmul.f32 %v2426, 0.088388346
        %v2515 = vmul.f32 %v2464, 0.088388346
        %v2516 = vmul.f32 %v2467, 0.088388346
        %v2517 = vmul.f32 %v2505, 0.088388346
        %v2518 = vmul.f32 %v2508, 0.088388346
        %v2519 = vsel %vm972, %v2511, -inf
        %2520 = vmax.xlane.f32.xlu0 %v2519
        %v2521 = vpop.xlane.xlu0 %2520
        %v2522 = vsel %vm972, %v2512, -inf
        %2523 = vmax.xlane.f32.xlu0 %v2522
        %v2524 = vpop.xlane.xlu0 %2523
        %v2525 = vsel %vm972, %v2513, -inf
        %2526 = vmax.xlane.f32.xlu0 %v2525
        %v2527 = vpop.xlane.xlu0 %2526
        %v2528 = vsel %vm972, %v2514, -inf
        %2529 = vmax.xlane.f32.xlu0 %v2528
        %v2530 = vpop.xlane.xlu0 %2529
        %v2531 = vsel %vm972, %v2515, -inf
        %2532 = vmax.xlane.f32.xlu0 %v2531
        %v2533 = vpop.xlane.xlu0 %2532
        %v2534 = vsel %vm972, %v2516, -inf
        %2535 = vmax.xlane.f32.xlu0 %v2534
        %v2536 = vpop.xlane.xlu0 %2535
        %v2537 = vsel %vm972, %v2517, -inf
        %2538 = vmax.xlane.f32.xlu0 %v2537
        %v2539 = vpop.xlane.xlu0 %2538
        %v2540 = vsel %vm972, %v2518, -inf
        %2541 = vmax.xlane.f32.xlu0 %v2540
        %v2542 = vpop.xlane.xlu0 %2541
        %v2543 = vsub.f32 %v2511, %v2521
        %v2544 = vsub.f32 %v2512, %v2524
        %v2545 = vsub.f32 %v2513, %v2527
        %v2546 = vsub.f32 %v2514, %v2530
        %v2547 = vsub.f32 %v2515, %v2533
        %v2548 = vsub.f32 %v2516, %v2536
        %v2549 = vsub.f32 %v2517, %v2539
        %v2550 = vsub.f32 %v2518, %v2542
        %v2551 = vmul.f32 %v2543, 1.442695
        %v2552 = vpow.pop %v2551
        %v2553 = vmul.f32 %v2544, 1.442695
        %v2554 = vpow.pop %v2553
        %v2555 = vmul.f32 %v2545, 1.442695
        %v2556 = vpow.pop %v2555
        %v2557 = vmul.f32 %v2546, 1.442695
        %v2558 = vpow.pop %v2557
        %v2559 = vmul.f32 %v2547, 1.442695
        %v2560 = vpow.pop %v2559
        %v2561 = vmul.f32 %v2548, 1.442695
        %v2562 = vpow.pop %v2561
        %v2563 = vmul.f32 %v2549, 1.442695
        %v2564 = vpow.pop %v2563
        %v2565 = vmul.f32 %v2550, 1.442695
        %v2566 = vpow.pop %v2565
        %v2567 = vsel %vm972, %v2552, 0.0
        %2568 = vadd.xlane.f32.xlu0 %v2567
        %v2569 = vpop.xlane.xlu0 %2568
        %v2570 = vsel %vm972, %v2554, 0.0
        %2571 = vadd.xlane.f32.xlu0 %v2570
        %v2572 = vpop.xlane.xlu0 %2571
        %v2573 = vsel %vm972, %v2556, 0.0
        %2574 = vadd.xlane.f32.xlu0 %v2573
        %v2575 = vpop.xlane.xlu0 %2574
        %v2576 = vsel %vm972, %v2558, 0.0
        %2577 = vadd.xlane.f32.xlu0 %v2576
        %v2578 = vpop.xlane.xlu0 %2577
        %v2579 = vsel %vm972, %v2560, 0.0
        %2580 = vadd.xlane.f32.xlu0 %v2579
        %v2581 = vpop.xlane.xlu0 %2580
        %v2582 = vsel %vm972, %v2562, 0.0
        %2583 = vadd.xlane.f32.xlu0 %v2582
        %v2584 = vpop.xlane.xlu0 %2583
        %v2585 = vsel %vm972, %v2564, 0.0
        %2586 = vadd.xlane.f32.xlu0 %v2585
        %v2587 = vpop.xlane.xlu0 %2586
        %v2588 = vsel %vm972, %v2566, 0.0
        %2589 = vadd.xlane.f32.xlu0 %v2588
        %v2590 = vpop.xlane.xlu0 %2589
        %v2591 = vrcp.pop %v2569
        %v2592 = vmul.f32 %v2552, %v2591
        %v2593 = vrcp.pop %v2572
        %v2594 = vmul.f32 %v2554, %v2593
        %v2595 = vrcp.pop %v2575
        %v2596 = vmul.f32 %v2556, %v2595
        %v2597 = vrcp.pop %v2578
        %v2598 = vmul.f32 %v2558, %v2597
        %v2599 = vrcp.pop %v2581
        %v2600 = vmul.f32 %v2560, %v2599
        %v2601 = vrcp.pop %v2584
        %v2602 = vmul.f32 %v2562, %v2601
        %v2603 = vrcp.pop %v2587
        %v2604 = vmul.f32 %v2564, %v2603
        %v2605 = vrcp.pop %v2590
        %v2606 = vmul.f32 %v2566, %v2605
        %v2607 = vpack.c.bf16 %v2594, %v2592
        %v2608 = vpack.c.bf16 %v2598, %v2596
        %v2609 = vpack.c.bf16 %v2602, %v2600
        %v2610 = vpack.c.bf16 %v2606, %v2604
        %v2612 = vsel %vm972, %v2607, 0
        %2614 = vmatprep.subr.bf16.mxu0 0
        %2615 = vmatpush1.bf16.msra.mxu0 %v2343
        %2616 = vmatprep.subr.bf16.mxu0 0
        %2617 = vmatpush1.bf16.msra.mxu0 0
        %2618 = vmatprep.subr.bf16.mxu0 0
        %2619 = vmatpush1.bf16.msra.mxu0 0
        %2620 = vmatprep.subr.bf16.mxu0 0
        %2621 = vmatpush1.bf16.msra.mxu0 0
        %2622 = vmatprep.subr.bf16.mxu0 0
        %2623 = vmatpush1.bf16.msra.mxu0 0
        %2624 = vmatprep.subr.bf16.mxu0 0
        %2625 = vmatpush1.bf16.msra.mxu0 0
        %2626 = vmatprep.subr.bf16.mxu0 0
        %2627 = vmatpush1.bf16.msra.mxu0 0
        %2628 = vmatprep.subr.bf16.mxu0 0
        %2629 = vmatpush1.bf16.msra.mxu0 0
        %2630 = vmatprep.subr.bf16.mxu0 0
        %2631 = vmatpush1.bf16.msra.mxu0 0
        %2632 = vmatprep.subr.bf16.mxu0 0
        %2633 = vmatpush1.bf16.msra.mxu0 0
        %2634 = vmatprep.subr.bf16.mxu0 0
        %2635 = vmatpush1.bf16.msra.mxu0 0
        %2636 = vmatprep.subr.bf16.mxu0 0
        %2637 = vmatpush1.bf16.msra.mxu0 0
        %2638 = vmatprep.subr.bf16.mxu0 0
        %2639 = vmatpush1.bf16.msra.mxu0 0
        %2640 = vmatprep.subr.bf16.mxu0 0
        %2641 = vmatpush1.bf16.msra.mxu0 0
        %2642 = vmatprep.subr.bf16.mxu0 0
        %2643 = vmatpush1.bf16.msra.mxu0 0
        %2644 = vmatprep.subr.bf16.mxu0 0
        %2645 = vmatpush1.bf16.msra.mxu0 0
        %2646 = vmatprep.mubr.bf16.mxu0 0
        %2647 = vmatmul.mubr.bf16.gmra.mrb[0].mxu0 %v2612
        %v2648 = vpop.f32.mrb[0].mxu0
        %v2649 = vadd.f32 0.0, %v2648
        %v2650 = vpop.f32.mrb[0].mxu0
        %v2651 = vpop.f32.mrb[0].mxu0
        %v2652 = vadd.f32 0.0, %v2651
        %v2653 = vpop.f32.mrb[0].mxu0
        %2654 = vdwg.mxu0
        %v2656 = vsel %vm972, %v2608, 0
        %2658 = vmatprep.subr.bf16.mxu0 0
        %2659 = vmatpush1.bf16.msra.mxu0 %v2344
        %2660 = vmatprep.subr.bf16.mxu0 0
        %2661 = vmatpush1.bf16.msra.mxu0 0
        %2662 = vmatprep.subr.bf16.mxu0 0
        %2663 = vmatpush1.bf16.msra.mxu0 0
        %2664 = vmatprep.subr.bf16.mxu0 0
        %2665 = vmatpush1.bf16.msra.mxu0 0
        %2666 = vmatprep.subr.bf16.mxu0 0
        %2667 = vmatpush1.bf16.msra.mxu0 0
        %2668 = vmatprep.subr.bf16.mxu0 0
        %2669 = vmatpush1.bf16.msra.mxu0 0
        %2670 = vmatprep.subr.bf16.mxu0 0
        %2671 = vmatpush1.bf16.msra.mxu0 0
        %2672 = vmatprep.subr.bf16.mxu0 0
        %2673 = vmatpush1.bf16.msra.mxu0 0
        %2674 = vmatprep.subr.bf16.mxu0 0
        %2675 = vmatpush1.bf16.msra.mxu0 0
        %2676 = vmatprep.subr.bf16.mxu0 0
        %2677 = vmatpush1.bf16.msra.mxu0 0
        %2678 = vmatprep.subr.bf16.mxu0 0
        %2679 = vmatpush1.bf16.msra.mxu0 0
        %2680 = vmatprep.subr.bf16.mxu0 0
        %2681 = vmatpush1.bf16.msra.mxu0 0
        %2682 = vmatprep.subr.bf16.mxu0 0
        %2683 = vmatpush1.bf16.msra.mxu0 0
        %2684 = vmatprep.subr.bf16.mxu0 0
        %2685 = vmatpush1.bf16.msra.mxu0 0
        %2686 = vmatprep.subr.bf16.mxu0 0
        %2687 = vmatpush1.bf16.msra.mxu0 0
        %2688 = vmatprep.subr.bf16.mxu0 0
        %2689 = vmatpush1.bf16.msra.mxu0 0
        %2690 = vmatprep.mubr.bf16.mxu0 0
        %2691 = vmatmul.mubr.bf16.gmra.mrb[0].mxu0 %v2656
        %v2692 = vpop.f32.mrb[0].mxu0
        %v2693 = vadd.f32 0.0, %v2692
        %v2694 = vpop.f32.mrb[0].mxu0
        %v2695 = vpop.f32.mrb[0].mxu0
        %v2696 = vadd.f32 0.0, %v2695
        %v2697 = vpop.f32.mrb[0].mxu0
        %2698 = vdwg.mxu0
        %v2700 = vsel %vm972, %v2609, 0
        %2702 = vmatprep.subr.bf16.mxu0 0
        %2703 = vmatpush1.bf16.msra.mxu0 %v2345
        %2704 = vmatprep.subr.bf16.mxu0 0
        %2705 = vmatpush1.bf16.msra.mxu0 0
        %2706 = vmatprep.subr.bf16.mxu0 0
        %2707 = vmatpush1.bf16.msra.mxu0 0
        %2708 = vmatprep.subr.bf16.mxu0 0
        %2709 = vmatpush1.bf16.msra.mxu0 0
        %2710 = vmatprep.subr.bf16.mxu0 0
        %2711 = vmatpush1.bf16.msra.mxu0 0
        %2712 = vmatprep.subr.bf16.mxu0 0
        %2713 = vmatpush1.bf16.msra.mxu0 0
        %2714 = vmatprep.subr.bf16.mxu0 0
        %2715 = vmatpush1.bf16.msra.mxu0 0
        %2716 = vmatprep.subr.bf16.mxu0 0
        %2717 = vmatpush1.bf16.msra.mxu0 0
        %2718 = vmatprep.subr.bf16.mxu0 0
        %2719 = vmatpush1.bf16.msra.mxu0 0
        %2720 = vmatprep.subr.bf16.mxu0 0
        %2721 = vmatpush1.bf16.msra.mxu0 0
        %2722 = vmatprep.subr.bf16.mxu0 0
        %2723 = vmatpush1.bf16.msra.mxu0 0
        %2724 = vmatprep.subr.bf16.mxu0 0
        %2725 = vmatpush1.bf16.msra.mxu0 0
        %2726 = vmatprep.subr.bf16.mxu0 0
        %2727 = vmatpush1.bf16.msra.mxu0 0
        %2728 = vmatprep.subr.bf16.mxu0 0
        %2729 = vmatpush1.bf16.msra.mxu0 0
        %2730 = vmatprep.subr.bf16.mxu0 0
        %2731 = vmatpush1.bf16.msra.mxu0 0
        %2732 = vmatprep.subr.bf16.mxu0 0
        %2733 = vmatpush1.bf16.msra.mxu0 0
        %2734 = vmatprep.mubr.bf16.mxu0 0
        %2735 = vmatmul.mubr.bf16.gmra.mrb[0].mxu0 %v2700
        %v2736 = vpop.f32.mrb[0].mxu0
        %v2737 = vadd.f32 0.0, %v2736
        %v2738 = vpop.f32.mrb[0].mxu0
        %v2739 = vpop.f32.mrb[0].mxu0
        %v2740 = vadd.f32 0.0, %v2739
        %v2741 = vpop.f32.mrb[0].mxu0
        %2742 = vdwg.mxu0
        %v2744 = vsel %vm972, %v2610, 0
        %2746 = vmatprep.subr.bf16.mxu0 0
        %2747 = vmatpush1.bf16.msra.mxu0 %v2346
        %2748 = vmatprep.subr.bf16.mxu0 0
        %2749 = vmatpush1.bf16.msra.mxu0 0
        %2750 = vmatprep.subr.bf16.mxu0 0
        %2751 = vmatpush1.bf16.msra.mxu0 0
        %2752 = vmatprep.subr.bf16.mxu0 0
        %2753 = vmatpush1.bf16.msra.mxu0 0
        %2754 = vmatprep.subr.bf16.mxu0 0
        %2755 = vmatpush1.bf16.msra.mxu0 0
        %2756 = vmatprep.subr.bf16.mxu0 0
        %2757 = vmatpush1.bf16.msra.mxu0 0
        %2758 = vmatprep.subr.bf16.mxu0 0
        %2759 = vmatpush1.bf16.msra.mxu0 0
        %2760 = vmatprep.subr.bf16.mxu0 0
        %2761 = vmatpush1.bf16.msra.mxu0 0
        %2762 = vmatprep.subr.bf16.mxu0 0
        %2763 = vmatpush1.bf16.msra.mxu0 0
        %2764 = vmatprep.subr.bf16.mxu0 0
        %2765 = vmatpush1.bf16.msra.mxu0 0
        %2766 = vmatprep.subr.bf16.mxu0 0
        %2767 = vmatpush1.bf16.msra.mxu0 0
        %2768 = vmatprep.subr.bf16.mxu0 0
        %2769 = vmatpush1.bf16.msra.mxu0 0
        %2770 = vmatprep.subr.bf16.mxu0 0
        %2771 = vmatpush1.bf16.msra.mxu0 0
        %2772 = vmatprep.subr.bf16.mxu0 0
        %2773 = vmatpush1.bf16.msra.mxu0 0
        %2774 = vmatprep.subr.bf16.mxu0 0
        %2775 = vmatpush1.bf16.msra.mxu0 0
        %2776 = vmatprep.subr.bf16.mxu0 0
        %2777 = vmatpush1.bf16.msra.mxu0 0
        %2778 = vmatprep.mubr.bf16.mxu0 0
        %2779 = vmatmul.mubr.bf16.gmra.mrb[0].mxu0 %v2744
        %v2780 = vpop.f32.mrb[0].mxu0
        %v2781 = vadd.f32 0.0, %v2780
        %v2782 = vpop.f32.mrb[0].mxu0
        %v2783 = vpop.f32.mrb[0].mxu0
        %v2784 = vadd.f32 0.0, %v2783
        %v2785 = vpop.f32.mrb[0].mxu0
        %2786 = vdwg.mxu0
        %v2787 = vpack.c.bf16 %v2652, %v2649
        %v2788 = vpack.c.bf16 %v2696, %v2693
        %v2789 = vpack.c.bf16 %v2740, %v2737
        %v2790 = vpack.c.bf16 %v2784, %v2781
        %s2791 = scalar_lea.vmem [#allocation5], 576
        %v2792 = vld [vmem:[%s2791] sm:$0xff]
        %v2793 = vld [vmem:[%s2791 + $0x8] sm:$0xf]
        %v2794 = vld [vmem:[%s2791 + $0xc] sm:$0xff]
        %v2795 = vld [vmem:[%s2791 + $0x14] sm:$0xf]
        %v2796 = vld [vmem:[%s2791 + $0x18] sm:$0xff]
        %v2797 = vld [vmem:[%s2791 + $0x20] sm:$0xf]
        %v2798 = vld [vmem:[%s2791 + $0x24] sm:$0xff]
        %v2799 = vld [vmem:[%s2791 + $0x2c] sm:$0xf]
        %v2800 = vld [vmem:[%s2791 + $0x30] sm:$0xff]
        %v2801 = vld [vmem:[%s2791 + $0x38] sm:$0xf]
        %v2802 = vld [vmem:[%s2791 + $0x3c] sm:$0xff]
        %v2803 = vld [vmem:[%s2791 + $0x44] sm:$0xf]
        %v2804 = vld [vmem:[%s2791 + $0x48] sm:$0xff]
        %v2805 = vld [vmem:[%s2791 + $0x50] sm:$0xf]
        %v2806 = vld [vmem:[%s2791 + $0x54] sm:$0xff]
        %v2807 = vld [vmem:[%s2791 + $0x5c] sm:$0xf]
        %v2808 = vld [vmem:[%s2791 + $0x60] sm:$0xff]
        %v2809 = vld [vmem:[%s2791 + $0x68] sm:$0xf]
        %v2810 = vld [vmem:[%s2791 + $0x6c] sm:$0xff]
        %v2811 = vld [vmem:[%s2791 + $0x74] sm:$0xf]
        %v2812 = vld [vmem:[%s2791 + $0x78] sm:$0xff]
        %v2813 = vld [vmem:[%s2791 + $0x80] sm:$0xf]
        %v2814 = vld [vmem:[%s2791 + $0x84] sm:$0xff]
        %v2815 = vld [vmem:[%s2791 + $0x8c] sm:$0xf]
        %v2816 = vld [vmem:[%s2791 + $0x90] sm:$0xff]
        %v2817 = vld [vmem:[%s2791 + $0x98] sm:$0xf]
        %v2818 = vld [vmem:[%s2791 + $0x9c] sm:$0xff]
        %v2819 = vld [vmem:[%s2791 + $0xa4] sm:$0xf]
        %v2820 = vld [vmem:[%s2791 + $0xa8] sm:$0xff]
        %v2821 = vld [vmem:[%s2791 + $0xb0] sm:$0xf]
        %v2822 = vld [vmem:[%s2791 + $0xb4] sm:$0xff]
        %v2823 = vld [vmem:[%s2791 + $0xbc] sm:$0xf]
        %s2824 = scalar_lea.vmem %s4, 9
        %v2825 = vld [vmem:[%s2824] sm:$0x7]
        %v2827 = vlaneseq
        %v2828 = vshrl.u32 %v2827, 7
        %v2829 = vsub.s32 0, %v2828
        %v2830 = vrot.slane %v2825, %v2829
        %v2831 = vlaneseq
        %v2832 = vshrl.u32 %v2831, 7
        %v2833 = vsub.s32 1, %v2832
        %v2834 = vrot.slane %v2825, %v2833
        %v2835 = vlaneseq
        %v2836 = vshrl.u32 %v2835, 7
        %v2837 = vsub.s32 2, %v2836
        %v2838 = vrot.slane %v2825, %v2837
        %v2874 = vunpack.c.l.b16 %v2792
        %v2875 = vunpack.c.h.b16 %v2792
        %v2876 = vunpack.c.l.b16 %v2793
        %v2877 = vunpack.c.l.b16 %v2794
        %v2878 = vunpack.c.h.b16 %v2794
        %v2879 = vunpack.c.l.b16 %v2795
        %v2880 = vunpack.c.l.b16 %v2796
        %v2881 = vunpack.c.h.b16 %v2796
        %v2882 = vunpack.c.l.b16 %v2797
        %v2883 = vunpack.c.l.b16 %v2798
        %v2884 = vunpack.c.h.b16 %v2798
        %v2885 = vunpack.c.l.b16 %v2799
        %v2886 = vunpack.c.l.b16 %v2800
        %v2887 = vunpack.c.h.b16 %v2800
        %v2888 = vunpack.c.l.b16 %v2801
        %v2889 = vunpack.c.l.b16 %v2802
        %v2890 = vunpack.c.h.b16 %v2802
        %v2891 = vunpack.c.l.b16 %v2803
        %v2892 = vunpack.c.l.b16 %v2804
        %v2893 = vunpack.c.h.b16 %v2804
        %v2894 = vunpack.c.l.b16 %v2805
        %v2895 = vunpack.c.l.b16 %v2806
        %v2896 = vunpack.c.h.b16 %v2806
        %v2897 = vunpack.c.l.b16 %v2807
        %v2898 = vunpack.c.l.b16 %v2808
        %v2899 = vunpack.c.h.b16 %v2808
        %v2900 = vunpack.c.l.b16 %v2809
        %v2901 = vunpack.c.l.b16 %v2810
        %v2902 = vunpack.c.h.b16 %v2810
        %v2903 = vunpack.c.l.b16 %v2811
        %v2904 = vunpack.c.l.b16 %v2812
        %v2905 = vunpack.c.h.b16 %v2812
        %v2906 = vunpack.c.l.b16 %v2813
        %v2907 = vunpack.c.l.b16 %v2814
        %v2908 = vunpack.c.h.b16 %v2814
        %v2909 = vunpack.c.l.b16 %v2815
        %v2910 = vunpack.c.l.b16 %v2816
        %v2911 = vunpack.c.h.b16 %v2816
        %v2912 = vunpack.c.l.b16 %v2817
        %v2913 = vunpack.c.l.b16 %v2818
        %v2914 = vunpack.c.h.b16 %v2818
        %v2915 = vunpack.c.l.b16 %v2819
        %v2916 = vunpack.c.l.b16 %v2820
        %v2917 = vunpack.c.h.b16 %v2820
        %v2918 = vunpack.c.l.b16 %v2821
        %v2919 = vunpack.c.l.b16 %v2822
        %v2920 = vunpack.c.h.b16 %v2822
        %v2921 = vunpack.c.l.b16 %v2823
        %v2922 = vpack.c.b16 %v2877, %v2874
        %v2923 = vpack.c.b16 %v2878, %v2875
        %v2924 = vpack.c.b16 %v2879, %v2876
        %v2925 = vpack.c.b16 %v2883, %v2880
        %v2926 = vpack.c.b16 %v2884, %v2881
        %v2927 = vpack.c.b16 %v2885, %v2882
        %v2928 = vpack.c.b16 %v2889, %v2886
        %v2929 = vpack.c.b16 %v2890, %v2887
        %v2930 = vpack.c.b16 %v2891, %v2888
        %v2931 = vpack.c.b16 %v2895, %v2892
        %v2932 = vpack.c.b16 %v2896, %v2893
        %v2933 = vpack.c.b16 %v2897, %v2894
        %v2934 = vpack.c.b16 %v2901, %v2898
        %v2935 = vpack.c.b16 %v2902, %v2899
        %v2936 = vpack.c.b16 %v2903, %v2900
        %v2937 = vpack.c.b16 %v2907, %v2904
        %v2938 = vpack.c.b16 %v2908, %v2905
        %v2939 = vpack.c.b16 %v2909, %v2906
        %v2940 = vpack.c.b16 %v2913, %v2910
        %v2941 = vpack.c.b16 %v2914, %v2911
        %v2942 = vpack.c.b16 %v2915, %v2912
        %v2943 = vpack.c.b16 %v2919, %v2916
        %v2944 = vpack.c.b16 %v2920, %v2917
        %v2945 = vpack.c.b16 %v2921, %v2918
        %2970 = vmatprep.subr.bf16.mxu0 %v2923
        %2971 = vmatpush1.bf16.msra.mxu0 %v2922
        %2972 = vmatprep.subr.bf16.mxu0 %v2926
        %2973 = vmatpush1.bf16.msra.mxu0 %v2925
        %2974 = vmatprep.subr.bf16.mxu0 %v2929
        %2975 = vmatpush1.bf16.msra.mxu0 %v2928
        %2976 = vmatprep.subr.bf16.mxu0 %v2932
        %2977 = vmatpush1.bf16.msra.mxu0 %v2931
        %2978 = vmatprep.subr.bf16.mxu0 %v2935
        %2979 = vmatpush1.bf16.msra.mxu0 %v2934
        %2980 = vmatprep.subr.bf16.mxu0 %v2938
        %2981 = vmatpush1.bf16.msra.mxu0 %v2937
        %2982 = vmatprep.subr.bf16.mxu0 %v2941
        %2983 = vmatpush1.bf16.msra.mxu0 %v2940
        %2984 = vmatprep.subr.bf16.mxu0 %v2944
        %2985 = vmatpush1.bf16.msra.mxu0 %v2943
        %2986 = vmatprep.subr.bf16.mxu0 0
        %2987 = vmatpush1.bf16.msra.mxu0 0
        %2988 = vmatprep.subr.bf16.mxu0 0
        %2989 = vmatpush1.bf16.msra.mxu0 0
        %2990 = vmatprep.subr.bf16.mxu0 0
        %2991 = vmatpush1.bf16.msra.mxu0 0
        %2992 = vmatprep.subr.bf16.mxu0 0
        %2993 = vmatpush1.bf16.msra.mxu0 0
        %2994 = vmatprep.subr.bf16.mxu0 0
        %2995 = vmatpush1.bf16.msra.mxu0 0
        %2996 = vmatprep.subr.bf16.mxu0 0
        %2997 = vmatpush1.bf16.msra.mxu0 0
        %2998 = vmatprep.subr.bf16.mxu0 0
        %2999 = vmatpush1.bf16.msra.mxu0 0
        %3000 = vmatprep.subr.bf16.mxu0 0
        %3001 = vmatpush1.bf16.msra.mxu0 0
        %3002 = vmatprep.mubr.bf16.mxu0 0
        %3003 = vmatmul.mubr.bf16.gmra.mrb[0].mxu0 %v2787
        %v3004 = vpop.f32.mrb[0].mxu0
        %v3005 = vadd.f32 %v2830, %v3004
        %v3006 = vpop.f32.mrb[0].mxu0
        %v3007 = vadd.f32 %v2834, %v3006
        %v3008 = vpop.f32.mrb[0].mxu0
        %v3009 = vadd.f32 %v2830, %v3008
        %v3010 = vpop.f32.mrb[0].mxu0
        %v3011 = vadd.f32 %v2834, %v3010
        %3012 = vmatprep.mubr.bf16.mxu0 0
        %3013 = vmatmul.mubr.bf16.gmra.mrb[0].mxu0 %v2788
        %v3014 = vpop.f32.mrb[0].mxu0
        %v3015 = vadd.f32 %v2830, %v3014
        %v3016 = vpop.f32.mrb[0].mxu0
        %v3017 = vadd.f32 %v2834, %v3016
        %v3018 = vpop.f32.mrb[0].mxu0
        %v3019 = vadd.f32 %v2830, %v3018
        %v3020 = vpop.f32.mrb[0].mxu0
        %v3021 = vadd.f32 %v2834, %v3020
        %3022 = vmatprep.mubr.bf16.mxu0 0
        %3023 = vmatmul.mubr.bf16.gmra.mrb[0].mxu0 %v2789
        %v3024 = vpop.f32.mrb[0].mxu0
        %v3025 = vadd.f32 %v2830, %v3024
        %v3026 = vpop.f32.mrb[0].mxu0
        %v3027 = vadd.f32 %v2834, %v3026
        %v3028 = vpop.f32.mrb[0].mxu0
        %v3029 = vadd.f32 %v2830, %v3028
        %v3030 = vpop.f32.mrb[0].mxu0
        %v3031 = vadd.f32 %v2834, %v3030
        %3032 = vmatprep.mubr.bf16.mxu0 0
        %3033 = vmatmul.mubr.bf16.gmra.mrb[0].mxu0 %v2790
        %v3034 = vpop.f32.mrb[0].mxu0
        %v3035 = vadd.f32 %v2830, %v3034
        %v3036 = vpop.f32.mrb[0].mxu0
        %v3037 = vadd.f32 %v2834, %v3036
        %v3038 = vpop.f32.mrb[0].mxu0
        %v3039 = vadd.f32 %v2830, %v3038
        %v3040 = vpop.f32.mrb[0].mxu0
        %v3041 = vadd.f32 %v2834, %v3040
        %3042 = vdwg.mxu0
        %3043 = vmatprep.subr.bf16.mxu0 0
        %3044 = vmatpush1.bf16.msra.mxu0 %v2924
        %3045 = vmatprep.subr.bf16.mxu0 0
        %3046 = vmatpush1.bf16.msra.mxu0 %v2927
        %3047 = vmatprep.subr.bf16.mxu0 0
        %3048 = vmatpush1.bf16.msra.mxu0 %v2930
        %3049 = vmatprep.subr.bf16.mxu0 0
        %3050 = vmatpush1.bf16.msra.mxu0 %v2933
        %3051 = vmatprep.subr.bf16.mxu0 0
        %3052 = vmatpush1.bf16.msra.mxu0 %v2936
        %3053 = vmatprep.subr.bf16.mxu0 0
        %3054 = vmatpush1.bf16.msra.mxu0 %v2939
        %3055 = vmatprep.subr.bf16.mxu0 0
        %3056 = vmatpush1.bf16.msra.mxu0 %v2942
        %3057 = vmatprep.subr.bf16.mxu0 0
        %3058 = vmatpush1.bf16.msra.mxu0 %v2945
        %3059 = vmatprep.subr.bf16.mxu0 0
        %3060 = vmatpush1.bf16.msra.mxu0 0
        %3061 = vmatprep.subr.bf16.mxu0 0
        %3062 = vmatpush1.bf16.msra.mxu0 0
        %3063 = vmatprep.subr.bf16.mxu0 0
        %3064 = vmatpush1.bf16.msra.mxu0 0
        %3065 = vmatprep.subr.bf16.mxu0 0
        %3066 = vmatpush1.bf16.msra.mxu0 0
        %3067 = vmatprep.subr.bf16.mxu0 0
        %3068 = vmatpush1.bf16.msra.mxu0 0
        %3069 = vmatprep.subr.bf16.mxu0 0
        %3070 = vmatpush1.bf16.msra.mxu0 0
        %3071 = vmatprep.subr.bf16.mxu0 0
        %3072 = vmatpush1.bf16.msra.mxu0 0
        %3073 = vmatprep.subr.bf16.mxu0 0
        %3074 = vmatpush1.bf16.msra.mxu0 0
        %3075 = vmatprep.mubr.bf16.mxu0 0
        %3076 = vmatmul.mubr.bf16.gmra.mrb[0].mxu0 %v2787
        %v3077 = vpop.f32.mrb[0].mxu0
        %v3078 = vadd.f32 %v2838, %v3077
        %v3079 = vpop.f32.mrb[0].mxu0
        %v3080 = vpop.f32.mrb[0].mxu0
        %v3081 = vadd.f32 %v2838, %v3080
        %v3082 = vpop.f32.mrb[0].mxu0
        %3083 = vmatprep.mubr.bf16.mxu0 0
        %3084 = vmatmul.mubr.bf16.gmra.mrb[0].mxu0 %v2788
        %v3085 = vpop.f32.mrb[0].mxu0
        %v3086 = vadd.f32 %v2838, %v3085
        %v3087 = vpop.f32.mrb[0].mxu0
        %v3088 = vpop.f32.mrb[0].mxu0
        %v3089 = vadd.f32 %v2838, %v3088
        %v3090 = vpop.f32.mrb[0].mxu0
        %3091 = vmatprep.mubr.bf16.mxu0 0
        %3092 = vmatmul.mubr.bf16.gmra.mrb[0].mxu0 %v2789
        %v3093 = vpop.f32.mrb[0].mxu0
        %v3094 = vadd.f32 %v2838, %v3093
        %v3095 = vpop.f32.mrb[0].mxu0
        %v3096 = vpop.f32.mrb[0].mxu0
        %v3097 = vadd.f32 %v2838, %v3096
        %v3098 = vpop.f32.mrb[0].mxu0
        %3099 = vmatprep.mubr.bf16.mxu0 0
        %3100 = vmatmul.mubr.bf16.gmra.mrb[0].mxu0 %v2790
        %v3101 = vpop.f32.mrb[0].mxu0
        %v3102 = vadd.f32 %v2838, %v3101
        %v3103 = vpop.f32.mrb[0].mxu0
        %v3104 = vpop.f32.mrb[0].mxu0
        %v3105 = vadd.f32 %v2838, %v3104
        %v3106 = vpop.f32.mrb[0].mxu0
        %3107 = vdwg.mxu0
        %v3108 = vpack.c.bf16 %v3009, %v3005
        %v3109 = vpack.c.bf16 %v3019, %v3015
        %v3110 = vpack.c.bf16 %v3029, %v3025
        %v3111 = vpack.c.bf16 %v3039, %v3035
        %v3112 = vpack.c.bf16 %v3011, %v3007
        %v3113 = vpack.c.bf16 %v3021, %v3017
        %v3114 = vpack.c.bf16 %v3031, %v3027
        %v3115 = vpack.c.bf16 %v3041, %v3037
        %v3116 = vpack.c.bf16 %v3081, %v3078
        %v3117 = vpack.c.bf16 %v3089, %v3086
        %v3118 = vpack.c.bf16 %v3097, %v3094
        %v3119 = vpack.c.bf16 %v3105, %v3102
        %3120 = vmatprep.subr.bf16.mxu0 0
        %3121 = vmatpush1.bf16.xpose.msra.mxu0 %v3112
        %3122 = vmatprep.subr.bf16.mxu0 0
        %3123 = vmatpush1.bf16.xpose.msra.mxu0 0
        %3124 = vmatprep.subr.bf16.mxu0 0
        %3125 = vmatpush1.bf16.xpose.msra.mxu0 0
        %3126 = vmatprep.subr.bf16.mxu0 0
        %3127 = vmatpush1.bf16.xpose.msra.mxu0 0
        %3128 = vmatprep.subr.bf16.mxu0 0
        %3129 = vmatpush1.bf16.xpose.msra.mxu0 0
        %3130 = vmatprep.subr.bf16.mxu0 0
        %3131 = vmatpush1.bf16.xpose.msra.mxu0 0
        %3132 = vmatprep.subr.bf16.mxu0 0
        %3133 = vmatpush1.bf16.xpose.msra.mxu0 0
        %3134 = vmatprep.subr.bf16.mxu0 0
        %3135 = vmatpush1.bf16.xpose.msra.mxu0 0
        %3136 = vmatprep.subr.bf16.mxu0 0
        %3137 = vmatpush1.bf16.xpose.msra.mxu0 0
        %3138 = vmatprep.subr.bf16.mxu0 0
        %3139 = vmatpush1.bf16.xpose.msra.mxu0 0
        %3140 = vmatprep.subr.bf16.mxu0 0
        %3141 = vmatpush1.bf16.xpose.msra.mxu0 0
        %3142 = vmatprep.subr.bf16.mxu0 0
        %3143 = vmatpush1.bf16.xpose.msra.mxu0 0
        %3144 = vmatprep.subr.bf16.mxu0 0
        %3145 = vmatpush1.bf16.xpose.msra.mxu0 0
        %3146 = vmatprep.subr.bf16.mxu0 0
        %3147 = vmatpush1.bf16.xpose.msra.mxu0 0
        %3148 = vmatprep.subr.bf16.mxu0 0
        %3149 = vmatpush1.bf16.xpose.msra.mxu0 0
        %3150 = vmatprep.subr.bf16.mxu0 0
        %3151 = vmatpush1.bf16.xpose.msra.mxu0 0
        %3152 = vmatprep.mubr.bf16.mxu0 0
        %3153 = vmatmul.mubr.bf16.gmra.mrb[0].mxu0 %v3108
        %v3154 = vpop.f32.mrb[0].mxu0
        %v3155 = vadd.f32 0.0, %v3154
        %v3156 = vpop.f32.mrb[0].mxu0
        %v3157 = vpop.f32.mrb[0].mxu0
        %v3158 = vadd.f32 0.0, %v3157
        %v3159 = vpop.f32.mrb[0].mxu0
        %3160 = vdwg.mxu0
        %3161 = vmatprep.subr.bf16.mxu0 0
        %3162 = vmatpush1.bf16.xpose.msra.mxu0 %v3113
        %3163 = vmatprep.subr.bf16.mxu0 0
        %3164 = vmatpush1.bf16.xpose.msra.mxu0 0
        %3165 = vmatprep.subr.bf16.mxu0 0
        %3166 = vmatpush1.bf16.xpose.msra.mxu0 0
        %3167 = vmatprep.subr.bf16.mxu0 0
        %3168 = vmatpush1.bf16.xpose.msra.mxu0 0
        %3169 = vmatprep.subr.bf16.mxu0 0
        %3170 = vmatpush1.bf16.xpose.msra.mxu0 0
        %3171 = vmatprep.subr.bf16.mxu0 0
        %3172 = vmatpush1.bf16.xpose.msra.mxu0 0
        %3173 = vmatprep.subr.bf16.mxu0 0
        %3174 = vmatpush1.bf16.xpose.msra.mxu0 0
        %3175 = vmatprep.subr.bf16.mxu0 0
        %3176 = vmatpush1.bf16.xpose.msra.mxu0 0
        %3177 = vmatprep.subr.bf16.mxu0 0
        %3178 = vmatpush1.bf16.xpose.msra.mxu0 0
        %3179 = vmatprep.subr.bf16.mxu0 0
        %3180 = vmatpush1.bf16.xpose.msra.mxu0 0
        %3181 = vmatprep.subr.bf16.mxu0 0
        %3182 = vmatpush1.bf16.xpose.msra.mxu0 0
        %3183 = vmatprep.subr.bf16.mxu0 0
        %3184 = vmatpush1.bf16.xpose.msra.mxu0 0
        %3185 = vmatprep.subr.bf16.mxu0 0
        %3186 = vmatpush1.bf16.xpose.msra.mxu0 0
        %3187 = vmatprep.subr.bf16.mxu0 0
        %3188 = vmatpush1.bf16.xpose.msra.mxu0 0
        %3189 = vmatprep.subr.bf16.mxu0 0
        %3190 = vmatpush1.bf16.xpose.msra.mxu0 0
        %3191 = vmatprep.subr.bf16.mxu0 0
        %3192 = vmatpush1.bf16.xpose.msra.mxu0 0
        %3193 = vmatprep.mubr.bf16.mxu0 0
        %3194 = vmatmul.mubr.bf16.gmra.mrb[0].mxu0 %v3109
        %v3195 = vpop.f32.mrb[0].mxu0
        %v3196 = vadd.f32 0.0, %v3195
        %v3197 = vpop.f32.mrb[0].mxu0
        %v3198 = vpop.f32.mrb[0].mxu0
        %v3199 = vadd.f32 0.0, %v3198
        %v3200 = vpop.f32.mrb[0].mxu0
        %3201 = vdwg.mxu0
        %3202 = vmatprep.subr.bf16.mxu0 0
        %3203 = vmatpush1.bf16.xpose.msra.mxu0 %v3114
        %3204 = vmatprep.subr.bf16.mxu0 0
        %3205 = vmatpush1.bf16.xpose.msra.mxu0 0
        %3206 = vmatprep.subr.bf16.mxu0 0
        %3207 = vmatpush1.bf16.xpose.msra.mxu0 0
        %3208 = vmatprep.subr.bf16.mxu0 0
        %3209 = vmatpush1.bf16.xpose.msra.mxu0 0
        %3210 = vmatprep.subr.bf16.mxu0 0
        %3211 = vmatpush1.bf16.xpose.msra.mxu0 0
        %3212 = vmatprep.subr.bf16.mxu0 0
        %3213 = vmatpush1.bf16.xpose.msra.mxu0 0
        %3214 = vmatprep.subr.bf16.mxu0 0
        %3215 = vmatpush1.bf16.xpose.msra.mxu0 0
        %3216 = vmatprep.subr.bf16.mxu0 0
        %3217 = vmatpush1.bf16.xpose.msra.mxu0 0
        %3218 = vmatprep.subr.bf16.mxu0 0
        %3219 = vmatpush1.bf16.xpose.msra.mxu0 0
        %3220 = vmatprep.subr.bf16.mxu0 0
        %3221 = vmatpush1.bf16.xpose.msra.mxu0 0
        %3222 = vmatprep.subr.bf16.mxu0 0
        %3223 = vmatpush1.bf16.xpose.msra.mxu0 0
        %3224 = vmatprep.subr.bf16.mxu0 0
        %3225 = vmatpush1.bf16.xpose.msra.mxu0 0
        %3226 = vmatprep.subr.bf16.mxu0 0
        %3227 = vmatpush1.bf16.xpose.msra.mxu0 0
        %3228 = vmatprep.subr.bf16.mxu0 0
        %3229 = vmatpush1.bf16.xpose.msra.mxu0 0
        %3230 = vmatprep.subr.bf16.mxu0 0
        %3231 = vmatpush1.bf16.xpose.msra.mxu0 0
        %3232 = vmatprep.subr.bf16.mxu0 0
        %3233 = vmatpush1.bf16.xpose.msra.mxu0 0
        %3234 = vmatprep.mubr.bf16.mxu0 0
        %3235 = vmatmul.mubr.bf16.gmra.mrb[0].mxu0 %v3110
        %v3236 = vpop.f32.mrb[0].mxu0
        %v3237 = vadd.f32 0.0, %v3236
        %v3238 = vpop.f32.mrb[0].mxu0
        %v3239 = vpop.f32.mrb[0].mxu0
        %v3240 = vadd.f32 0.0, %v3239
        %v3241 = vpop.f32.mrb[0].mxu0
        %3242 = vdwg.mxu0
        %3243 = vmatprep.subr.bf16.mxu0 0
        %3244 = vmatpush1.bf16.xpose.msra.mxu0 %v3115
        %3245 = vmatprep.subr.bf16.mxu0 0
        %3246 = vmatpush1.bf16.xpose.msra.mxu0 0
        %3247 = vmatprep.subr.bf16.mxu0 0
        %3248 = vmatpush1.bf16.xpose.msra.mxu0 0
        %3249 = vmatprep.subr.bf16.mxu0 0
        %3250 = vmatpush1.bf16.xpose.msra.mxu0 0
        %3251 = vmatprep.subr.bf16.mxu0 0
        %3252 = vmatpush1.bf16.xpose.msra.mxu0 0
        %3253 = vmatprep.subr.bf16.mxu0 0
        %3254 = vmatpush1.bf16.xpose.msra.mxu0 0
        %3255 = vmatprep.subr.bf16.mxu0 0
        %3256 = vmatpush1.bf16.xpose.msra.mxu0 0
        %3257 = vmatprep.subr.bf16.mxu0 0
        %3258 = vmatpush1.bf16.xpose.msra.mxu0 0
        %3259 = vmatprep.subr.bf16.mxu0 0
        %3260 = vmatpush1.bf16.xpose.msra.mxu0 0
        %3261 = vmatprep.subr.bf16.mxu0 0
        %3262 = vmatpush1.bf16.xpose.msra.mxu0 0
        %3263 = vmatprep.subr.bf16.mxu0 0
        %3264 = vmatpush1.bf16.xpose.msra.mxu0 0
        %3265 = vmatprep.subr.bf16.mxu0 0
        %3266 = vmatpush1.bf16.xpose.msra.mxu0 0
        %3267 = vmatprep.subr.bf16.mxu0 0
        %3268 = vmatpush1.bf16.xpose.msra.mxu0 0
        %3269 = vmatprep.subr.bf16.mxu0 0
        %3270 = vmatpush1.bf16.xpose.msra.mxu0 0
        %3271 = vmatprep.subr.bf16.mxu0 0
        %3272 = vmatpush1.bf16.xpose.msra.mxu0 0
        %3273 = vmatprep.subr.bf16.mxu0 0
        %3274 = vmatpush1.bf16.xpose.msra.mxu0 0
        %3275 = vmatprep.mubr.bf16.mxu0 0
        %3276 = vmatmul.mubr.bf16.gmra.mrb[0].mxu0 %v3111
        %v3277 = vpop.f32.mrb[0].mxu0
        %v3278 = vadd.f32 0.0, %v3277
        %v3279 = vpop.f32.mrb[0].mxu0
        %v3280 = vpop.f32.mrb[0].mxu0
        %v3281 = vadd.f32 0.0, %v3280
        %v3282 = vpop.f32.mrb[0].mxu0
        %3283 = vdwg.mxu0
        %v3284 = vmul.f32 %v3155, 0.088388346
        %v3285 = vmul.f32 %v3158, 0.088388346
        %v3286 = vmul.f32 %v3196, 0.088388346
        %v3287 = vmul.f32 %v3199, 0.088388346
        %v3288 = vmul.f32 %v3237, 0.088388346
        %v3289 = vmul.f32 %v3240, 0.088388346
        %v3290 = vmul.f32 %v3278, 0.088388346
        %v3291 = vmul.f32 %v3281, 0.088388346
        %v3292 = vsel %vm972, %v3284, -inf
        %3293 = vmax.xlane.f32.xlu0 %v3292
        %v3294 = vpop.xlane.xlu0 %3293
        %v3295 = vsel %vm972, %v3285, -inf
        %3296 = vmax.xlane.f32.xlu0 %v3295
        %v3297 = vpop.xlane.xlu0 %3296
        %v3298 = vsel %vm972, %v3286, -inf
        %3299 = vmax.xlane.f32.xlu0 %v3298
        %v3300 = vpop.xlane.xlu0 %3299
        %v3301 = vsel %vm972, %v3287, -inf
        %3302 = vmax.xlane.f32.xlu0 %v3301
        %v3303 = vpop.xlane.xlu0 %3302
        %v3304 = vsel %vm972, %v3288, -inf
        %3305 = vmax.xlane.f32.xlu0 %v3304
        %v3306 = vpop.xlane.xlu0 %3305
        %v3307 = vsel %vm972, %v3289, -inf
        %3308 = vmax.xlane.f32.xlu0 %v3307
        %v3309 = vpop.xlane.xlu0 %3308
        %v3310 = vsel %vm972, %v3290, -inf
        %3311 = vmax.xlane.f32.xlu0 %v3310
        %v3312 = vpop.xlane.xlu0 %3311
        %v3313 = vsel %vm972, %v3291, -inf
        %3314 = vmax.xlane.f32.xlu0 %v3313
        %v3315 = vpop.xlane.xlu0 %3314
        %v3316 = vsub.f32 %v3284, %v3294
        %v3317 = vsub.f32 %v3285, %v3297
        %v3318 = vsub.f32 %v3286, %v3300
        %v3319 = vsub.f32 %v3287, %v3303
        %v3320 = vsub.f32 %v3288, %v3306
        %v3321 = vsub.f32 %v3289, %v3309
        %v3322 = vsub.f32 %v3290, %v3312
        %v3323 = vsub.f32 %v3291, %v3315
        %v3324 = vmul.f32 %v3316, 1.442695
        %v3325 = vpow.pop %v3324
        %v3326 = vmul.f32 %v3317, 1.442695
        %v3327 = vpow.pop %v3326
        %v3328 = vmul.f32 %v3318, 1.442695
        %v3329 = vpow.pop %v3328
        %v3330 = vmul.f32 %v3319, 1.442695
        %v3331 = vpow.pop %v3330
        %v3332 = vmul.f32 %v3320, 1.442695
        %v3333 = vpow.pop %v3332
        %v3334 = vmul.f32 %v3321, 1.442695
        %v3335 = vpow.pop %v3334
        %v3336 = vmul.f32 %v3322, 1.442695
        %v3337 = vpow.pop %v3336
        %v3338 = vmul.f32 %v3323, 1.442695
        %v3339 = vpow.pop %v3338
        %v3340 = vsel %vm972, %v3325, 0.0
        %3341 = vadd.xlane.f32.xlu0 %v3340
        %v3342 = vpop.xlane.xlu0 %3341
        %v3343 = vsel %vm972, %v3327, 0.0
        %3344 = vadd.xlane.f32.xlu0 %v3343
        %v3345 = vpop.xlane.xlu0 %3344
        %v3346 = vsel %vm972, %v3329, 0.0
        %3347 = vadd.xlane.f32.xlu0 %v3346
        %v3348 = vpop.xlane.xlu0 %3347
        %v3349 = vsel %vm972, %v3331, 0.0
        %3350 = vadd.xlane.f32.xlu0 %v3349
        %v3351 = vpop.xlane.xlu0 %3350
        %v3352 = vsel %vm972, %v3333, 0.0
        %3353 = vadd.xlane.f32.xlu0 %v3352
        %v3354 = vpop.xlane.xlu0 %3353
        %v3355 = vsel %vm972, %v3335, 0.0
        %3356 = vadd.xlane.f32.xlu0 %v3355
        %v3357 = vpop.xlane.xlu0 %3356
        %v3358 = vsel %vm972, %v3337, 0.0
        %3359 = vadd.xlane.f32.xlu0 %v3358
        %v3360 = vpop.xlane.xlu0 %3359
        %v3361 = vsel %vm972, %v3339, 0.0
        %3362 = vadd.xlane.f32.xlu0 %v3361
        %v3363 = vpop.xlane.xlu0 %3362
        %v3364 = vrcp.pop %v3342
        %v3365 = vmul.f32 %v3325, %v3364
        %v3366 = vrcp.pop %v3345
        %v3367 = vmul.f32 %v3327, %v3366
        %v3368 = vrcp.pop %v3348
        %v3369 = vmul.f32 %v3329, %v3368
        %v3370 = vrcp.pop %v3351
        %v3371 = vmul.f32 %v3331, %v3370
        %v3372 = vrcp.pop %v3354
        %v3373 = vmul.f32 %v3333, %v3372
        %v3374 = vrcp.pop %v3357
        %v3375 = vmul.f32 %v3335, %v3374
        %v3376 = vrcp.pop %v3360
        %v3377 = vmul.f32 %v3337, %v3376
        %v3378 = vrcp.pop %v3363
        %v3379 = vmul.f32 %v3339, %v3378
        %v3380 = vpack.c.bf16 %v3367, %v3365
        %v3381 = vpack.c.bf16 %v3371, %v3369
        %v3382 = vpack.c.bf16 %v3375, %v3373
        %v3383 = vpack.c.bf16 %v3379, %v3377
        %v3385 = vsel %vm972, %v3380, 0
        %3387 = vmatprep.subr.bf16.mxu0 0
        %3388 = vmatpush1.bf16.msra.mxu0 %v3116
        %3389 = vmatprep.subr.bf16.mxu0 0
        %3390 = vmatpush1.bf16.msra.mxu0 0
        %3391 = vmatprep.subr.bf16.mxu0 0
        %3392 = vmatpush1.bf16.msra.mxu0 0
        %3393 = vmatprep.subr.bf16.mxu0 0
        %3394 = vmatpush1.bf16.msra.mxu0 0
        %3395 = vmatprep.subr.bf16.mxu0 0
        %3396 = vmatpush1.bf16.msra.mxu0 0
        %3397 = vmatprep.subr.bf16.mxu0 0
        %3398 = vmatpush1.bf16.msra.mxu0 0
        %3399 = vmatprep.subr.bf16.mxu0 0
        %3400 = vmatpush1.bf16.msra.mxu0 0
        %3401 = vmatprep.subr.bf16.mxu0 0
        %3402 = vmatpush1.bf16.msra.mxu0 0
        %3403 = vmatprep.subr.bf16.mxu0 0
        %3404 = vmatpush1.bf16.msra.mxu0 0
        %3405 = vmatprep.subr.bf16.mxu0 0
        %3406 = vmatpush1.bf16.msra.mxu0 0
        %3407 = vmatprep.subr.bf16.mxu0 0
        %3408 = vmatpush1.bf16.msra.mxu0 0
        %3409 = vmatprep.subr.bf16.mxu0 0
        %3410 = vmatpush1.bf16.msra.mxu0 0
        %3411 = vmatprep.subr.bf16.mxu0 0
        %3412 = vmatpush1.bf16.msra.mxu0 0
        %3413 = vmatprep.subr.bf16.mxu0 0
        %3414 = vmatpush1.bf16.msra.mxu0 0
        %3415 = vmatprep.subr.bf16.mxu0 0
        %3416 = vmatpush1.bf16.msra.mxu0 0
        %3417 = vmatprep.subr.bf16.mxu0 0
        %3418 = vmatpush1.bf16.msra.mxu0 0
        %3419 = vmatprep.mubr.bf16.mxu0 0
        %3420 = vmatmul.mubr.bf16.gmra.mrb[0].mxu0 %v3385
        %v3421 = vpop.f32.mrb[0].mxu0
        %v3422 = vadd.f32 0.0, %v3421
        %v3423 = vpop.f32.mrb[0].mxu0
        %v3424 = vpop.f32.mrb[0].mxu0
        %v3425 = vadd.f32 0.0, %v3424
        %v3426 = vpop.f32.mrb[0].mxu0
        %3427 = vdwg.mxu0
        %v3429 = vsel %vm972, %v3381, 0
        %3431 = vmatprep.subr.bf16.mxu0 0
        %3432 = vmatpush1.bf16.msra.mxu0 %v3117
        %3433 = vmatprep.subr.bf16.mxu0 0
        %3434 = vmatpush1.bf16.msra.mxu0 0
        %3435 = vmatprep.subr.bf16.mxu0 0
        %3436 = vmatpush1.bf16.msra.mxu0 0
        %3437 = vmatprep.subr.bf16.mxu0 0
        %3438 = vmatpush1.bf16.msra.mxu0 0
        %3439 = vmatprep.subr.bf16.mxu0 0
        %3440 = vmatpush1.bf16.msra.mxu0 0
        %3441 = vmatprep.subr.bf16.mxu0 0
        %3442 = vmatpush1.bf16.msra.mxu0 0
        %3443 = vmatprep.subr.bf16.mxu0 0
        %3444 = vmatpush1.bf16.msra.mxu0 0
        %3445 = vmatprep.subr.bf16.mxu0 0
        %3446 = vmatpush1.bf16.msra.mxu0 0
        %3447 = vmatprep.subr.bf16.mxu0 0
        %3448 = vmatpush1.bf16.msra.mxu0 0
        %3449 = vmatprep.subr.bf16.mxu0 0
        %3450 = vmatpush1.bf16.msra.mxu0 0
        %3451 = vmatprep.subr.bf16.mxu0 0
        %3452 = vmatpush1.bf16.msra.mxu0 0
        %3453 = vmatprep.subr.bf16.mxu0 0
        %3454 = vmatpush1.bf16.msra.mxu0 0
        %3455 = vmatprep.subr.bf16.mxu0 0
        %3456 = vmatpush1.bf16.msra.mxu0 0
        %3457 = vmatprep.subr.bf16.mxu0 0
        %3458 = vmatpush1.bf16.msra.mxu0 0
        %3459 = vmatprep.subr.bf16.mxu0 0
        %3460 = vmatpush1.bf16.msra.mxu0 0
        %3461 = vmatprep.subr.bf16.mxu0 0
        %3462 = vmatpush1.bf16.msra.mxu0 0
        %3463 = vmatprep.mubr.bf16.mxu0 0
        %3464 = vmatmul.mubr.bf16.gmra.mrb[0].mxu0 %v3429
        %v3465 = vpop.f32.mrb[0].mxu0
        %v3466 = vadd.f32 0.0, %v3465
        %v3467 = vpop.f32.mrb[0].mxu0
        %v3468 = vpop.f32.mrb[0].mxu0
        %v3469 = vadd.f32 0.0, %v3468
        %v3470 = vpop.f32.mrb[0].mxu0
        %3471 = vdwg.mxu0
        %v3473 = vsel %vm972, %v3382, 0
        %3475 = vmatprep.subr.bf16.mxu0 0
        %3476 = vmatpush1.bf16.msra.mxu0 %v3118
        %3477 = vmatprep.subr.bf16.mxu0 0
        %3478 = vmatpush1.bf16.msra.mxu0 0
        %3479 = vmatprep.subr.bf16.mxu0 0
        %3480 = vmatpush1.bf16.msra.mxu0 0
        %3481 = vmatprep.subr.bf16.mxu0 0
        %3482 = vmatpush1.bf16.msra.mxu0 0
        %3483 = vmatprep.subr.bf16.mxu0 0
        %3484 = vmatpush1.bf16.msra.mxu0 0
        %3485 = vmatprep.subr.bf16.mxu0 0
        %3486 = vmatpush1.bf16.msra.mxu0 0
        %3487 = vmatprep.subr.bf16.mxu0 0
        %3488 = vmatpush1.bf16.msra.mxu0 0
        %3489 = vmatprep.subr.bf16.mxu0 0
        %3490 = vmatpush1.bf16.msra.mxu0 0
        %3491 = vmatprep.subr.bf16.mxu0 0
        %3492 = vmatpush1.bf16.msra.mxu0 0
        %3493 = vmatprep.subr.bf16.mxu0 0
        %3494 = vmatpush1.bf16.msra.mxu0 0
        %3495 = vmatprep.subr.bf16.mxu0 0
        %3496 = vmatpush1.bf16.msra.mxu0 0
        %3497 = vmatprep.subr.bf16.mxu0 0
        %3498 = vmatpush1.bf16.msra.mxu0 0
        %3499 = vmatprep.subr.bf16.mxu0 0
        %3500 = vmatpush1.bf16.msra.mxu0 0
        %3501 = vmatprep.subr.bf16.mxu0 0
        %3502 = vmatpush1.bf16.msra.mxu0 0
        %3503 = vmatprep.subr.bf16.mxu0 0
        %3504 = vmatpush1.bf16.msra.mxu0 0
        %3505 = vmatprep.subr.bf16.mxu0 0
        %3506 = vmatpush1.bf16.msra.mxu0 0
        %3507 = vmatprep.mubr.bf16.mxu0 0
        %3508 = vmatmul.mubr.bf16.gmra.mrb[0].mxu0 %v3473
        %v3509 = vpop.f32.mrb[0].mxu0
        %v3510 = vadd.f32 0.0, %v3509
        %v3511 = vpop.f32.mrb[0].mxu0
        %v3512 = vpop.f32.mrb[0].mxu0
        %v3513 = vadd.f32 0.0, %v3512
        %v3514 = vpop.f32.mrb[0].mxu0
        %3515 = vdwg.mxu0
        %v3517 = vsel %vm972, %v3383, 0
        %3519 = vmatprep.subr.bf16.mxu0 0
        %3520 = vmatpush1.bf16.msra.mxu0 %v3119
        %3521 = vmatprep.subr.bf16.mxu0 0
        %3522 = vmatpush1.bf16.msra.mxu0 0
        %3523 = vmatprep.subr.bf16.mxu0 0
        %3524 = vmatpush1.bf16.msra.mxu0 0
        %3525 = vmatprep.subr.bf16.mxu0 0
        %3526 = vmatpush1.bf16.msra.mxu0 0
        %3527 = vmatprep.subr.bf16.mxu0 0
        %3528 = vmatpush1.bf16.msra.mxu0 0
        %3529 = vmatprep.subr.bf16.mxu0 0
        %3530 = vmatpush1.bf16.msra.mxu0 0
        %3531 = vmatprep.subr.bf16.mxu0 0
        %3532 = vmatpush1.bf16.msra.mxu0 0
        %3533 = vmatprep.subr.bf16.mxu0 0
        %3534 = vmatpush1.bf16.msra.mxu0 0
        %3535 = vmatprep.subr.bf16.mxu0 0
        %3536 = vmatpush1.bf16.msra.mxu0 0
        %3537 = vmatprep.subr.bf16.mxu0 0
        %3538 = vmatpush1.bf16.msra.mxu0 0
        %3539 = vmatprep.subr.bf16.mxu0 0
        %3540 = vmatpush1.bf16.msra.mxu0 0
        %3541 = vmatprep.subr.bf16.mxu0 0
        %3542 = vmatpush1.bf16.msra.mxu0 0
        %3543 = vmatprep.subr.bf16.mxu0 0
        %3544 = vmatpush1.bf16.msra.mxu0 0
        %3545 = vmatprep.subr.bf16.mxu0 0
        %3546 = vmatpush1.bf16.msra.mxu0 0
        %3547 = vmatprep.subr.bf16.mxu0 0
        %3548 = vmatpush1.bf16.msra.mxu0 0
        %3549 = vmatprep.subr.bf16.mxu0 0
        %3550 = vmatpush1.bf16.msra.mxu0 0
        %3551 = vmatprep.mubr.bf16.mxu0 0
        %3552 = vmatmul.mubr.bf16.gmra.mrb[0].mxu0 %v3517
        %v3553 = vpop.f32.mrb[0].mxu0
        %v3554 = vadd.f32 0.0, %v3553
        %v3555 = vpop.f32.mrb[0].mxu0
        %v3556 = vpop.f32.mrb[0].mxu0
        %v3557 = vadd.f32 0.0, %v3556
        %v3558 = vpop.f32.mrb[0].mxu0
        %3559 = vdwg.mxu0
        %3560 = vst [vmem:[%s257] sm:$0xff] %v3422
        %3561 = vst [vmem:[%s257 + $0x8] sm:$0xff] %v3425
        %3562 = vst [vmem:[%s257 + $0x10] sm:$0xff] %v3466
        %3563 = vst [vmem:[%s257 + $0x18] sm:$0xff] %v3469
        %3564 = vst [vmem:[%s257 + $0x20] sm:$0xff] %v3510
        %3565 = vst [vmem:[%s257 + $0x28] sm:$0xff] %v3513
        %3566 = vst [vmem:[%s257 + $0x30] sm:$0xff] %v3554
        %3567 = vst [vmem:[%s257 + $0x38] sm:$0xff] %v3557
        %s3568 = sand.u32 %s141, 1
        %s3569 = scalar_lea.sflag [#allocation4], %s3568
        %s3570 = sand.u32 %s141, 1
        %s3571 = smul.addr %s3570, 64
        %s3572 = scalar_lea.vmem [#allocation7], %s3571
        // Predicated region
        $region49: #{tpu_custom_call.1} parent=39 // pred_check
          %p3573 = pneg %p151
        $region50: #{tpu_custom_call.1} parent=39 // pred_check_branch
          %3575 = sbr.rel (%p3573) target = $region52
        $region51: #{tpu_custom_call.1} parent=39 // pred_region
          %s3576 = smul.u32 4, %s23
          %s3578 = ssub.s32 1024, 1024
          %3579 = vsyncadd %s3569, %s3578
          %s3580 = smul.addr %s3576, 2
          %s3581 = smul.addr %s3580, 128
          %s3582 = scalar_lea.hbm %s5, %s3581
          %s3583 = sshll.u32 %s3572, 4
          %s3584 = int_to_ptr.vmem [resolvable:$true] %s3583
          %3589 = dma.vmem_to_hbm [thread:$0]  %s3584, 1024, %s3582, %s3569, 128, 128, 8
        $region52: #{tpu_custom_call.1} parent=39 // pred_fallthru
          _
      $region40: #{tpu_custom_call.1} parent=5 // pred_fallthru
        _
      %p3590 = scmp.le.s32.totalorder 2, %s18
      // Predicated region
      $region53: #{tpu_custom_call.1} parent=5 // pred_check
        %p3591 = pneg %p3590
      $region54: #{tpu_custom_call.1} parent=5 // pred_check_branch
        %3593 = sbr.rel (%p3591) target = $region56
      $region55: #{tpu_custom_call.1} parent=5 // pred_region
        %s3594 = ssub.s32 %s18, 2
        // Predicated region
        $region57: #{tpu_custom_call.1} parent=55 // pred_check
          %p3595 = pneg %p157
        $region58: #{tpu_custom_call.1} parent=55 // pred_check_branch
          %3597 = sbr.rel (%p3595) target = $region60
        $region59: #{tpu_custom_call.1} parent=55 // pred_region
          %s3598 = sand.u32 %s142, 1
          %s3599 = scalar_lea.sflag [#allocation4], %s3598
          %s3600 = sand.u32 %s142, 1
          %s3601 = smul.addr %s3600, 64
          %s3602 = scalar_lea.vmem [#allocation7], %s3601
          %3603 = dma.done %s3599, 1024
        $region60: #{tpu_custom_call.1} parent=55 // pred_fallthru
          _
      $region56: #{tpu_custom_call.1} parent=5 // pred_fallthru
        _
    $region6: #{tpu_custom_call.1} parent=1 // loop_footer
      %s22 = sadd.s32 1, %s18
    $region7: #{tpu_custom_call.1} parent=1 // loop_footer_branch
      %17 = sbr.rel target = $region3
    $region8: #{tpu_custom_call.1} parent=1 // loop_exit
      _
    %3604 = vsyncpa [#allocation3], 1
    %s3605 = scalar_lea.sflag [#allocation3], 1
    %3606 = vsyncpa %s3605, 1
    %3607 = vsyncpa [#allocation6], 1
    %3608 = vsyncpa [#allocation4], 1
    %s3609 = scalar_lea.sflag [#allocation4], 1
    %3610 = vsyncpa %s3609, 1

</llo_original>
